<compile_context>
chip_gen: v7x
topology: tpu7x:2x2x1
jax: 0.10.0
libtpu: 0.0.40
codegen_flags: <defaults>
</compile_context>

<pallas_src>
import math
import jax
import jax.numpy as jnp
from jax import lax
from jax.experimental import pallas as pl
from jax.experimental.pallas import tpu as pltpu


# --------------------- fused Pallas kernel: whole LSTM stack in one call ---------------------
def make_fused_lstm_kernel(num_layers, num_dir, T, B, H):
    nw = num_layers * num_dir

    def kernel(*args):
        x_ref = args[0]                       # (T, B, D0)            time-major input
        w_refs = args[1:1 + nw]               # per (layer, dir): (D_in + H, 4H)  == [Wih^T; Whh^T]
        b_refs = args[1 + nw:1 + 2 * nw]      # per (layer, dir): (1, 4H)         == b_ih + b_hh
        out_ref = args[1 + 2 * nw]            # (T, B, num_dir*H)     final layer output
        act_ref = args[2 + 2 * nw]            # VMEM (T, B, num_dir*H) inter-layer activations
        dir_bufs = args[3 + 2 * nw:]          # num_dir x VMEM (T, B, H) per-direction outputs

        def run_direction(in_ref, buf_ref, w, bias, reverse):
            def step(t, carry):
                h, c = carry
                tt = (T - 1 - t) if reverse else t
                x_t = in_ref[tt]                                      # (B, D_in)
                xh = jnp.concatenate([x_t, h], axis=-1)               # (B, D_in + H)
                gates = jnp.dot(xh, w, preferred_element_type=jnp.float32) + bias  # (B, 4H)
                sig = jax.nn.sigmoid(gates)                           # whole-vreg EUP work
                th = jnp.tanh(gates)
                i_g = sig[:, 0 * H:1 * H]
                f_g = sig[:, 1 * H:2 * H]
                g_g = th[:, 2 * H:3 * H]
                o_g = sig[:, 3 * H:4 * H]
                c_new = f_g * c + i_g * g_g
                h_new = o_g * jnp.tanh(c_new)
                buf_ref[tt] = h_new                                   # VMEM scratch write
                return (h_new, c_new)

            init = (jnp.zeros((B, H), jnp.float32),
                    jnp.zeros((B, H), jnp.float32))
            lax.fori_loop(0, T, step, init, unroll=True)

        for layer in range(num_layers):                # static unroll over layers
            in_ref = x_ref if layer == 0 else act_ref
            for d in range(num_dir):                   # static unroll over directions
                w = w_refs[layer * num_dir + d][...]
                bias = b_refs[layer * num_dir + d][...]
                run_direction(in_ref, dir_bufs[d], w, bias, reverse=(d == 1))

            if num_dir == 2:
                layer_out = jnp.concatenate([dir_bufs[0][...], dir_bufs[1][...]], axis=-1)
            else:
                layer_out = dir_bufs[0][...]

            if layer == num_layers - 1:
                out_ref[...] = layer_out.astype(out_ref.dtype)   # single HBM writeback
            else:
                act_ref[...] = layer_out                          # stays in VMEM

    return kernel


def run_lstm_encoder_pallas(x, params, hidden_size, num_layers, bidir):
    """Equivalent of LSTMEncoder.forward: x (B, T, D) -> lstm_out (B, T, num_dir*H)."""
    num_dir = 2 if bidir else 1
    B, T, D0 = x.shape
    H = hidden_size

    x_tbd = jnp.transpose(x, (1, 0, 2))                 # (T, B, D0) time-major, once

    w_list, b_list, w_specs, b_specs = [], [], [], []
    for layer in range(num_layers):
        for d in range(num_dir):
            wihT, whhT, b = params[(layer, d)]
            w_comb = jnp.concatenate([wihT, whhT], axis=0)     # (D_in + H, 4H)
            w_list.append(w_comb)
            b_list.append(b.reshape(1, 4 * H))
            w_specs.append(pl.BlockSpec(w_comb.shape, lambda i: (0, 0)))
            b_specs.append(pl.BlockSpec((1, 4 * H), lambda i: (0, 0)))

    in_specs = [pl.BlockSpec((T, B, D0), lambda i: (0, 0, 0))] + w_specs + b_specs
    out_specs = pl.BlockSpec((T, B, num_dir * H), lambda i: (0, 0, 0))

    scratch_shapes = (
        [pltpu.VMEM((T, B, num_dir * H), jnp.float32)]                       # inter-layer acts
        + [pltpu.VMEM((T, B, H), jnp.float32) for _ in range(num_dir)]        # per-dir outputs
    )

    kernel = make_fused_lstm_kernel(num_layers, num_dir, T, B, H)

    out_tbd = pl.pallas_call(
        kernel,
        out_shape=jax.ShapeDtypeStruct((T, B, num_dir * H), jnp.float32),
        grid=(1,),
        in_specs=in_specs,
        out_specs=out_specs,
        scratch_shapes=scratch_shapes,
        compiler_params=pltpu.CompilerParams(
            dimension_semantics=("arbitrary",),     # single invocation; recurrence is internal
        ),
    )(x_tbd, *w_list, *b_list)

    return jnp.transpose(out_tbd, (1, 0, 2))            # (B, T, num_dir*H), once


# ------------------------------ parameter init (PyTorch-style) ------------------------------
def init_lstm_params(key, input_size, hidden_size, num_layers, bidir):
    """PyTorch uniform(-1/sqrt(H), 1/sqrt(H)) init; deterministic. Gate order (i, f, g, o)."""
    num_dir = 2 if bidir else 1
    bound = 1.0 / math.sqrt(hidden_size)
    params = {}
    for layer in range(num_layers):
        d_in = input_size if layer == 0 else hidden_size * num_dir
        for d in range(num_dir):
            key, k1, k2, k3, k4 = jax.random.split(key, 5)
            w_ih = jax.random.uniform(k1, (4 * hidden_size, d_in), jnp.float32, -bound, bound)
            w_hh = jax.random.uniform(k2, (4 * hidden_size, hidden_size), jnp.float32, -bound, bound)
            b_ih = jax.random.uniform(k3, (4 * hidden_size,), jnp.float32, -bound, bound)
            b_hh = jax.random.uniform(k4, (4 * hidden_size,), jnp.float32, -bound, bound)
            params[(layer, d)] = (w_ih.T, w_hh.T, b_ih + b_hh)   # pre-transposed for kernel
    return params


# ------------------------------ pure-JAX reference ------------------------------
def _lstm_layer_ref(x_tbd, wihT, whhT, b):
    H = whhT.shape[0]
    B = x_tbd.shape[1]

    def step(carry, x_t):
        h, c = carry
        gates = x_t @ wihT + h @ whhT + b
        i = jax.nn.sigmoid(gates[:, 0 * H:1 * H])
        f = jax.nn.sigmoid(gates[:, 1 * H:2 * H])
        g = jnp.tanh(gates[:, 2 * H:3 * H])
        o = jax.nn.sigmoid(gates[:, 3 * H:4 * H])
        c = f * c + i * g
        h = o * jnp.tanh(c)
        return (h, c), h

    init = (jnp.zeros((B, H), jnp.float32), jnp.zeros((B, H), jnp.float32))
    _, hs = jax.lax.scan(step, init, x_tbd)
    return hs


def lstm_encoder_reference(x, params, hidden_size, num_layers, bidir):
    num_dir = 2 if bidir else 1
    inp = x
    for layer in range(num_layers):
        outs = []
        for d in range(num_dir):
            wihT, whhT, b = params[(layer, d)]
            xd = inp if d == 0 else inp[:, ::-1, :]
            out = _lstm_layer_ref(jnp.transpose(xd, (1, 0, 2)), wihT, whhT, b)
            out = jnp.transpose(out, (1, 0, 2))
            if d == 1:
                out = out[:, ::-1, :]
            outs.append(out)
        inp = jnp.concatenate(outs, axis=-1) if num_dir == 2 else outs[0]
    return inp


# ------------------------------------ main ------------------------------------
if __name__ == "__main__":
    # Module config (small): input_size=16, hidden_size=32, num_layers=2, bidir=True, dropout=0.0
    input_size, hidden_size, num_layers, bidir = 16, 32, 2, True
    B, T = 2, 8

    key = jax.random.PRNGKey(0)
    kx, kp = jax.random.split(key)
    x = jax.random.normal(kx, (B, T, input_size), jnp.float32)   # batch_first (B, T, D)
    params = init_lstm_params(kp, input_size, hidden_size, num_layers, bidir)

    out = run_lstm_encoder_pallas(x, params, hidden_size, num_layers, bidir)
    out = jax.block_until_ready(out)

    ref = lstm_encoder_reference(x, params, hidden_size, num_layers, bidir)
    assert out.shape == (B, T, hidden_size * (2 if bidir else 1)), out.shape
    assert jnp.allclose(out, ref, atol=1e-4, rtol=1e-4), "mismatch vs reference"

    print("KERNEL_OK")
</pallas_src>

<mosaic_0001>
module attributes {stable_mosaic.version = 11 : i64} {
  func.func @kernel(%arg0: i32, %arg1: memref<8x2x16xf32, #tpu.memory_space<vmem>>, %arg2: memref<48x128xf32, #tpu.memory_space<vmem>>, %arg3: memref<48x128xf32, #tpu.memory_space<vmem>>, %arg4: memref<96x128xf32, #tpu.memory_space<vmem>>, %arg5: memref<96x128xf32, #tpu.memory_space<vmem>>, %arg6: memref<1x128xf32, #tpu.memory_space<vmem>>, %arg7: memref<1x128xf32, #tpu.memory_space<vmem>>, %arg8: memref<1x128xf32, #tpu.memory_space<vmem>>, %arg9: memref<1x128xf32, #tpu.memory_space<vmem>>, %arg10: memref<8x2x64xf32, #tpu.memory_space<vmem>>, %arg11: memref<8x2x64xf32, #tpu.memory_space<vmem>>, %arg12: memref<8x2x32xf32, #tpu.memory_space<vmem>>, %arg13: memref<8x2x32xf32, #tpu.memory_space<vmem>>) attributes {dimension_semantics = [#tpu.dimension_semantics<arbitrary>], iteration_bounds = array<i64: 1>, scalar_prefetch = 0 : i64, scratch_operands = 3 : i64, tpu.core_type = #tpu.core_type<tc>, window_params = [{pipeline_mode = #tpu.pipeline_mode<synchronous>, transform_indices = @transform_0, window_bounds = array<i64: 8, 2, 16>}, {pipeline_mode = #tpu.pipeline_mode<synchronous>, transform_indices = @transform_1, window_bounds = array<i64: 48, 128>}, {pipeline_mode = #tpu.pipeline_mode<synchronous>, transform_indices = @transform_2, window_bounds = array<i64: 48, 128>}, {pipeline_mode = #tpu.pipeline_mode<synchronous>, transform_indices = @transform_3, window_bounds = array<i64: 96, 128>}, {pipeline_mode = #tpu.pipeline_mode<synchronous>, transform_indices = @transform_4, window_bounds = array<i64: 96, 128>}, {pipeline_mode = #tpu.pipeline_mode<synchronous>, transform_indices = @transform_5, window_bounds = array<i64: 1, 128>}, {pipeline_mode = #tpu.pipeline_mode<synchronous>, transform_indices = @transform_6, window_bounds = array<i64: 1, 128>}, {pipeline_mode = #tpu.pipeline_mode<synchronous>, transform_indices = @transform_7, window_bounds = array<i64: 1, 128>}, {pipeline_mode = #tpu.pipeline_mode<synchronous>, transform_indices = @transform_8, window_bounds = array<i64: 1, 128>}, {pipeline_mode = #tpu.pipeline_mode<synchronous>, transform_indices = @transform_9, window_bounds = array<i64: 8, 2, 64>}]} {
    %c0 = arith.constant 0 : index
    %c0_0 = arith.constant 0 : index
    %0 = vector.load %arg2[%c0, %c0_0] : memref<48x128xf32, #tpu.memory_space<vmem>>, vector<48x128xf32>
    %c0_1 = arith.constant 0 : index
    %c0_2 = arith.constant 0 : index
    %1 = vector.load %arg6[%c0_1, %c0_2] : memref<1x128xf32, #tpu.memory_space<vmem>>, vector<1x128xf32>
    %cst = arith.constant 0.000000e+00 : f32
    %2 = vector.broadcast %cst : f32 to vector<2x32xf32>
    %cst_3 = arith.constant 0.000000e+00 : f32
    %3 = vector.broadcast %cst_3 : f32 to vector<2x32xf32>
    %c0_i32 = arith.constant 0 : i32
    %4 = arith.index_cast %c0_i32 : i32 to index
    %c0_4 = arith.constant 0 : index
    %c0_5 = arith.constant 0 : index
    %5 = vector.load %arg1[%4, %c0_4, %c0_5] : memref<8x2x16xf32, #tpu.memory_space<vmem>>, vector<1x2x16xf32>
    %6 = vector.shape_cast %5 : vector<1x2x16xf32> to vector<2x16xf32>
    %7 = tpu.concatenate %6, %2 in 1 : vector<2x16xf32>, vector<2x32xf32> -> vector<2x48xf32>
    %cst_6 = arith.constant dense<0.000000e+00> : vector<2x128xf32>
    %8 = tpu.matmul %7, %0, %cst_6 {dimension_numbers = #tpu.dot_dimension_numbers<[1], [0], [0], [1], [0, 0, 1, 1], [], []>} : vector<2x48xf32>, vector<48x128xf32>, vector<2x128xf32> -> vector<2x128xf32>
    %9 = vector.broadcast %1 : vector<1x128xf32> to vector<2x128xf32>
    %10 = arith.addf %8, %9 : vector<2x128xf32>
    %11 = arith.negf %10 : vector<2x128xf32>
    %12 = math.exp %11 : vector<2x128xf32>
    %cst_7 = arith.constant 1.000000e+00 : f32
    %13 = vector.broadcast %cst_7 : f32 to vector<2x128xf32>
    %14 = arith.addf %13, %12 : vector<2x128xf32>
    %15 = arith.divf %13, %14 : vector<2x128xf32>
    %16 = math.tanh %10 : vector<2x128xf32>
    %17 = vector.extract_strided_slice %15 {offsets = [0, 0], sizes = [2, 32], strides = [1, 1]} : vector<2x128xf32> to vector<2x32xf32>
    %18 = vector.extract_strided_slice %15 {offsets = [0, 32], sizes = [2, 32], strides = [1, 1]} : vector<2x128xf32> to vector<2x32xf32>
    %19 = vector.extract_strided_slice %16 {offsets = [0, 64], sizes = [2, 32], strides = [1, 1]} : vector<2x128xf32> to vector<2x32xf32>
    %20 = vector.extract_strided_slice %15 {offsets = [0, 96], sizes = [2, 32], strides = [1, 1]} : vector<2x128xf32> to vector<2x32xf32>
    %21 = arith.mulf %18, %3 : vector<2x32xf32>
    %22 = arith.mulf %17, %19 : vector<2x32xf32>
    %23 = arith.addf %21, %22 : vector<2x32xf32>
    %24 = math.tanh %23 : vector<2x32xf32>
    %25 = arith.mulf %20, %24 : vector<2x32xf32>
    %26 = arith.index_cast %c0_i32 : i32 to index
    %c0_8 = arith.constant 0 : index
    %c0_9 = arith.constant 0 : index
    %27 = vector.load %arg12[%26, %c0_8, %c0_9] : memref<8x2x32xf32, #tpu.memory_space<vmem>>, vector<1x2x32xf32>
    %28 = vector.shape_cast %27 : vector<1x2x32xf32> to vector<2x32xf32>
    %29 = vector.shape_cast %25 : vector<2x32xf32> to vector<1x2x32xf32>
    tpu.vector_store %arg12[%26, %c0_8, %c0_9], %29 {strides = array<i32>} : memref<8x2x32xf32, #tpu.memory_space<vmem>>, vector<1x2x32xf32>,
    %c1_i32 = arith.constant 1 : i32
    %30 = arith.index_cast %c1_i32 : i32 to index
    %c0_10 = arith.constant 0 : index
    %c0_11 = arith.constant 0 : index
    %31 = vector.load %arg1[%30, %c0_10, %c0_11] : memref<8x2x16xf32, #tpu.memory_space<vmem>>, vector<1x2x16xf32>
    %32 = vector.shape_cast %31 : vector<1x2x16xf32> to vector<2x16xf32>
    %33 = tpu.concatenate %32, %25 in 1 : vector<2x16xf32>, vector<2x32xf32> -> vector<2x48xf32>
    %cst_12 = arith.constant dense<0.000000e+00> : vector<2x128xf32>
    %34 = tpu.matmul %33, %0, %cst_12 {dimension_numbers = #tpu.dot_dimension_numbers<[1], [0], [0], [1], [0, 0, 1, 1], [], []>} : vector<2x48xf32>, vector<48x128xf32>, vector<2x128xf32> -> vector<2x128xf32>
    %35 = vector.broadcast %1 : vector<1x128xf32> to vector<2x128xf32>
    %36 = arith.addf %34, %35 : vector<2x128xf32>
    %37 = arith.negf %36 : vector<2x128xf32>
    %38 = math.exp %37 : vector<2x128xf32>
    %cst_13 = arith.constant 1.000000e+00 : f32
    %39 = vector.broadcast %cst_13 : f32 to vector<2x128xf32>
    %40 = arith.addf %39, %38 : vector<2x128xf32>
    %41 = arith.divf %39, %40 : vector<2x128xf32>
    %42 = math.tanh %36 : vector<2x128xf32>
    %43 = vector.extract_strided_slice %41 {offsets = [0, 0], sizes = [2, 32], strides = [1, 1]} : vector<2x128xf32> to vector<2x32xf32>
    %44 = vector.extract_strided_slice %41 {offsets = [0, 32], sizes = [2, 32], strides = [1, 1]} : vector<2x128xf32> to vector<2x32xf32>
    %45 = vector.extract_strided_slice %42 {offsets = [0, 64], sizes = [2, 32], strides = [1, 1]} : vector<2x128xf32> to vector<2x32xf32>
    %46 = vector.extract_strided_slice %41 {offsets = [0, 96], sizes = [2, 32], strides = [1, 1]} : vector<2x128xf32> to vector<2x32xf32>
    %47 = arith.mulf %44, %23 : vector<2x32xf32>
    %48 = arith.mulf %43, %45 : vector<2x32xf32>
    %49 = arith.addf %47, %48 : vector<2x32xf32>
    %50 = math.tanh %49 : vector<2x32xf32>
    %51 = arith.mulf %46, %50 : vector<2x32xf32>
    %52 = arith.index_cast %c1_i32 : i32 to index
    %c0_14 = arith.constant 0 : index
    %c0_15 = arith.constant 0 : index
    %53 = vector.load %arg12[%52, %c0_14, %c0_15] : memref<8x2x32xf32, #tpu.memory_space<vmem>>, vector<1x2x32xf32>
    %54 = vector.shape_cast %53 : vector<1x2x32xf32> to vector<2x32xf32>
    %55 = vector.shape_cast %51 : vector<2x32xf32> to vector<1x2x32xf32>
    tpu.vector_store %arg12[%52, %c0_14, %c0_15], %55 {strides = array<i32>} : memref<8x2x32xf32, #tpu.memory_space<vmem>>, vector<1x2x32xf32>,
    %c2_i32 = arith.constant 2 : i32
    %56 = arith.index_cast %c2_i32 : i32 to index
    %c0_16 = arith.constant 0 : index
    %c0_17 = arith.constant 0 : index
    %57 = vector.load %arg1[%56, %c0_16, %c0_17] : memref<8x2x16xf32, #tpu.memory_space<vmem>>, vector<1x2x16xf32>
    %58 = vector.shape_cast %57 : vector<1x2x16xf32> to vector<2x16xf32>
    %59 = tpu.concatenate %58, %51 in 1 : vector<2x16xf32>, vector<2x32xf32> -> vector<2x48xf32>
    %cst_18 = arith.constant dense<0.000000e+00> : vector<2x128xf32>
    %60 = tpu.matmul %59, %0, %cst_18 {dimension_numbers = #tpu.dot_dimension_numbers<[1], [0], [0], [1], [0, 0, 1, 1], [], []>} : vector<2x48xf32>, vector<48x128xf32>, vector<2x128xf32> -> vector<2x128xf32>
    %61 = vector.broadcast %1 : vector<1x128xf32> to vector<2x128xf32>
    %62 = arith.addf %60, %61 : vector<2x128xf32>
    %63 = arith.negf %62 : vector<2x128xf32>
    %64 = math.exp %63 : vector<2x128xf32>
    %cst_19 = arith.constant 1.000000e+00 : f32
    %65 = vector.broadcast %cst_19 : f32 to vector<2x128xf32>
    %66 = arith.addf %65, %64 : vector<2x128xf32>
    %67 = arith.divf %65, %66 : vector<2x128xf32>
    %68 = math.tanh %62 : vector<2x128xf32>
    %69 = vector.extract_strided_slice %67 {offsets = [0, 0], sizes = [2, 32], strides = [1, 1]} : vector<2x128xf32> to vector<2x32xf32>
    %70 = vector.extract_strided_slice %67 {offsets = [0, 32], sizes = [2, 32], strides = [1, 1]} : vector<2x128xf32> to vector<2x32xf32>
    %71 = vector.extract_strided_slice %68 {offsets = [0, 64], sizes = [2, 32], strides = [1, 1]} : vector<2x128xf32> to vector<2x32xf32>
    %72 = vector.extract_strided_slice %67 {offsets = [0, 96], sizes = [2, 32], strides = [1, 1]} : vector<2x128xf32> to vector<2x32xf32>
    %73 = arith.mulf %70, %49 : vector<2x32xf32>
    %74 = arith.mulf %69, %71 : vector<2x32xf32>
    %75 = arith.addf %73, %74 : vector<2x32xf32>
    %76 = math.tanh %75 : vector<2x32xf32>
    %77 = arith.mulf %72, %76 : vector<2x32xf32>
    %78 = arith.index_cast %c2_i32 : i32 to index
    %c0_20 = arith.constant 0 : index
    %c0_21 = arith.constant 0 : index
    %79 = vector.load %arg12[%78, %c0_20, %c0_21] : memref<8x2x32xf32, #tpu.memory_space<vmem>>, vector<1x2x32xf32>
    %80 = vector.shape_cast %79 : vector<1x2x32xf32> to vector<2x32xf32>
    %81 = vector.shape_cast %77 : vector<2x32xf32> to vector<1x2x32xf32>
    tpu.vector_store %arg12[%78, %c0_20, %c0_21], %81 {strides = array<i32>} : memref<8x2x32xf32, #tpu.memory_space<vmem>>, vector<1x2x32xf32>,
    %c3_i32 = arith.constant 3 : i32
    %82 = arith.index_cast %c3_i32 : i32 to index
    %c0_22 = arith.constant 0 : index
    %c0_23 = arith.constant 0 : index
    %83 = vector.load %arg1[%82, %c0_22, %c0_23] : memref<8x2x16xf32, #tpu.memory_space<vmem>>, vector<1x2x16xf32>
    %84 = vector.shape_cast %83 : vector<1x2x16xf32> to vector<2x16xf32>
    %85 = tpu.concatenate %84, %77 in 1 : vector<2x16xf32>, vector<2x32xf32> -> vector<2x48xf32>
    %cst_24 = arith.constant dense<0.000000e+00> : vector<2x128xf32>
    %86 = tpu.matmul %85, %0, %cst_24 {dimension_numbers = #tpu.dot_dimension_numbers<[1], [0], [0], [1], [0, 0, 1, 1], [], []>} : vector<2x48xf32>, vector<48x128xf32>, vector<2x128xf32> -> vector<2x128xf32>
    %87 = vector.broadcast %1 : vector<1x128xf32> to vector<2x128xf32>
    %88 = arith.addf %86, %87 : vector<2x128xf32>
    %89 = arith.negf %88 : vector<2x128xf32>
    %90 = math.exp %89 : vector<2x128xf32>
    %cst_25 = arith.constant 1.000000e+00 : f32
    %91 = vector.broadcast %cst_25 : f32 to vector<2x128xf32>
    %92 = arith.addf %91, %90 : vector<2x128xf32>
    %93 = arith.divf %91, %92 : vector<2x128xf32>
    %94 = math.tanh %88 : vector<2x128xf32>
    %95 = vector.extract_strided_slice %93 {offsets = [0, 0], sizes = [2, 32], strides = [1, 1]} : vector<2x128xf32> to vector<2x32xf32>
    %96 = vector.extract_strided_slice %93 {offsets = [0, 32], sizes = [2, 32], strides = [1, 1]} : vector<2x128xf32> to vector<2x32xf32>
    %97 = vector.extract_strided_slice %94 {offsets = [0, 64], sizes = [2, 32], strides = [1, 1]} : vector<2x128xf32> to vector<2x32xf32>
    %98 = vector.extract_strided_slice %93 {offsets = [0, 96], sizes = [2, 32], strides = [1, 1]} : vector<2x128xf32> to vector<2x32xf32>
    %99 = arith.mulf %96, %75 : vector<2x32xf32>
    %100 = arith.mulf %95, %97 : vector<2x32xf32>
    %101 = arith.addf %99, %100 : vector<2x32xf32>
    %102 = math.tanh %101 : vector<2x32xf32>
    %103 = arith.mulf %98, %102 : vector<2x32xf32>
    %104 = arith.index_cast %c3_i32 : i32 to index
    %c0_26 = arith.constant 0 : index
    %c0_27 = arith.constant 0 : index
    %105 = vector.load %arg12[%104, %c0_26, %c0_27] : memref<8x2x32xf32, #tpu.memory_space<vmem>>, vector<1x2x32xf32>
    %106 = vector.shape_cast %105 : vector<1x2x32xf32> to vector<2x32xf32>
    %107 = vector.shape_cast %103 : vector<2x32xf32> to vector<1x2x32xf32>
    tpu.vector_store %arg12[%104, %c0_26, %c0_27], %107 {strides = array<i32>} : memref<8x2x32xf32, #tpu.memory_space<vmem>>, vector<1x2x32xf32>,
    %c4_i32 = arith.constant 4 : i32
    %108 = arith.index_cast %c4_i32 : i32 to index
    %c0_28 = arith.constant 0 : index
    %c0_29 = arith.constant 0 : index
    %109 = vector.load %arg1[%108, %c0_28, %c0_29] : memref<8x2x16xf32, #tpu.memory_space<vmem>>, vector<1x2x16xf32>
    %110 = vector.shape_cast %109 : vector<1x2x16xf32> to vector<2x16xf32>
    %111 = tpu.concatenate %110, %103 in 1 : vector<2x16xf32>, vector<2x32xf32> -> vector<2x48xf32>
    %cst_30 = arith.constant dense<0.000000e+00> : vector<2x128xf32>
    %112 = tpu.matmul %111, %0, %cst_30 {dimension_numbers = #tpu.dot_dimension_numbers<[1], [0], [0], [1], [0, 0, 1, 1], [], []>} : vector<2x48xf32>, vector<48x128xf32>, vector<2x128xf32> -> vector<2x128xf32>
    %113 = vector.broadcast %1 : vector<1x128xf32> to vector<2x128xf32>
    %114 = arith.addf %112, %113 : vector<2x128xf32>
    %115 = arith.negf %114 : vector<2x128xf32>
    %116 = math.exp %115 : vector<2x128xf32>
    %cst_31 = arith.constant 1.000000e+00 : f32
    %117 = vector.broadcast %cst_31 : f32 to vector<2x128xf32>
    %118 = arith.addf %117, %116 : vector<2x128xf32>
    %119 = arith.divf %117, %118 : vector<2x128xf32>
    %120 = math.tanh %114 : vector<2x128xf32>
    %121 = vector.extract_strided_slice %119 {offsets = [0, 0], sizes = [2, 32], strides = [1, 1]} : vector<2x128xf32> to vector<2x32xf32>
    %122 = vector.extract_strided_slice %119 {offsets = [0, 32], sizes = [2, 32], strides = [1, 1]} : vector<2x128xf32> to vector<2x32xf32>
    %123 = vector.extract_strided_slice %120 {offsets = [0, 64], sizes = [2, 32], strides = [1, 1]} : vector<2x128xf32> to vector<2x32xf32>
    %124 = vector.extract_strided_slice %119 {offsets = [0, 96], sizes = [2, 32], strides = [1, 1]} : vector<2x128xf32> to vector<2x32xf32>
    %125 = arith.mulf %122, %101 : vector<2x32xf32>
    %126 = arith.mulf %121, %123 : vector<2x32xf32>
    %127 = arith.addf %125, %126 : vector<2x32xf32>
    %128 = math.tanh %127 : vector<2x32xf32>
    %129 = arith.mulf %124, %128 : vector<2x32xf32>
    %130 = arith.index_cast %c4_i32 : i32 to index
    %c0_32 = arith.constant 0 : index
    %c0_33 = arith.constant 0 : index
    %131 = vector.load %arg12[%130, %c0_32, %c0_33] : memref<8x2x32xf32, #tpu.memory_space<vmem>>, vector<1x2x32xf32>
    %132 = vector.shape_cast %131 : vector<1x2x32xf32> to vector<2x32xf32>
    %133 = vector.shape_cast %129 : vector<2x32xf32> to vector<1x2x32xf32>
    tpu.vector_store %arg12[%130, %c0_32, %c0_33], %133 {strides = array<i32>} : memref<8x2x32xf32, #tpu.memory_space<vmem>>, vector<1x2x32xf32>,
    %c5_i32 = arith.constant 5 : i32
    %134 = arith.index_cast %c5_i32 : i32 to index
    %c0_34 = arith.constant 0 : index
    %c0_35 = arith.constant 0 : index
    %135 = vector.load %arg1[%134, %c0_34, %c0_35] : memref<8x2x16xf32, #tpu.memory_space<vmem>>, vector<1x2x16xf32>
    %136 = vector.shape_cast %135 : vector<1x2x16xf32> to vector<2x16xf32>
    %137 = tpu.concatenate %136, %129 in 1 : vector<2x16xf32>, vector<2x32xf32> -> vector<2x48xf32>
    %cst_36 = arith.constant dense<0.000000e+00> : vector<2x128xf32>
    %138 = tpu.matmul %137, %0, %cst_36 {dimension_numbers = #tpu.dot_dimension_numbers<[1], [0], [0], [1], [0, 0, 1, 1], [], []>} : vector<2x48xf32>, vector<48x128xf32>, vector<2x128xf32> -> vector<2x128xf32>
    %139 = vector.broadcast %1 : vector<1x128xf32> to vector<2x128xf32>
    %140 = arith.addf %138, %139 : vector<2x128xf32>
    %141 = arith.negf %140 : vector<2x128xf32>
    %142 = math.exp %141 : vector<2x128xf32>
    %cst_37 = arith.constant 1.000000e+00 : f32
    %143 = vector.broadcast %cst_37 : f32 to vector<2x128xf32>
    %144 = arith.addf %143, %142 : vector<2x128xf32>
    %145 = arith.divf %143, %144 : vector<2x128xf32>
    %146 = math.tanh %140 : vector<2x128xf32>
    %147 = vector.extract_strided_slice %145 {offsets = [0, 0], sizes = [2, 32], strides = [1, 1]} : vector<2x128xf32> to vector<2x32xf32>
    %148 = vector.extract_strided_slice %145 {offsets = [0, 32], sizes = [2, 32], strides = [1, 1]} : vector<2x128xf32> to vector<2x32xf32>
    %149 = vector.extract_strided_slice %146 {offsets = [0, 64], sizes = [2, 32], strides = [1, 1]} : vector<2x128xf32> to vector<2x32xf32>
    %150 = vector.extract_strided_slice %145 {offsets = [0, 96], sizes = [2, 32], strides = [1, 1]} : vector<2x128xf32> to vector<2x32xf32>
    %151 = arith.mulf %148, %127 : vector<2x32xf32>
    %152 = arith.mulf %147, %149 : vector<2x32xf32>
    %153 = arith.addf %151, %152 : vector<2x32xf32>
    %154 = math.tanh %153 : vector<2x32xf32>
    %155 = arith.mulf %150, %154 : vector<2x32xf32>
    %156 = arith.index_cast %c5_i32 : i32 to index
    %c0_38 = arith.constant 0 : index
    %c0_39 = arith.constant 0 : index
    %157 = vector.load %arg12[%156, %c0_38, %c0_39] : memref<8x2x32xf32, #tpu.memory_space<vmem>>, vector<1x2x32xf32>
    %158 = vector.shape_cast %157 : vector<1x2x32xf32> to vector<2x32xf32>
    %159 = vector.shape_cast %155 : vector<2x32xf32> to vector<1x2x32xf32>
    tpu.vector_store %arg12[%156, %c0_38, %c0_39], %159 {strides = array<i32>} : memref<8x2x32xf32, #tpu.memory_space<vmem>>, vector<1x2x32xf32>,
    %c6_i32 = arith.constant 6 : i32
    %160 = arith.index_cast %c6_i32 : i32 to index
    %c0_40 = arith.constant 0 : index
    %c0_41 = arith.constant 0 : index
    %161 = vector.load %arg1[%160, %c0_40, %c0_41] : memref<8x2x16xf32, #tpu.memory_space<vmem>>, vector<1x2x16xf32>
    %162 = vector.shape_cast %161 : vector<1x2x16xf32> to vector<2x16xf32>
    %163 = tpu.concatenate %162, %155 in 1 : vector<2x16xf32>, vector<2x32xf32> -> vector<2x48xf32>
    %cst_42 = arith.constant dense<0.000000e+00> : vector<2x128xf32>
    %164 = tpu.matmul %163, %0, %cst_42 {dimension_numbers = #tpu.dot_dimension_numbers<[1], [0], [0], [1], [0, 0, 1, 1], [], []>} : vector<2x48xf32>, vector<48x128xf32>, vector<2x128xf32> -> vector<2x128xf32>
    %165 = vector.broadcast %1 : vector<1x128xf32> to vector<2x128xf32>
    %166 = arith.addf %164, %165 : vector<2x128xf32>
    %167 = arith.negf %166 : vector<2x128xf32>
    %168 = math.exp %167 : vector<2x128xf32>
    %cst_43 = arith.constant 1.000000e+00 : f32
    %169 = vector.broadcast %cst_43 : f32 to vector<2x128xf32>
    %170 = arith.addf %169, %168 : vector<2x128xf32>
    %171 = arith.divf %169, %170 : vector<2x128xf32>
    %172 = math.tanh %166 : vector<2x128xf32>
    %173 = vector.extract_strided_slice %171 {offsets = [0, 0], sizes = [2, 32], strides = [1, 1]} : vector<2x128xf32> to vector<2x32xf32>
    %174 = vector.extract_strided_slice %171 {offsets = [0, 32], sizes = [2, 32], strides = [1, 1]} : vector<2x128xf32> to vector<2x32xf32>
    %175 = vector.extract_strided_slice %172 {offsets = [0, 64], sizes = [2, 32], strides = [1, 1]} : vector<2x128xf32> to vector<2x32xf32>
    %176 = vector.extract_strided_slice %171 {offsets = [0, 96], sizes = [2, 32], strides = [1, 1]} : vector<2x128xf32> to vector<2x32xf32>
    %177 = arith.mulf %174, %153 : vector<2x32xf32>
    %178 = arith.mulf %173, %175 : vector<2x32xf32>
    %179 = arith.addf %177, %178 : vector<2x32xf32>
    %180 = math.tanh %179 : vector<2x32xf32>
    %181 = arith.mulf %176, %180 : vector<2x32xf32>
    %182 = arith.index_cast %c6_i32 : i32 to index
    %c0_44 = arith.constant 0 : index
    %c0_45 = arith.constant 0 : index
    %183 = vector.load %arg12[%182, %c0_44, %c0_45] : memref<8x2x32xf32, #tpu.memory_space<vmem>>, vector<1x2x32xf32>
    %184 = vector.shape_cast %183 : vector<1x2x32xf32> to vector<2x32xf32>
    %185 = vector.shape_cast %181 : vector<2x32xf32> to vector<1x2x32xf32>
    tpu.vector_store %arg12[%182, %c0_44, %c0_45], %185 {strides = array<i32>} : memref<8x2x32xf32, #tpu.memory_space<vmem>>, vector<1x2x32xf32>,
    %c7_i32 = arith.constant 7 : i32
    %186 = arith.index_cast %c7_i32 : i32 to index
    %c0_46 = arith.constant 0 : index
    %c0_47 = arith.constant 0 : index
    %187 = vector.load %arg1[%186, %c0_46, %c0_47] : memref<8x2x16xf32, #tpu.memory_space<vmem>>, vector<1x2x16xf32>
    %188 = vector.shape_cast %187 : vector<1x2x16xf32> to vector<2x16xf32>
    %189 = tpu.concatenate %188, %181 in 1 : vector<2x16xf32>, vector<2x32xf32> -> vector<2x48xf32>
    %cst_48 = arith.constant dense<0.000000e+00> : vector<2x128xf32>
    %190 = tpu.matmul %189, %0, %cst_48 {dimension_numbers = #tpu.dot_dimension_numbers<[1], [0], [0], [1], [0, 0, 1, 1], [], []>} : vector<2x48xf32>, vector<48x128xf32>, vector<2x128xf32> -> vector<2x128xf32>
    %191 = vector.broadcast %1 : vector<1x128xf32> to vector<2x128xf32>
    %192 = arith.addf %190, %191 : vector<2x128xf32>
    %193 = arith.negf %192 : vector<2x128xf32>
    %194 = math.exp %193 : vector<2x128xf32>
    %cst_49 = arith.constant 1.000000e+00 : f32
    %195 = vector.broadcast %cst_49 : f32 to vector<2x128xf32>
    %196 = arith.addf %195, %194 : vector<2x128xf32>
    %197 = arith.divf %195, %196 : vector<2x128xf32>
    %198 = math.tanh %192 : vector<2x128xf32>
    %199 = vector.extract_strided_slice %197 {offsets = [0, 0], sizes = [2, 32], strides = [1, 1]} : vector<2x128xf32> to vector<2x32xf32>
    %200 = vector.extract_strided_slice %197 {offsets = [0, 32], sizes = [2, 32], strides = [1, 1]} : vector<2x128xf32> to vector<2x32xf32>
    %201 = vector.extract_strided_slice %198 {offsets = [0, 64], sizes = [2, 32], strides = [1, 1]} : vector<2x128xf32> to vector<2x32xf32>
    %202 = vector.extract_strided_slice %197 {offsets = [0, 96], sizes = [2, 32], strides = [1, 1]} : vector<2x128xf32> to vector<2x32xf32>
    %203 = arith.mulf %200, %179 : vector<2x32xf32>
    %204 = arith.mulf %199, %201 : vector<2x32xf32>
    %205 = arith.addf %203, %204 : vector<2x32xf32>
    %206 = math.tanh %205 : vector<2x32xf32>
    %207 = arith.mulf %202, %206 : vector<2x32xf32>
    %208 = arith.index_cast %c7_i32 : i32 to index
    %c0_50 = arith.constant 0 : index
    %c0_51 = arith.constant 0 : index
    %209 = vector.load %arg12[%208, %c0_50, %c0_51] : memref<8x2x32xf32, #tpu.memory_space<vmem>>, vector<1x2x32xf32>
    %210 = vector.shape_cast %209 : vector<1x2x32xf32> to vector<2x32xf32>
    %211 = vector.shape_cast %207 : vector<2x32xf32> to vector<1x2x32xf32>
    tpu.vector_store %arg12[%208, %c0_50, %c0_51], %211 {strides = array<i32>} : memref<8x2x32xf32, #tpu.memory_space<vmem>>, vector<1x2x32xf32>,
    %c8_i32 = arith.constant 8 : i32
    %c0_52 = arith.constant 0 : index
    %c0_53 = arith.constant 0 : index
    %212 = vector.load %arg3[%c0_52, %c0_53] : memref<48x128xf32, #tpu.memory_space<vmem>>, vector<48x128xf32>
    %c0_54 = arith.constant 0 : index
    %c0_55 = arith.constant 0 : index
    %213 = vector.load %arg7[%c0_54, %c0_55] : memref<1x128xf32, #tpu.memory_space<vmem>>, vector<1x128xf32>
    %cst_56 = arith.constant 0.000000e+00 : f32
    %214 = vector.broadcast %cst_56 : f32 to vector<2x32xf32>
    %cst_57 = arith.constant 0.000000e+00 : f32
    %215 = vector.broadcast %cst_57 : f32 to vector<2x32xf32>
    %c0_i32_58 = arith.constant 0 : i32
    %c7_i32_59 = arith.constant 7 : i32
    %216 = arith.subi %c7_i32_59, %c0_i32_58 : i32
    %217 = arith.index_cast %216 : i32 to index
    %c0_60 = arith.constant 0 : index
    %c0_61 = arith.constant 0 : index
    %218 = vector.load %arg1[%217, %c0_60, %c0_61] : memref<8x2x16xf32, #tpu.memory_space<vmem>>, vector<1x2x16xf32>
    %219 = vector.shape_cast %218 : vector<1x2x16xf32> to vector<2x16xf32>
    %220 = tpu.concatenate %219, %214 in 1 : vector<2x16xf32>, vector<2x32xf32> -> vector<2x48xf32>
    %cst_62 = arith.constant dense<0.000000e+00> : vector<2x128xf32>
    %221 = tpu.matmul %220, %212, %cst_62 {dimension_numbers = #tpu.dot_dimension_numbers<[1], [0], [0], [1], [0, 0, 1, 1], [], []>} : vector<2x48xf32>, vector<48x128xf32>, vector<2x128xf32> -> vector<2x128xf32>
    %222 = vector.broadcast %213 : vector<1x128xf32> to vector<2x128xf32>
    %223 = arith.addf %221, %222 : vector<2x128xf32>
    %224 = arith.negf %223 : vector<2x128xf32>
    %225 = math.exp %224 : vector<2x128xf32>
    %cst_63 = arith.constant 1.000000e+00 : f32
    %226 = vector.broadcast %cst_63 : f32 to vector<2x128xf32>
    %227 = arith.addf %226, %225 : vector<2x128xf32>
    %228 = arith.divf %226, %227 : vector<2x128xf32>
    %229 = math.tanh %223 : vector<2x128xf32>
    %230 = vector.extract_strided_slice %228 {offsets = [0, 0], sizes = [2, 32], strides = [1, 1]} : vector<2x128xf32> to vector<2x32xf32>
    %231 = vector.extract_strided_slice %228 {offsets = [0, 32], sizes = [2, 32], strides = [1, 1]} : vector<2x128xf32> to vector<2x32xf32>
    %232 = vector.extract_strided_slice %229 {offsets = [0, 64], sizes = [2, 32], strides = [1, 1]} : vector<2x128xf32> to vector<2x32xf32>
    %233 = vector.extract_strided_slice %228 {offsets = [0, 96], sizes = [2, 32], strides = [1, 1]} : vector<2x128xf32> to vector<2x32xf32>
    %234 = arith.mulf %231, %215 : vector<2x32xf32>
    %235 = arith.mulf %230, %232 : vector<2x32xf32>
    %236 = arith.addf %234, %235 : vector<2x32xf32>
    %237 = math.tanh %236 : vector<2x32xf32>
    %238 = arith.mulf %233, %237 : vector<2x32xf32>
    %239 = arith.index_cast %216 : i32 to index
    %c0_64 = arith.constant 0 : index
    %c0_65 = arith.constant 0 : index
    %240 = vector.load %arg13[%239, %c0_64, %c0_65] : memref<8x2x32xf32, #tpu.memory_space<vmem>>, vector<1x2x32xf32>
    %241 = vector.shape_cast %240 : vector<1x2x32xf32> to vector<2x32xf32>
    %242 = vector.shape_cast %238 : vector<2x32xf32> to vector<1x2x32xf32>
    tpu.vector_store %arg13[%239, %c0_64, %c0_65], %242 {strides = array<i32>} : memref<8x2x32xf32, #tpu.memory_space<vmem>>, vector<1x2x32xf32>,
    %c1_i32_66 = arith.constant 1 : i32
    %c7_i32_67 = arith.constant 7 : i32
    %243 = arith.subi %c7_i32_67, %c1_i32_66 : i32
    %244 = arith.index_cast %243 : i32 to index
    %c0_68 = arith.constant 0 : index
    %c0_69 = arith.constant 0 : index
    %245 = vector.load %arg1[%244, %c0_68, %c0_69] : memref<8x2x16xf32, #tpu.memory_space<vmem>>, vector<1x2x16xf32>
    %246 = vector.shape_cast %245 : vector<1x2x16xf32> to vector<2x16xf32>
    %247 = tpu.concatenate %246, %238 in 1 : vector<2x16xf32>, vector<2x32xf32> -> vector<2x48xf32>
    %cst_70 = arith.constant dense<0.000000e+00> : vector<2x128xf32>
    %248 = tpu.matmul %247, %212, %cst_70 {dimension_numbers = #tpu.dot_dimension_numbers<[1], [0], [0], [1], [0, 0, 1, 1], [], []>} : vector<2x48xf32>, vector<48x128xf32>, vector<2x128xf32> -> vector<2x128xf32>
    %249 = vector.broadcast %213 : vector<1x128xf32> to vector<2x128xf32>
    %250 = arith.addf %248, %249 : vector<2x128xf32>
    %251 = arith.negf %250 : vector<2x128xf32>
    %252 = math.exp %251 : vector<2x128xf32>
    %cst_71 = arith.constant 1.000000e+00 : f32
    %253 = vector.broadcast %cst_71 : f32 to vector<2x128xf32>
    %254 = arith.addf %253, %252 : vector<2x128xf32>
    %255 = arith.divf %253, %254 : vector<2x128xf32>
    %256 = math.tanh %250 : vector<2x128xf32>
    %257 = vector.extract_strided_slice %255 {offsets = [0, 0], sizes = [2, 32], strides = [1, 1]} : vector<2x128xf32> to vector<2x32xf32>
    %258 = vector.extract_strided_slice %255 {offsets = [0, 32], sizes = [2, 32], strides = [1, 1]} : vector<2x128xf32> to vector<2x32xf32>
    %259 = vector.extract_strided_slice %256 {offsets = [0, 64], sizes = [2, 32], strides = [1, 1]} : vector<2x128xf32> to vector<2x32xf32>
    %260 = vector.extract_strided_slice %255 {offsets = [0, 96], sizes = [2, 32], strides = [1, 1]} : vector<2x128xf32> to vector<2x32xf32>
    %261 = arith.mulf %258, %236 : vector<2x32xf32>
    %262 = arith.mulf %257, %259 : vector<2x32xf32>
    %263 = arith.addf %261, %262 : vector<2x32xf32>
    %264 = math.tanh %263 : vector<2x32xf32>
    %265 = arith.mulf %260, %264 : vector<2x32xf32>
    %266 = arith.index_cast %243 : i32 to index
    %c0_72 = arith.constant 0 : index
    %c0_73 = arith.constant 0 : index
    %267 = vector.load %arg13[%266, %c0_72, %c0_73] : memref<8x2x32xf32, #tpu.memory_space<vmem>>, vector<1x2x32xf32>
    %268 = vector.shape_cast %267 : vector<1x2x32xf32> to vector<2x32xf32>
    %269 = vector.shape_cast %265 : vector<2x32xf32> to vector<1x2x32xf32>
    tpu.vector_store %arg13[%266, %c0_72, %c0_73], %269 {strides = array<i32>} : memref<8x2x32xf32, #tpu.memory_space<vmem>>, vector<1x2x32xf32>,
    %c2_i32_74 = arith.constant 2 : i32
    %c7_i32_75 = arith.constant 7 : i32
    %270 = arith.subi %c7_i32_75, %c2_i32_74 : i32
    %271 = arith.index_cast %270 : i32 to index
    %c0_76 = arith.constant 0 : index
    %c0_77 = arith.constant 0 : index
    %272 = vector.load %arg1[%271, %c0_76, %c0_77] : memref<8x2x16xf32, #tpu.memory_space<vmem>>, vector<1x2x16xf32>
    %273 = vector.shape_cast %272 : vector<1x2x16xf32> to vector<2x16xf32>
    %274 = tpu.concatenate %273, %265 in 1 : vector<2x16xf32>, vector<2x32xf32> -> vector<2x48xf32>
    %cst_78 = arith.constant dense<0.000000e+00> : vector<2x128xf32>
    %275 = tpu.matmul %274, %212, %cst_78 {dimension_numbers = #tpu.dot_dimension_numbers<[1], [0], [0], [1], [0, 0, 1, 1], [], []>} : vector<2x48xf32>, vector<48x128xf32>, vector<2x128xf32> -> vector<2x128xf32>
    %276 = vector.broadcast %213 : vector<1x128xf32> to vector<2x128xf32>
    %277 = arith.addf %275, %276 : vector<2x128xf32>
    %278 = arith.negf %277 : vector<2x128xf32>
    %279 = math.exp %278 : vector<2x128xf32>
    %cst_79 = arith.constant 1.000000e+00 : f32
    %280 = vector.broadcast %cst_79 : f32 to vector<2x128xf32>
    %281 = arith.addf %280, %279 : vector<2x128xf32>
    %282 = arith.divf %280, %281 : vector<2x128xf32>
    %283 = math.tanh %277 : vector<2x128xf32>
    %284 = vector.extract_strided_slice %282 {offsets = [0, 0], sizes = [2, 32], strides = [1, 1]} : vector<2x128xf32> to vector<2x32xf32>
    %285 = vector.extract_strided_slice %282 {offsets = [0, 32], sizes = [2, 32], strides = [1, 1]} : vector<2x128xf32> to vector<2x32xf32>
    %286 = vector.extract_strided_slice %283 {offsets = [0, 64], sizes = [2, 32], strides = [1, 1]} : vector<2x128xf32> to vector<2x32xf32>
    %287 = vector.extract_strided_slice %282 {offsets = [0, 96], sizes = [2, 32], strides = [1, 1]} : vector<2x128xf32> to vector<2x32xf32>
    %288 = arith.mulf %285, %263 : vector<2x32xf32>
    %289 = arith.mulf %284, %286 : vector<2x32xf32>
    %290 = arith.addf %288, %289 : vector<2x32xf32>
    %291 = math.tanh %290 : vector<2x32xf32>
    %292 = arith.mulf %287, %291 : vector<2x32xf32>
    %293 = arith.index_cast %270 : i32 to index
    %c0_80 = arith.constant 0 : index
    %c0_81 = arith.constant 0 : index
    %294 = vector.load %arg13[%293, %c0_80, %c0_81] : memref<8x2x32xf32, #tpu.memory_space<vmem>>, vector<1x2x32xf32>
    %295 = vector.shape_cast %294 : vector<1x2x32xf32> to vector<2x32xf32>
    %296 = vector.shape_cast %292 : vector<2x32xf32> to vector<1x2x32xf32>
    tpu.vector_store %arg13[%293, %c0_80, %c0_81], %296 {strides = array<i32>} : memref<8x2x32xf32, #tpu.memory_space<vmem>>, vector<1x2x32xf32>,
    %c3_i32_82 = arith.constant 3 : i32
    %c7_i32_83 = arith.constant 7 : i32
    %297 = arith.subi %c7_i32_83, %c3_i32_82 : i32
    %298 = arith.index_cast %297 : i32 to index
    %c0_84 = arith.constant 0 : index
    %c0_85 = arith.constant 0 : index
    %299 = vector.load %arg1[%298, %c0_84, %c0_85] : memref<8x2x16xf32, #tpu.memory_space<vmem>>, vector<1x2x16xf32>
    %300 = vector.shape_cast %299 : vector<1x2x16xf32> to vector<2x16xf32>
    %301 = tpu.concatenate %300, %292 in 1 : vector<2x16xf32>, vector<2x32xf32> -> vector<2x48xf32>
    %cst_86 = arith.constant dense<0.000000e+00> : vector<2x128xf32>
    %302 = tpu.matmul %301, %212, %cst_86 {dimension_numbers = #tpu.dot_dimension_numbers<[1], [0], [0], [1], [0, 0, 1, 1], [], []>} : vector<2x48xf32>, vector<48x128xf32>, vector<2x128xf32> -> vector<2x128xf32>
    %303 = vector.broadcast %213 : vector<1x128xf32> to vector<2x128xf32>
    %304 = arith.addf %302, %303 : vector<2x128xf32>
    %305 = arith.negf %304 : vector<2x128xf32>
    %306 = math.exp %305 : vector<2x128xf32>
    %cst_87 = arith.constant 1.000000e+00 : f32
    %307 = vector.broadcast %cst_87 : f32 to vector<2x128xf32>
    %308 = arith.addf %307, %306 : vector<2x128xf32>
    %309 = arith.divf %307, %308 : vector<2x128xf32>
    %310 = math.tanh %304 : vector<2x128xf32>
    %311 = vector.extract_strided_slice %309 {offsets = [0, 0], sizes = [2, 32], strides = [1, 1]} : vector<2x128xf32> to vector<2x32xf32>
    %312 = vector.extract_strided_slice %309 {offsets = [0, 32], sizes = [2, 32], strides = [1, 1]} : vector<2x128xf32> to vector<2x32xf32>
    %313 = vector.extract_strided_slice %310 {offsets = [0, 64], sizes = [2, 32], strides = [1, 1]} : vector<2x128xf32> to vector<2x32xf32>
    %314 = vector.extract_strided_slice %309 {offsets = [0, 96], sizes = [2, 32], strides = [1, 1]} : vector<2x128xf32> to vector<2x32xf32>
    %315 = arith.mulf %312, %290 : vector<2x32xf32>
    %316 = arith.mulf %311, %313 : vector<2x32xf32>
    %317 = arith.addf %315, %316 : vector<2x32xf32>
    %318 = math.tanh %317 : vector<2x32xf32>
    %319 = arith.mulf %314, %318 : vector<2x32xf32>
    %320 = arith.index_cast %297 : i32 to index
    %c0_88 = arith.constant 0 : index
    %c0_89 = arith.constant 0 : index
    %321 = vector.load %arg13[%320, %c0_88, %c0_89] : memref<8x2x32xf32, #tpu.memory_space<vmem>>, vector<1x2x32xf32>
    %322 = vector.shape_cast %321 : vector<1x2x32xf32> to vector<2x32xf32>
    %323 = vector.shape_cast %319 : vector<2x32xf32> to vector<1x2x32xf32>
    tpu.vector_store %arg13[%320, %c0_88, %c0_89], %323 {strides = array<i32>} : memref<8x2x32xf32, #tpu.memory_space<vmem>>, vector<1x2x32xf32>,
    %c4_i32_90 = arith.constant 4 : i32
    %c7_i32_91 = arith.constant 7 : i32
    %324 = arith.subi %c7_i32_91, %c4_i32_90 : i32
    %325 = arith.index_cast %324 : i32 to index
    %c0_92 = arith.constant 0 : index
    %c0_93 = arith.constant 0 : index
    %326 = vector.load %arg1[%325, %c0_92, %c0_93] : memref<8x2x16xf32, #tpu.memory_space<vmem>>, vector<1x2x16xf32>
    %327 = vector.shape_cast %326 : vector<1x2x16xf32> to vector<2x16xf32>
    %328 = tpu.concatenate %327, %319 in 1 : vector<2x16xf32>, vector<2x32xf32> -> vector<2x48xf32>
    %cst_94 = arith.constant dense<0.000000e+00> : vector<2x128xf32>
    %329 = tpu.matmul %328, %212, %cst_94 {dimension_numbers = #tpu.dot_dimension_numbers<[1], [0], [0], [1], [0, 0, 1, 1], [], []>} : vector<2x48xf32>, vector<48x128xf32>, vector<2x128xf32> -> vector<2x128xf32>
    %330 = vector.broadcast %213 : vector<1x128xf32> to vector<2x128xf32>
    %331 = arith.addf %329, %330 : vector<2x128xf32>
    %332 = arith.negf %331 : vector<2x128xf32>
    %333 = math.exp %332 : vector<2x128xf32>
    %cst_95 = arith.constant 1.000000e+00 : f32
    %334 = vector.broadcast %cst_95 : f32 to vector<2x128xf32>
    %335 = arith.addf %334, %333 : vector<2x128xf32>
    %336 = arith.divf %334, %335 : vector<2x128xf32>
    %337 = math.tanh %331 : vector<2x128xf32>
    %338 = vector.extract_strided_slice %336 {offsets = [0, 0], sizes = [2, 32], strides = [1, 1]} : vector<2x128xf32> to vector<2x32xf32>
    %339 = vector.extract_strided_slice %336 {offsets = [0, 32], sizes = [2, 32], strides = [1, 1]} : vector<2x128xf32> to vector<2x32xf32>
    %340 = vector.extract_strided_slice %337 {offsets = [0, 64], sizes = [2, 32], strides = [1, 1]} : vector<2x128xf32> to vector<2x32xf32>
    %341 = vector.extract_strided_slice %336 {offsets = [0, 96], sizes = [2, 32], strides = [1, 1]} : vector<2x128xf32> to vector<2x32xf32>
    %342 = arith.mulf %339, %317 : vector<2x32xf32>
    %343 = arith.mulf %338, %340 : vector<2x32xf32>
    %344 = arith.addf %342, %343 : vector<2x32xf32>
    %345 = math.tanh %344 : vector<2x32xf32>
    %346 = arith.mulf %341, %345 : vector<2x32xf32>
    %347 = arith.index_cast %324 : i32 to index
    %c0_96 = arith.constant 0 : index
    %c0_97 = arith.constant 0 : index
    %348 = vector.load %arg13[%347, %c0_96, %c0_97] : memref<8x2x32xf32, #tpu.memory_space<vmem>>, vector<1x2x32xf32>
    %349 = vector.shape_cast %348 : vector<1x2x32xf32> to vector<2x32xf32>
    %350 = vector.shape_cast %346 : vector<2x32xf32> to vector<1x2x32xf32>
    tpu.vector_store %arg13[%347, %c0_96, %c0_97], %350 {strides = array<i32>} : memref<8x2x32xf32, #tpu.memory_space<vmem>>, vector<1x2x32xf32>,
    %c5_i32_98 = arith.constant 5 : i32
    %c7_i32_99 = arith.constant 7 : i32
    %351 = arith.subi %c7_i32_99, %c5_i32_98 : i32
    %352 = arith.index_cast %351 : i32 to index
    %c0_100 = arith.constant 0 : index
    %c0_101 = arith.constant 0 : index
    %353 = vector.load %arg1[%352, %c0_100, %c0_101] : memref<8x2x16xf32, #tpu.memory_space<vmem>>, vector<1x2x16xf32>
    %354 = vector.shape_cast %353 : vector<1x2x16xf32> to vector<2x16xf32>
    %355 = tpu.concatenate %354, %346 in 1 : vector<2x16xf32>, vector<2x32xf32> -> vector<2x48xf32>
    %cst_102 = arith.constant dense<0.000000e+00> : vector<2x128xf32>
    %356 = tpu.matmul %355, %212, %cst_102 {dimension_numbers = #tpu.dot_dimension_numbers<[1], [0], [0], [1], [0, 0, 1, 1], [], []>} : vector<2x48xf32>, vector<48x128xf32>, vector<2x128xf32> -> vector<2x128xf32>
    %357 = vector.broadcast %213 : vector<1x128xf32> to vector<2x128xf32>
    %358 = arith.addf %356, %357 : vector<2x128xf32>
    %359 = arith.negf %358 : vector<2x128xf32>
    %360 = math.exp %359 : vector<2x128xf32>
    %cst_103 = arith.constant 1.000000e+00 : f32
    %361 = vector.broadcast %cst_103 : f32 to vector<2x128xf32>
    %362 = arith.addf %361, %360 : vector<2x128xf32>
    %363 = arith.divf %361, %362 : vector<2x128xf32>
    %364 = math.tanh %358 : vector<2x128xf32>
    %365 = vector.extract_strided_slice %363 {offsets = [0, 0], sizes = [2, 32], strides = [1, 1]} : vector<2x128xf32> to vector<2x32xf32>
    %366 = vector.extract_strided_slice %363 {offsets = [0, 32], sizes = [2, 32], strides = [1, 1]} : vector<2x128xf32> to vector<2x32xf32>
    %367 = vector.extract_strided_slice %364 {offsets = [0, 64], sizes = [2, 32], strides = [1, 1]} : vector<2x128xf32> to vector<2x32xf32>
    %368 = vector.extract_strided_slice %363 {offsets = [0, 96], sizes = [2, 32], strides = [1, 1]} : vector<2x128xf32> to vector<2x32xf32>
    %369 = arith.mulf %366, %344 : vector<2x32xf32>
    %370 = arith.mulf %365, %367 : vector<2x32xf32>
    %371 = arith.addf %369, %370 : vector<2x32xf32>
    %372 = math.tanh %371 : vector<2x32xf32>
    %373 = arith.mulf %368, %372 : vector<2x32xf32>
    %374 = arith.index_cast %351 : i32 to index
    %c0_104 = arith.constant 0 : index
    %c0_105 = arith.constant 0 : index
    %375 = vector.load %arg13[%374, %c0_104, %c0_105] : memref<8x2x32xf32, #tpu.memory_space<vmem>>, vector<1x2x32xf32>
    %376 = vector.shape_cast %375 : vector<1x2x32xf32> to vector<2x32xf32>
    %377 = vector.shape_cast %373 : vector<2x32xf32> to vector<1x2x32xf32>
    tpu.vector_store %arg13[%374, %c0_104, %c0_105], %377 {strides = array<i32>} : memref<8x2x32xf32, #tpu.memory_space<vmem>>, vector<1x2x32xf32>,
    %c6_i32_106 = arith.constant 6 : i32
    %c7_i32_107 = arith.constant 7 : i32
    %378 = arith.subi %c7_i32_107, %c6_i32_106 : i32
    %379 = arith.index_cast %378 : i32 to index
    %c0_108 = arith.constant 0 : index
    %c0_109 = arith.constant 0 : index
    %380 = vector.load %arg1[%379, %c0_108, %c0_109] : memref<8x2x16xf32, #tpu.memory_space<vmem>>, vector<1x2x16xf32>
    %381 = vector.shape_cast %380 : vector<1x2x16xf32> to vector<2x16xf32>
    %382 = tpu.concatenate %381, %373 in 1 : vector<2x16xf32>, vector<2x32xf32> -> vector<2x48xf32>
    %cst_110 = arith.constant dense<0.000000e+00> : vector<2x128xf32>
    %383 = tpu.matmul %382, %212, %cst_110 {dimension_numbers = #tpu.dot_dimension_numbers<[1], [0], [0], [1], [0, 0, 1, 1], [], []>} : vector<2x48xf32>, vector<48x128xf32>, vector<2x128xf32> -> vector<2x128xf32>
    %384 = vector.broadcast %213 : vector<1x128xf32> to vector<2x128xf32>
    %385 = arith.addf %383, %384 : vector<2x128xf32>
    %386 = arith.negf %385 : vector<2x128xf32>
    %387 = math.exp %386 : vector<2x128xf32>
    %cst_111 = arith.constant 1.000000e+00 : f32
    %388 = vector.broadcast %cst_111 : f32 to vector<2x128xf32>
    %389 = arith.addf %388, %387 : vector<2x128xf32>
    %390 = arith.divf %388, %389 : vector<2x128xf32>
    %391 = math.tanh %385 : vector<2x128xf32>
    %392 = vector.extract_strided_slice %390 {offsets = [0, 0], sizes = [2, 32], strides = [1, 1]} : vector<2x128xf32> to vector<2x32xf32>
    %393 = vector.extract_strided_slice %390 {offsets = [0, 32], sizes = [2, 32], strides = [1, 1]} : vector<2x128xf32> to vector<2x32xf32>
    %394 = vector.extract_strided_slice %391 {offsets = [0, 64], sizes = [2, 32], strides = [1, 1]} : vector<2x128xf32> to vector<2x32xf32>
    %395 = vector.extract_strided_slice %390 {offsets = [0, 96], sizes = [2, 32], strides = [1, 1]} : vector<2x128xf32> to vector<2x32xf32>
    %396 = arith.mulf %393, %371 : vector<2x32xf32>
    %397 = arith.mulf %392, %394 : vector<2x32xf32>
    %398 = arith.addf %396, %397 : vector<2x32xf32>
    %399 = math.tanh %398 : vector<2x32xf32>
    %400 = arith.mulf %395, %399 : vector<2x32xf32>
    %401 = arith.index_cast %378 : i32 to index
    %c0_112 = arith.constant 0 : index
    %c0_113 = arith.constant 0 : index
    %402 = vector.load %arg13[%401, %c0_112, %c0_113] : memref<8x2x32xf32, #tpu.memory_space<vmem>>, vector<1x2x32xf32>
    %403 = vector.shape_cast %402 : vector<1x2x32xf32> to vector<2x32xf32>
    %404 = vector.shape_cast %400 : vector<2x32xf32> to vector<1x2x32xf32>
    tpu.vector_store %arg13[%401, %c0_112, %c0_113], %404 {strides = array<i32>} : memref<8x2x32xf32, #tpu.memory_space<vmem>>, vector<1x2x32xf32>,
    %c7_i32_114 = arith.constant 7 : i32
    %c7_i32_115 = arith.constant 7 : i32
    %405 = arith.subi %c7_i32_115, %c7_i32_114 : i32
    %406 = arith.index_cast %405 : i32 to index
    %c0_116 = arith.constant 0 : index
    %c0_117 = arith.constant 0 : index
    %407 = vector.load %arg1[%406, %c0_116, %c0_117] : memref<8x2x16xf32, #tpu.memory_space<vmem>>, vector<1x2x16xf32>
    %408 = vector.shape_cast %407 : vector<1x2x16xf32> to vector<2x16xf32>
    %409 = tpu.concatenate %408, %400 in 1 : vector<2x16xf32>, vector<2x32xf32> -> vector<2x48xf32>
    %cst_118 = arith.constant dense<0.000000e+00> : vector<2x128xf32>
    %410 = tpu.matmul %409, %212, %cst_118 {dimension_numbers = #tpu.dot_dimension_numbers<[1], [0], [0], [1], [0, 0, 1, 1], [], []>} : vector<2x48xf32>, vector<48x128xf32>, vector<2x128xf32> -> vector<2x128xf32>
    %411 = vector.broadcast %213 : vector<1x128xf32> to vector<2x128xf32>
    %412 = arith.addf %410, %411 : vector<2x128xf32>
    %413 = arith.negf %412 : vector<2x128xf32>
    %414 = math.exp %413 : vector<2x128xf32>
    %cst_119 = arith.constant 1.000000e+00 : f32
    %415 = vector.broadcast %cst_119 : f32 to vector<2x128xf32>
    %416 = arith.addf %415, %414 : vector<2x128xf32>
    %417 = arith.divf %415, %416 : vector<2x128xf32>
    %418 = math.tanh %412 : vector<2x128xf32>
    %419 = vector.extract_strided_slice %417 {offsets = [0, 0], sizes = [2, 32], strides = [1, 1]} : vector<2x128xf32> to vector<2x32xf32>
    %420 = vector.extract_strided_slice %417 {offsets = [0, 32], sizes = [2, 32], strides = [1, 1]} : vector<2x128xf32> to vector<2x32xf32>
    %421 = vector.extract_strided_slice %418 {offsets = [0, 64], sizes = [2, 32], strides = [1, 1]} : vector<2x128xf32> to vector<2x32xf32>
    %422 = vector.extract_strided_slice %417 {offsets = [0, 96], sizes = [2, 32], strides = [1, 1]} : vector<2x128xf32> to vector<2x32xf32>
    %423 = arith.mulf %420, %398 : vector<2x32xf32>
    %424 = arith.mulf %419, %421 : vector<2x32xf32>
    %425 = arith.addf %423, %424 : vector<2x32xf32>
    %426 = math.tanh %425 : vector<2x32xf32>
    %427 = arith.mulf %422, %426 : vector<2x32xf32>
    %428 = arith.index_cast %405 : i32 to index
    %c0_120 = arith.constant 0 : index
    %c0_121 = arith.constant 0 : index
    %429 = vector.load %arg13[%428, %c0_120, %c0_121] : memref<8x2x32xf32, #tpu.memory_space<vmem>>, vector<1x2x32xf32>
    %430 = vector.shape_cast %429 : vector<1x2x32xf32> to vector<2x32xf32>
    %431 = vector.shape_cast %427 : vector<2x32xf32> to vector<1x2x32xf32>
    tpu.vector_store %arg13[%428, %c0_120, %c0_121], %431 {strides = array<i32>} : memref<8x2x32xf32, #tpu.memory_space<vmem>>, vector<1x2x32xf32>,
    %c8_i32_122 = arith.constant 8 : i32
    %c0_123 = arith.constant 0 : index
    %c0_124 = arith.constant 0 : index
    %c0_125 = arith.constant 0 : index
    %432 = vector.load %arg12[%c0_123, %c0_124, %c0_125] : memref<8x2x32xf32, #tpu.memory_space<vmem>>, vector<8x2x32xf32>
    %c0_126 = arith.constant 0 : index
    %c0_127 = arith.constant 0 : index
    %c0_128 = arith.constant 0 : index
    %433 = vector.load %arg13[%c0_126, %c0_127, %c0_128] : memref<8x2x32xf32, #tpu.memory_space<vmem>>, vector<8x2x32xf32>
    %434 = tpu.concatenate %432, %433 in 2 : vector<8x2x32xf32>, vector<8x2x32xf32> -> vector<8x2x64xf32>
    %c0_129 = arith.constant 0 : index
    %c0_130 = arith.constant 0 : index
    %c0_131 = arith.constant 0 : index
    %435 = vector.load %arg11[%c0_129, %c0_130, %c0_131] : memref<8x2x64xf32, #tpu.memory_space<vmem>>, vector<8x2x64xf32>
    tpu.vector_store %arg11[%c0_129, %c0_130, %c0_131], %434 {strides = array<i32>} : memref<8x2x64xf32, #tpu.memory_space<vmem>>, vector<8x2x64xf32>,
    %c0_132 = arith.constant 0 : index
    %c0_133 = arith.constant 0 : index
    %436 = vector.load %arg4[%c0_132, %c0_133] : memref<96x128xf32, #tpu.memory_space<vmem>>, vector<96x128xf32>
    %c0_134 = arith.constant 0 : index
    %c0_135 = arith.constant 0 : index
    %437 = vector.load %arg8[%c0_134, %c0_135] : memref<1x128xf32, #tpu.memory_space<vmem>>, vector<1x128xf32>
    %cst_136 = arith.constant 0.000000e+00 : f32
    %438 = vector.broadcast %cst_136 : f32 to vector<2x32xf32>
    %cst_137 = arith.constant 0.000000e+00 : f32
    %439 = vector.broadcast %cst_137 : f32 to vector<2x32xf32>
    %c0_i32_138 = arith.constant 0 : i32
    %440 = arith.index_cast %c0_i32_138 : i32 to index
    %c0_139 = arith.constant 0 : index
    %c0_140 = arith.constant 0 : index
    %441 = vector.load %arg11[%440, %c0_139, %c0_140] : memref<8x2x64xf32, #tpu.memory_space<vmem>>, vector<1x2x64xf32>
    %442 = vector.shape_cast %441 : vector<1x2x64xf32> to vector<2x64xf32>
    %443 = tpu.concatenate %442, %438 in 1 : vector<2x64xf32>, vector<2x32xf32> -> vector<2x96xf32>
    %cst_141 = arith.constant dense<0.000000e+00> : vector<2x128xf32>
    %444 = tpu.matmul %443, %436, %cst_141 {dimension_numbers = #tpu.dot_dimension_numbers<[1], [0], [0], [1], [0, 0, 1, 1], [], []>} : vector<2x96xf32>, vector<96x128xf32>, vector<2x128xf32> -> vector<2x128xf32>
    %445 = vector.broadcast %437 : vector<1x128xf32> to vector<2x128xf32>
    %446 = arith.addf %444, %445 : vector<2x128xf32>
    %447 = arith.negf %446 : vector<2x128xf32>
    %448 = math.exp %447 : vector<2x128xf32>
    %cst_142 = arith.constant 1.000000e+00 : f32
    %449 = vector.broadcast %cst_142 : f32 to vector<2x128xf32>
    %450 = arith.addf %449, %448 : vector<2x128xf32>
    %451 = arith.divf %449, %450 : vector<2x128xf32>
    %452 = math.tanh %446 : vector<2x128xf32>
    %453 = vector.extract_strided_slice %451 {offsets = [0, 0], sizes = [2, 32], strides = [1, 1]} : vector<2x128xf32> to vector<2x32xf32>
    %454 = vector.extract_strided_slice %451 {offsets = [0, 32], sizes = [2, 32], strides = [1, 1]} : vector<2x128xf32> to vector<2x32xf32>
    %455 = vector.extract_strided_slice %452 {offsets = [0, 64], sizes = [2, 32], strides = [1, 1]} : vector<2x128xf32> to vector<2x32xf32>
    %456 = vector.extract_strided_slice %451 {offsets = [0, 96], sizes = [2, 32], strides = [1, 1]} : vector<2x128xf32> to vector<2x32xf32>
    %457 = arith.mulf %454, %439 : vector<2x32xf32>
    %458 = arith.mulf %453, %455 : vector<2x32xf32>
    %459 = arith.addf %457, %458 : vector<2x32xf32>
    %460 = math.tanh %459 : vector<2x32xf32>
    %461 = arith.mulf %456, %460 : vector<2x32xf32>
    %462 = arith.index_cast %c0_i32_138 : i32 to index
    %c0_143 = arith.constant 0 : index
    %c0_144 = arith.constant 0 : index
    %463 = vector.load %arg12[%462, %c0_143, %c0_144] : memref<8x2x32xf32, #tpu.memory_space<vmem>>, vector<1x2x32xf32>
    %464 = vector.shape_cast %463 : vector<1x2x32xf32> to vector<2x32xf32>
    %465 = vector.shape_cast %461 : vector<2x32xf32> to vector<1x2x32xf32>
    tpu.vector_store %arg12[%462, %c0_143, %c0_144], %465 {strides = array<i32>} : memref<8x2x32xf32, #tpu.memory_space<vmem>>, vector<1x2x32xf32>,
    %c1_i32_145 = arith.constant 1 : i32
    %466 = arith.index_cast %c1_i32_145 : i32 to index
    %c0_146 = arith.constant 0 : index
    %c0_147 = arith.constant 0 : index
    %467 = vector.load %arg11[%466, %c0_146, %c0_147] : memref<8x2x64xf32, #tpu.memory_space<vmem>>, vector<1x2x64xf32>
    %468 = vector.shape_cast %467 : vector<1x2x64xf32> to vector<2x64xf32>
    %469 = tpu.concatenate %468, %461 in 1 : vector<2x64xf32>, vector<2x32xf32> -> vector<2x96xf32>
    %cst_148 = arith.constant dense<0.000000e+00> : vector<2x128xf32>
    %470 = tpu.matmul %469, %436, %cst_148 {dimension_numbers = #tpu.dot_dimension_numbers<[1], [0], [0], [1], [0, 0, 1, 1], [], []>} : vector<2x96xf32>, vector<96x128xf32>, vector<2x128xf32> -> vector<2x128xf32>
    %471 = vector.broadcast %437 : vector<1x128xf32> to vector<2x128xf32>
    %472 = arith.addf %470, %471 : vector<2x128xf32>
    %473 = arith.negf %472 : vector<2x128xf32>
    %474 = math.exp %473 : vector<2x128xf32>
    %cst_149 = arith.constant 1.000000e+00 : f32
    %475 = vector.broadcast %cst_149 : f32 to vector<2x128xf32>
    %476 = arith.addf %475, %474 : vector<2x128xf32>
    %477 = arith.divf %475, %476 : vector<2x128xf32>
    %478 = math.tanh %472 : vector<2x128xf32>
    %479 = vector.extract_strided_slice %477 {offsets = [0, 0], sizes = [2, 32], strides = [1, 1]} : vector<2x128xf32> to vector<2x32xf32>
    %480 = vector.extract_strided_slice %477 {offsets = [0, 32], sizes = [2, 32], strides = [1, 1]} : vector<2x128xf32> to vector<2x32xf32>
    %481 = vector.extract_strided_slice %478 {offsets = [0, 64], sizes = [2, 32], strides = [1, 1]} : vector<2x128xf32> to vector<2x32xf32>
    %482 = vector.extract_strided_slice %477 {offsets = [0, 96], sizes = [2, 32], strides = [1, 1]} : vector<2x128xf32> to vector<2x32xf32>
    %483 = arith.mulf %480, %459 : vector<2x32xf32>
    %484 = arith.mulf %479, %481 : vector<2x32xf32>
    %485 = arith.addf %483, %484 : vector<2x32xf32>
    %486 = math.tanh %485 : vector<2x32xf32>
    %487 = arith.mulf %482, %486 : vector<2x32xf32>
    %488 = arith.index_cast %c1_i32_145 : i32 to index
    %c0_150 = arith.constant 0 : index
    %c0_151 = arith.constant 0 : index
    %489 = vector.load %arg12[%488, %c0_150, %c0_151] : memref<8x2x32xf32, #tpu.memory_space<vmem>>, vector<1x2x32xf32>
    %490 = vector.shape_cast %489 : vector<1x2x32xf32> to vector<2x32xf32>
    %491 = vector.shape_cast %487 : vector<2x32xf32> to vector<1x2x32xf32>
    tpu.vector_store %arg12[%488, %c0_150, %c0_151], %491 {strides = array<i32>} : memref<8x2x32xf32, #tpu.memory_space<vmem>>, vector<1x2x32xf32>,
    %c2_i32_152 = arith.constant 2 : i32
    %492 = arith.index_cast %c2_i32_152 : i32 to index
    %c0_153 = arith.constant 0 : index
    %c0_154 = arith.constant 0 : index
    %493 = vector.load %arg11[%492, %c0_153, %c0_154] : memref<8x2x64xf32, #tpu.memory_space<vmem>>, vector<1x2x64xf32>
    %494 = vector.shape_cast %493 : vector<1x2x64xf32> to vector<2x64xf32>
    %495 = tpu.concatenate %494, %487 in 1 : vector<2x64xf32>, vector<2x32xf32> -> vector<2x96xf32>
    %cst_155 = arith.constant dense<0.000000e+00> : vector<2x128xf32>
    %496 = tpu.matmul %495, %436, %cst_155 {dimension_numbers = #tpu.dot_dimension_numbers<[1], [0], [0], [1], [0, 0, 1, 1], [], []>} : vector<2x96xf32>, vector<96x128xf32>, vector<2x128xf32> -> vector<2x128xf32>
    %497 = vector.broadcast %437 : vector<1x128xf32> to vector<2x128xf32>
    %498 = arith.addf %496, %497 : vector<2x128xf32>
    %499 = arith.negf %498 : vector<2x128xf32>
    %500 = math.exp %499 : vector<2x128xf32>
    %cst_156 = arith.constant 1.000000e+00 : f32
    %501 = vector.broadcast %cst_156 : f32 to vector<2x128xf32>
    %502 = arith.addf %501, %500 : vector<2x128xf32>
    %503 = arith.divf %501, %502 : vector<2x128xf32>
    %504 = math.tanh %498 : vector<2x128xf32>
    %505 = vector.extract_strided_slice %503 {offsets = [0, 0], sizes = [2, 32], strides = [1, 1]} : vector<2x128xf32> to vector<2x32xf32>
    %506 = vector.extract_strided_slice %503 {offsets = [0, 32], sizes = [2, 32], strides = [1, 1]} : vector<2x128xf32> to vector<2x32xf32>
    %507 = vector.extract_strided_slice %504 {offsets = [0, 64], sizes = [2, 32], strides = [1, 1]} : vector<2x128xf32> to vector<2x32xf32>
    %508 = vector.extract_strided_slice %503 {offsets = [0, 96], sizes = [2, 32], strides = [1, 1]} : vector<2x128xf32> to vector<2x32xf32>
    %509 = arith.mulf %506, %485 : vector<2x32xf32>
    %510 = arith.mulf %505, %507 : vector<2x32xf32>
    %511 = arith.addf %509, %510 : vector<2x32xf32>
    %512 = math.tanh %511 : vector<2x32xf32>
    %513 = arith.mulf %508, %512 : vector<2x32xf32>
    %514 = arith.index_cast %c2_i32_152 : i32 to index
    %c0_157 = arith.constant 0 : index
    %c0_158 = arith.constant 0 : index
    %515 = vector.load %arg12[%514, %c0_157, %c0_158] : memref<8x2x32xf32, #tpu.memory_space<vmem>>, vector<1x2x32xf32>
    %516 = vector.shape_cast %515 : vector<1x2x32xf32> to vector<2x32xf32>
    %517 = vector.shape_cast %513 : vector<2x32xf32> to vector<1x2x32xf32>
    tpu.vector_store %arg12[%514, %c0_157, %c0_158], %517 {strides = array<i32>} : memref<8x2x32xf32, #tpu.memory_space<vmem>>, vector<1x2x32xf32>,
    %c3_i32_159 = arith.constant 3 : i32
    %518 = arith.index_cast %c3_i32_159 : i32 to index
    %c0_160 = arith.constant 0 : index
    %c0_161 = arith.constant 0 : index
    %519 = vector.load %arg11[%518, %c0_160, %c0_161] : memref<8x2x64xf32, #tpu.memory_space<vmem>>, vector<1x2x64xf32>
    %520 = vector.shape_cast %519 : vector<1x2x64xf32> to vector<2x64xf32>
    %521 = tpu.concatenate %520, %513 in 1 : vector<2x64xf32>, vector<2x32xf32> -> vector<2x96xf32>
    %cst_162 = arith.constant dense<0.000000e+00> : vector<2x128xf32>
    %522 = tpu.matmul %521, %436, %cst_162 {dimension_numbers = #tpu.dot_dimension_numbers<[1], [0], [0], [1], [0, 0, 1, 1], [], []>} : vector<2x96xf32>, vector<96x128xf32>, vector<2x128xf32> -> vector<2x128xf32>
    %523 = vector.broadcast %437 : vector<1x128xf32> to vector<2x128xf32>
    %524 = arith.addf %522, %523 : vector<2x128xf32>
    %525 = arith.negf %524 : vector<2x128xf32>
    %526 = math.exp %525 : vector<2x128xf32>
    %cst_163 = arith.constant 1.000000e+00 : f32
    %527 = vector.broadcast %cst_163 : f32 to vector<2x128xf32>
    %528 = arith.addf %527, %526 : vector<2x128xf32>
    %529 = arith.divf %527, %528 : vector<2x128xf32>
    %530 = math.tanh %524 : vector<2x128xf32>
    %531 = vector.extract_strided_slice %529 {offsets = [0, 0], sizes = [2, 32], strides = [1, 1]} : vector<2x128xf32> to vector<2x32xf32>
    %532 = vector.extract_strided_slice %529 {offsets = [0, 32], sizes = [2, 32], strides = [1, 1]} : vector<2x128xf32> to vector<2x32xf32>
    %533 = vector.extract_strided_slice %530 {offsets = [0, 64], sizes = [2, 32], strides = [1, 1]} : vector<2x128xf32> to vector<2x32xf32>
    %534 = vector.extract_strided_slice %529 {offsets = [0, 96], sizes = [2, 32], strides = [1, 1]} : vector<2x128xf32> to vector<2x32xf32>
    %535 = arith.mulf %532, %511 : vector<2x32xf32>
    %536 = arith.mulf %531, %533 : vector<2x32xf32>
    %537 = arith.addf %535, %536 : vector<2x32xf32>
    %538 = math.tanh %537 : vector<2x32xf32>
    %539 = arith.mulf %534, %538 : vector<2x32xf32>
    %540 = arith.index_cast %c3_i32_159 : i32 to index
    %c0_164 = arith.constant 0 : index
    %c0_165 = arith.constant 0 : index
    %541 = vector.load %arg12[%540, %c0_164, %c0_165] : memref<8x2x32xf32, #tpu.memory_space<vmem>>, vector<1x2x32xf32>
    %542 = vector.shape_cast %541 : vector<1x2x32xf32> to vector<2x32xf32>
    %543 = vector.shape_cast %539 : vector<2x32xf32> to vector<1x2x32xf32>
    tpu.vector_store %arg12[%540, %c0_164, %c0_165], %543 {strides = array<i32>} : memref<8x2x32xf32, #tpu.memory_space<vmem>>, vector<1x2x32xf32>,
    %c4_i32_166 = arith.constant 4 : i32
    %544 = arith.index_cast %c4_i32_166 : i32 to index
    %c0_167 = arith.constant 0 : index
    %c0_168 = arith.constant 0 : index
    %545 = vector.load %arg11[%544, %c0_167, %c0_168] : memref<8x2x64xf32, #tpu.memory_space<vmem>>, vector<1x2x64xf32>
    %546 = vector.shape_cast %545 : vector<1x2x64xf32> to vector<2x64xf32>
    %547 = tpu.concatenate %546, %539 in 1 : vector<2x64xf32>, vector<2x32xf32> -> vector<2x96xf32>
    %cst_169 = arith.constant dense<0.000000e+00> : vector<2x128xf32>
    %548 = tpu.matmul %547, %436, %cst_169 {dimension_numbers = #tpu.dot_dimension_numbers<[1], [0], [0], [1], [0, 0, 1, 1], [], []>} : vector<2x96xf32>, vector<96x128xf32>, vector<2x128xf32> -> vector<2x128xf32>
    %549 = vector.broadcast %437 : vector<1x128xf32> to vector<2x128xf32>
    %550 = arith.addf %548, %549 : vector<2x128xf32>
    %551 = arith.negf %550 : vector<2x128xf32>
    %552 = math.exp %551 : vector<2x128xf32>
    %cst_170 = arith.constant 1.000000e+00 : f32
    %553 = vector.broadcast %cst_170 : f32 to vector<2x128xf32>
    %554 = arith.addf %553, %552 : vector<2x128xf32>
    %555 = arith.divf %553, %554 : vector<2x128xf32>
    %556 = math.tanh %550 : vector<2x128xf32>
    %557 = vector.extract_strided_slice %555 {offsets = [0, 0], sizes = [2, 32], strides = [1, 1]} : vector<2x128xf32> to vector<2x32xf32>
    %558 = vector.extract_strided_slice %555 {offsets = [0, 32], sizes = [2, 32], strides = [1, 1]} : vector<2x128xf32> to vector<2x32xf32>
    %559 = vector.extract_strided_slice %556 {offsets = [0, 64], sizes = [2, 32], strides = [1, 1]} : vector<2x128xf32> to vector<2x32xf32>
    %560 = vector.extract_strided_slice %555 {offsets = [0, 96], sizes = [2, 32], strides = [1, 1]} : vector<2x128xf32> to vector<2x32xf32>
    %561 = arith.mulf %558, %537 : vector<2x32xf32>
    %562 = arith.mulf %557, %559 : vector<2x32xf32>
    %563 = arith.addf %561, %562 : vector<2x32xf32>
    %564 = math.tanh %563 : vector<2x32xf32>
    %565 = arith.mulf %560, %564 : vector<2x32xf32>
    %566 = arith.index_cast %c4_i32_166 : i32 to index
    %c0_171 = arith.constant 0 : index
    %c0_172 = arith.constant 0 : index
    %567 = vector.load %arg12[%566, %c0_171, %c0_172] : memref<8x2x32xf32, #tpu.memory_space<vmem>>, vector<1x2x32xf32>
    %568 = vector.shape_cast %567 : vector<1x2x32xf32> to vector<2x32xf32>
    %569 = vector.shape_cast %565 : vector<2x32xf32> to vector<1x2x32xf32>
    tpu.vector_store %arg12[%566, %c0_171, %c0_172], %569 {strides = array<i32>} : memref<8x2x32xf32, #tpu.memory_space<vmem>>, vector<1x2x32xf32>,
    %c5_i32_173 = arith.constant 5 : i32
    %570 = arith.index_cast %c5_i32_173 : i32 to index
    %c0_174 = arith.constant 0 : index
    %c0_175 = arith.constant 0 : index
    %571 = vector.load %arg11[%570, %c0_174, %c0_175] : memref<8x2x64xf32, #tpu.memory_space<vmem>>, vector<1x2x64xf32>
    %572 = vector.shape_cast %571 : vector<1x2x64xf32> to vector<2x64xf32>
    %573 = tpu.concatenate %572, %565 in 1 : vector<2x64xf32>, vector<2x32xf32> -> vector<2x96xf32>
    %cst_176 = arith.constant dense<0.000000e+00> : vector<2x128xf32>
    %574 = tpu.matmul %573, %436, %cst_176 {dimension_numbers = #tpu.dot_dimension_numbers<[1], [0], [0], [1], [0, 0, 1, 1], [], []>} : vector<2x96xf32>, vector<96x128xf32>, vector<2x128xf32> -> vector<2x128xf32>
    %575 = vector.broadcast %437 : vector<1x128xf32> to vector<2x128xf32>
    %576 = arith.addf %574, %575 : vector<2x128xf32>
    %577 = arith.negf %576 : vector<2x128xf32>
    %578 = math.exp %577 : vector<2x128xf32>
    %cst_177 = arith.constant 1.000000e+00 : f32
    %579 = vector.broadcast %cst_177 : f32 to vector<2x128xf32>
    %580 = arith.addf %579, %578 : vector<2x128xf32>
    %581 = arith.divf %579, %580 : vector<2x128xf32>
    %582 = math.tanh %576 : vector<2x128xf32>
    %583 = vector.extract_strided_slice %581 {offsets = [0, 0], sizes = [2, 32], strides = [1, 1]} : vector<2x128xf32> to vector<2x32xf32>
    %584 = vector.extract_strided_slice %581 {offsets = [0, 32], sizes = [2, 32], strides = [1, 1]} : vector<2x128xf32> to vector<2x32xf32>
    %585 = vector.extract_strided_slice %582 {offsets = [0, 64], sizes = [2, 32], strides = [1, 1]} : vector<2x128xf32> to vector<2x32xf32>
    %586 = vector.extract_strided_slice %581 {offsets = [0, 96], sizes = [2, 32], strides = [1, 1]} : vector<2x128xf32> to vector<2x32xf32>
    %587 = arith.mulf %584, %563 : vector<2x32xf32>
    %588 = arith.mulf %583, %585 : vector<2x32xf32>
    %589 = arith.addf %587, %588 : vector<2x32xf32>
    %590 = math.tanh %589 : vector<2x32xf32>
    %591 = arith.mulf %586, %590 : vector<2x32xf32>
    %592 = arith.index_cast %c5_i32_173 : i32 to index
    %c0_178 = arith.constant 0 : index
    %c0_179 = arith.constant 0 : index
    %593 = vector.load %arg12[%592, %c0_178, %c0_179] : memref<8x2x32xf32, #tpu.memory_space<vmem>>, vector<1x2x32xf32>
    %594 = vector.shape_cast %593 : vector<1x2x32xf32> to vector<2x32xf32>
    %595 = vector.shape_cast %591 : vector<2x32xf32> to vector<1x2x32xf32>
    tpu.vector_store %arg12[%592, %c0_178, %c0_179], %595 {strides = array<i32>} : memref<8x2x32xf32, #tpu.memory_space<vmem>>, vector<1x2x32xf32>,
    %c6_i32_180 = arith.constant 6 : i32
    %596 = arith.index_cast %c6_i32_180 : i32 to index
    %c0_181 = arith.constant 0 : index
    %c0_182 = arith.constant 0 : index
    %597 = vector.load %arg11[%596, %c0_181, %c0_182] : memref<8x2x64xf32, #tpu.memory_space<vmem>>, vector<1x2x64xf32>
    %598 = vector.shape_cast %597 : vector<1x2x64xf32> to vector<2x64xf32>
    %599 = tpu.concatenate %598, %591 in 1 : vector<2x64xf32>, vector<2x32xf32> -> vector<2x96xf32>
    %cst_183 = arith.constant dense<0.000000e+00> : vector<2x128xf32>
    %600 = tpu.matmul %599, %436, %cst_183 {dimension_numbers = #tpu.dot_dimension_numbers<[1], [0], [0], [1], [0, 0, 1, 1], [], []>} : vector<2x96xf32>, vector<96x128xf32>, vector<2x128xf32> -> vector<2x128xf32>
    %601 = vector.broadcast %437 : vector<1x128xf32> to vector<2x128xf32>
    %602 = arith.addf %600, %601 : vector<2x128xf32>
    %603 = arith.negf %602 : vector<2x128xf32>
    %604 = math.exp %603 : vector<2x128xf32>
    %cst_184 = arith.constant 1.000000e+00 : f32
    %605 = vector.broadcast %cst_184 : f32 to vector<2x128xf32>
    %606 = arith.addf %605, %604 : vector<2x128xf32>
    %607 = arith.divf %605, %606 : vector<2x128xf32>
    %608 = math.tanh %602 : vector<2x128xf32>
    %609 = vector.extract_strided_slice %607 {offsets = [0, 0], sizes = [2, 32], strides = [1, 1]} : vector<2x128xf32> to vector<2x32xf32>
    %610 = vector.extract_strided_slice %607 {offsets = [0, 32], sizes = [2, 32], strides = [1, 1]} : vector<2x128xf32> to vector<2x32xf32>
    %611 = vector.extract_strided_slice %608 {offsets = [0, 64], sizes = [2, 32], strides = [1, 1]} : vector<2x128xf32> to vector<2x32xf32>
    %612 = vector.extract_strided_slice %607 {offsets = [0, 96], sizes = [2, 32], strides = [1, 1]} : vector<2x128xf32> to vector<2x32xf32>
    %613 = arith.mulf %610, %589 : vector<2x32xf32>
    %614 = arith.mulf %609, %611 : vector<2x32xf32>
    %615 = arith.addf %613, %614 : vector<2x32xf32>
    %616 = math.tanh %615 : vector<2x32xf32>
    %617 = arith.mulf %612, %616 : vector<2x32xf32>
    %618 = arith.index_cast %c6_i32_180 : i32 to index
    %c0_185 = arith.constant 0 : index
    %c0_186 = arith.constant 0 : index
    %619 = vector.load %arg12[%618, %c0_185, %c0_186] : memref<8x2x32xf32, #tpu.memory_space<vmem>>, vector<1x2x32xf32>
    %620 = vector.shape_cast %619 : vector<1x2x32xf32> to vector<2x32xf32>
    %621 = vector.shape_cast %617 : vector<2x32xf32> to vector<1x2x32xf32>
    tpu.vector_store %arg12[%618, %c0_185, %c0_186], %621 {strides = array<i32>} : memref<8x2x32xf32, #tpu.memory_space<vmem>>, vector<1x2x32xf32>,
    %c7_i32_187 = arith.constant 7 : i32
    %622 = arith.index_cast %c7_i32_187 : i32 to index
    %c0_188 = arith.constant 0 : index
    %c0_189 = arith.constant 0 : index
    %623 = vector.load %arg11[%622, %c0_188, %c0_189] : memref<8x2x64xf32, #tpu.memory_space<vmem>>, vector<1x2x64xf32>
    %624 = vector.shape_cast %623 : vector<1x2x64xf32> to vector<2x64xf32>
    %625 = tpu.concatenate %624, %617 in 1 : vector<2x64xf32>, vector<2x32xf32> -> vector<2x96xf32>
    %cst_190 = arith.constant dense<0.000000e+00> : vector<2x128xf32>
    %626 = tpu.matmul %625, %436, %cst_190 {dimension_numbers = #tpu.dot_dimension_numbers<[1], [0], [0], [1], [0, 0, 1, 1], [], []>} : vector<2x96xf32>, vector<96x128xf32>, vector<2x128xf32> -> vector<2x128xf32>
    %627 = vector.broadcast %437 : vector<1x128xf32> to vector<2x128xf32>
    %628 = arith.addf %626, %627 : vector<2x128xf32>
    %629 = arith.negf %628 : vector<2x128xf32>
    %630 = math.exp %629 : vector<2x128xf32>
    %cst_191 = arith.constant 1.000000e+00 : f32
    %631 = vector.broadcast %cst_191 : f32 to vector<2x128xf32>
    %632 = arith.addf %631, %630 : vector<2x128xf32>
    %633 = arith.divf %631, %632 : vector<2x128xf32>
    %634 = math.tanh %628 : vector<2x128xf32>
    %635 = vector.extract_strided_slice %633 {offsets = [0, 0], sizes = [2, 32], strides = [1, 1]} : vector<2x128xf32> to vector<2x32xf32>
    %636 = vector.extract_strided_slice %633 {offsets = [0, 32], sizes = [2, 32], strides = [1, 1]} : vector<2x128xf32> to vector<2x32xf32>
    %637 = vector.extract_strided_slice %634 {offsets = [0, 64], sizes = [2, 32], strides = [1, 1]} : vector<2x128xf32> to vector<2x32xf32>
    %638 = vector.extract_strided_slice %633 {offsets = [0, 96], sizes = [2, 32], strides = [1, 1]} : vector<2x128xf32> to vector<2x32xf32>
    %639 = arith.mulf %636, %615 : vector<2x32xf32>
    %640 = arith.mulf %635, %637 : vector<2x32xf32>
    %641 = arith.addf %639, %640 : vector<2x32xf32>
    %642 = math.tanh %641 : vector<2x32xf32>
    %643 = arith.mulf %638, %642 : vector<2x32xf32>
    %644 = arith.index_cast %c7_i32_187 : i32 to index
    %c0_192 = arith.constant 0 : index
    %c0_193 = arith.constant 0 : index
    %645 = vector.load %arg12[%644, %c0_192, %c0_193] : memref<8x2x32xf32, #tpu.memory_space<vmem>>, vector<1x2x32xf32>
    %646 = vector.shape_cast %645 : vector<1x2x32xf32> to vector<2x32xf32>
    %647 = vector.shape_cast %643 : vector<2x32xf32> to vector<1x2x32xf32>
    tpu.vector_store %arg12[%644, %c0_192, %c0_193], %647 {strides = array<i32>} : memref<8x2x32xf32, #tpu.memory_space<vmem>>, vector<1x2x32xf32>,
    %c8_i32_194 = arith.constant 8 : i32
    %c0_195 = arith.constant 0 : index
    %c0_196 = arith.constant 0 : index
    %648 = vector.load %arg5[%c0_195, %c0_196] : memref<96x128xf32, #tpu.memory_space<vmem>>, vector<96x128xf32>
    %c0_197 = arith.constant 0 : index
    %c0_198 = arith.constant 0 : index
    %649 = vector.load %arg9[%c0_197, %c0_198] : memref<1x128xf32, #tpu.memory_space<vmem>>, vector<1x128xf32>
    %cst_199 = arith.constant 0.000000e+00 : f32
    %650 = vector.broadcast %cst_199 : f32 to vector<2x32xf32>
    %cst_200 = arith.constant 0.000000e+00 : f32
    %651 = vector.broadcast %cst_200 : f32 to vector<2x32xf32>
    %c0_i32_201 = arith.constant 0 : i32
    %c7_i32_202 = arith.constant 7 : i32
    %652 = arith.subi %c7_i32_202, %c0_i32_201 : i32
    %653 = arith.index_cast %652 : i32 to index
    %c0_203 = arith.constant 0 : index
    %c0_204 = arith.constant 0 : index
    %654 = vector.load %arg11[%653, %c0_203, %c0_204] : memref<8x2x64xf32, #tpu.memory_space<vmem>>, vector<1x2x64xf32>
    %655 = vector.shape_cast %654 : vector<1x2x64xf32> to vector<2x64xf32>
    %656 = tpu.concatenate %655, %650 in 1 : vector<2x64xf32>, vector<2x32xf32> -> vector<2x96xf32>
    %cst_205 = arith.constant dense<0.000000e+00> : vector<2x128xf32>
    %657 = tpu.matmul %656, %648, %cst_205 {dimension_numbers = #tpu.dot_dimension_numbers<[1], [0], [0], [1], [0, 0, 1, 1], [], []>} : vector<2x96xf32>, vector<96x128xf32>, vector<2x128xf32> -> vector<2x128xf32>
    %658 = vector.broadcast %649 : vector<1x128xf32> to vector<2x128xf32>
    %659 = arith.addf %657, %658 : vector<2x128xf32>
    %660 = arith.negf %659 : vector<2x128xf32>
    %661 = math.exp %660 : vector<2x128xf32>
    %cst_206 = arith.constant 1.000000e+00 : f32
    %662 = vector.broadcast %cst_206 : f32 to vector<2x128xf32>
    %663 = arith.addf %662, %661 : vector<2x128xf32>
    %664 = arith.divf %662, %663 : vector<2x128xf32>
    %665 = math.tanh %659 : vector<2x128xf32>
    %666 = vector.extract_strided_slice %664 {offsets = [0, 0], sizes = [2, 32], strides = [1, 1]} : vector<2x128xf32> to vector<2x32xf32>
    %667 = vector.extract_strided_slice %664 {offsets = [0, 32], sizes = [2, 32], strides = [1, 1]} : vector<2x128xf32> to vector<2x32xf32>
    %668 = vector.extract_strided_slice %665 {offsets = [0, 64], sizes = [2, 32], strides = [1, 1]} : vector<2x128xf32> to vector<2x32xf32>
    %669 = vector.extract_strided_slice %664 {offsets = [0, 96], sizes = [2, 32], strides = [1, 1]} : vector<2x128xf32> to vector<2x32xf32>
    %670 = arith.mulf %667, %651 : vector<2x32xf32>
    %671 = arith.mulf %666, %668 : vector<2x32xf32>
    %672 = arith.addf %670, %671 : vector<2x32xf32>
    %673 = math.tanh %672 : vector<2x32xf32>
    %674 = arith.mulf %669, %673 : vector<2x32xf32>
    %675 = arith.index_cast %652 : i32 to index
    %c0_207 = arith.constant 0 : index
    %c0_208 = arith.constant 0 : index
    %676 = vector.load %arg13[%675, %c0_207, %c0_208] : memref<8x2x32xf32, #tpu.memory_space<vmem>>, vector<1x2x32xf32>
    %677 = vector.shape_cast %676 : vector<1x2x32xf32> to vector<2x32xf32>
    %678 = vector.shape_cast %674 : vector<2x32xf32> to vector<1x2x32xf32>
    tpu.vector_store %arg13[%675, %c0_207, %c0_208], %678 {strides = array<i32>} : memref<8x2x32xf32, #tpu.memory_space<vmem>>, vector<1x2x32xf32>,
    %c1_i32_209 = arith.constant 1 : i32
    %c7_i32_210 = arith.constant 7 : i32
    %679 = arith.subi %c7_i32_210, %c1_i32_209 : i32
    %680 = arith.index_cast %679 : i32 to index
    %c0_211 = arith.constant 0 : index
    %c0_212 = arith.constant 0 : index
    %681 = vector.load %arg11[%680, %c0_211, %c0_212] : memref<8x2x64xf32, #tpu.memory_space<vmem>>, vector<1x2x64xf32>
    %682 = vector.shape_cast %681 : vector<1x2x64xf32> to vector<2x64xf32>
    %683 = tpu.concatenate %682, %674 in 1 : vector<2x64xf32>, vector<2x32xf32> -> vector<2x96xf32>
    %cst_213 = arith.constant dense<0.000000e+00> : vector<2x128xf32>
    %684 = tpu.matmul %683, %648, %cst_213 {dimension_numbers = #tpu.dot_dimension_numbers<[1], [0], [0], [1], [0, 0, 1, 1], [], []>} : vector<2x96xf32>, vector<96x128xf32>, vector<2x128xf32> -> vector<2x128xf32>
    %685 = vector.broadcast %649 : vector<1x128xf32> to vector<2x128xf32>
    %686 = arith.addf %684, %685 : vector<2x128xf32>
    %687 = arith.negf %686 : vector<2x128xf32>
    %688 = math.exp %687 : vector<2x128xf32>
    %cst_214 = arith.constant 1.000000e+00 : f32
    %689 = vector.broadcast %cst_214 : f32 to vector<2x128xf32>
    %690 = arith.addf %689, %688 : vector<2x128xf32>
    %691 = arith.divf %689, %690 : vector<2x128xf32>
    %692 = math.tanh %686 : vector<2x128xf32>
    %693 = vector.extract_strided_slice %691 {offsets = [0, 0], sizes = [2, 32], strides = [1, 1]} : vector<2x128xf32> to vector<2x32xf32>
    %694 = vector.extract_strided_slice %691 {offsets = [0, 32], sizes = [2, 32], strides = [1, 1]} : vector<2x128xf32> to vector<2x32xf32>
    %695 = vector.extract_strided_slice %692 {offsets = [0, 64], sizes = [2, 32], strides = [1, 1]} : vector<2x128xf32> to vector<2x32xf32>
    %696 = vector.extract_strided_slice %691 {offsets = [0, 96], sizes = [2, 32], strides = [1, 1]} : vector<2x128xf32> to vector<2x32xf32>
    %697 = arith.mulf %694, %672 : vector<2x32xf32>
    %698 = arith.mulf %693, %695 : vector<2x32xf32>
    %699 = arith.addf %697, %698 : vector<2x32xf32>
    %700 = math.tanh %699 : vector<2x32xf32>
    %701 = arith.mulf %696, %700 : vector<2x32xf32>
    %702 = arith.index_cast %679 : i32 to index
    %c0_215 = arith.constant 0 : index
    %c0_216 = arith.constant 0 : index
    %703 = vector.load %arg13[%702, %c0_215, %c0_216] : memref<8x2x32xf32, #tpu.memory_space<vmem>>, vector<1x2x32xf32>
    %704 = vector.shape_cast %703 : vector<1x2x32xf32> to vector<2x32xf32>
    %705 = vector.shape_cast %701 : vector<2x32xf32> to vector<1x2x32xf32>
    tpu.vector_store %arg13[%702, %c0_215, %c0_216], %705 {strides = array<i32>} : memref<8x2x32xf32, #tpu.memory_space<vmem>>, vector<1x2x32xf32>,
    %c2_i32_217 = arith.constant 2 : i32
    %c7_i32_218 = arith.constant 7 : i32
    %706 = arith.subi %c7_i32_218, %c2_i32_217 : i32
    %707 = arith.index_cast %706 : i32 to index
    %c0_219 = arith.constant 0 : index
    %c0_220 = arith.constant 0 : index
    %708 = vector.load %arg11[%707, %c0_219, %c0_220] : memref<8x2x64xf32, #tpu.memory_space<vmem>>, vector<1x2x64xf32>
    %709 = vector.shape_cast %708 : vector<1x2x64xf32> to vector<2x64xf32>
    %710 = tpu.concatenate %709, %701 in 1 : vector<2x64xf32>, vector<2x32xf32> -> vector<2x96xf32>
    %cst_221 = arith.constant dense<0.000000e+00> : vector<2x128xf32>
    %711 = tpu.matmul %710, %648, %cst_221 {dimension_numbers = #tpu.dot_dimension_numbers<[1], [0], [0], [1], [0, 0, 1, 1], [], []>} : vector<2x96xf32>, vector<96x128xf32>, vector<2x128xf32> -> vector<2x128xf32>
    %712 = vector.broadcast %649 : vector<1x128xf32> to vector<2x128xf32>
    %713 = arith.addf %711, %712 : vector<2x128xf32>
    %714 = arith.negf %713 : vector<2x128xf32>
    %715 = math.exp %714 : vector<2x128xf32>
    %cst_222 = arith.constant 1.000000e+00 : f32
    %716 = vector.broadcast %cst_222 : f32 to vector<2x128xf32>
    %717 = arith.addf %716, %715 : vector<2x128xf32>
    %718 = arith.divf %716, %717 : vector<2x128xf32>
    %719 = math.tanh %713 : vector<2x128xf32>
    %720 = vector.extract_strided_slice %718 {offsets = [0, 0], sizes = [2, 32], strides = [1, 1]} : vector<2x128xf32> to vector<2x32xf32>
    %721 = vector.extract_strided_slice %718 {offsets = [0, 32], sizes = [2, 32], strides = [1, 1]} : vector<2x128xf32> to vector<2x32xf32>
    %722 = vector.extract_strided_slice %719 {offsets = [0, 64], sizes = [2, 32], strides = [1, 1]} : vector<2x128xf32> to vector<2x32xf32>
    %723 = vector.extract_strided_slice %718 {offsets = [0, 96], sizes = [2, 32], strides = [1, 1]} : vector<2x128xf32> to vector<2x32xf32>
    %724 = arith.mulf %721, %699 : vector<2x32xf32>
    %725 = arith.mulf %720, %722 : vector<2x32xf32>
    %726 = arith.addf %724, %725 : vector<2x32xf32>
    %727 = math.tanh %726 : vector<2x32xf32>
    %728 = arith.mulf %723, %727 : vector<2x32xf32>
    %729 = arith.index_cast %706 : i32 to index
    %c0_223 = arith.constant 0 : index
    %c0_224 = arith.constant 0 : index
    %730 = vector.load %arg13[%729, %c0_223, %c0_224] : memref<8x2x32xf32, #tpu.memory_space<vmem>>, vector<1x2x32xf32>
    %731 = vector.shape_cast %730 : vector<1x2x32xf32> to vector<2x32xf32>
    %732 = vector.shape_cast %728 : vector<2x32xf32> to vector<1x2x32xf32>
    tpu.vector_store %arg13[%729, %c0_223, %c0_224], %732 {strides = array<i32>} : memref<8x2x32xf32, #tpu.memory_space<vmem>>, vector<1x2x32xf32>,
    %c3_i32_225 = arith.constant 3 : i32
    %c7_i32_226 = arith.constant 7 : i32
    %733 = arith.subi %c7_i32_226, %c3_i32_225 : i32
    %734 = arith.index_cast %733 : i32 to index
    %c0_227 = arith.constant 0 : index
    %c0_228 = arith.constant 0 : index
    %735 = vector.load %arg11[%734, %c0_227, %c0_228] : memref<8x2x64xf32, #tpu.memory_space<vmem>>, vector<1x2x64xf32>
    %736 = vector.shape_cast %735 : vector<1x2x64xf32> to vector<2x64xf32>
    %737 = tpu.concatenate %736, %728 in 1 : vector<2x64xf32>, vector<2x32xf32> -> vector<2x96xf32>
    %cst_229 = arith.constant dense<0.000000e+00> : vector<2x128xf32>
    %738 = tpu.matmul %737, %648, %cst_229 {dimension_numbers = #tpu.dot_dimension_numbers<[1], [0], [0], [1], [0, 0, 1, 1], [], []>} : vector<2x96xf32>, vector<96x128xf32>, vector<2x128xf32> -> vector<2x128xf32>
    %739 = vector.broadcast %649 : vector<1x128xf32> to vector<2x128xf32>
    %740 = arith.addf %738, %739 : vector<2x128xf32>
    %741 = arith.negf %740 : vector<2x128xf32>
    %742 = math.exp %741 : vector<2x128xf32>
    %cst_230 = arith.constant 1.000000e+00 : f32
    %743 = vector.broadcast %cst_230 : f32 to vector<2x128xf32>
    %744 = arith.addf %743, %742 : vector<2x128xf32>
    %745 = arith.divf %743, %744 : vector<2x128xf32>
    %746 = math.tanh %740 : vector<2x128xf32>
    %747 = vector.extract_strided_slice %745 {offsets = [0, 0], sizes = [2, 32], strides = [1, 1]} : vector<2x128xf32> to vector<2x32xf32>
    %748 = vector.extract_strided_slice %745 {offsets = [0, 32], sizes = [2, 32], strides = [1, 1]} : vector<2x128xf32> to vector<2x32xf32>
    %749 = vector.extract_strided_slice %746 {offsets = [0, 64], sizes = [2, 32], strides = [1, 1]} : vector<2x128xf32> to vector<2x32xf32>
    %750 = vector.extract_strided_slice %745 {offsets = [0, 96], sizes = [2, 32], strides = [1, 1]} : vector<2x128xf32> to vector<2x32xf32>
    %751 = arith.mulf %748, %726 : vector<2x32xf32>
    %752 = arith.mulf %747, %749 : vector<2x32xf32>
    %753 = arith.addf %751, %752 : vector<2x32xf32>
    %754 = math.tanh %753 : vector<2x32xf32>
    %755 = arith.mulf %750, %754 : vector<2x32xf32>
    %756 = arith.index_cast %733 : i32 to index
    %c0_231 = arith.constant 0 : index
    %c0_232 = arith.constant 0 : index
    %757 = vector.load %arg13[%756, %c0_231, %c0_232] : memref<8x2x32xf32, #tpu.memory_space<vmem>>, vector<1x2x32xf32>
    %758 = vector.shape_cast %757 : vector<1x2x32xf32> to vector<2x32xf32>
    %759 = vector.shape_cast %755 : vector<2x32xf32> to vector<1x2x32xf32>
    tpu.vector_store %arg13[%756, %c0_231, %c0_232], %759 {strides = array<i32>} : memref<8x2x32xf32, #tpu.memory_space<vmem>>, vector<1x2x32xf32>,
    %c4_i32_233 = arith.constant 4 : i32
    %c7_i32_234 = arith.constant 7 : i32
    %760 = arith.subi %c7_i32_234, %c4_i32_233 : i32
    %761 = arith.index_cast %760 : i32 to index
    %c0_235 = arith.constant 0 : index
    %c0_236 = arith.constant 0 : index
    %762 = vector.load %arg11[%761, %c0_235, %c0_236] : memref<8x2x64xf32, #tpu.memory_space<vmem>>, vector<1x2x64xf32>
    %763 = vector.shape_cast %762 : vector<1x2x64xf32> to vector<2x64xf32>
    %764 = tpu.concatenate %763, %755 in 1 : vector<2x64xf32>, vector<2x32xf32> -> vector<2x96xf32>
    %cst_237 = arith.constant dense<0.000000e+00> : vector<2x128xf32>
    %765 = tpu.matmul %764, %648, %cst_237 {dimension_numbers = #tpu.dot_dimension_numbers<[1], [0], [0], [1], [0, 0, 1, 1], [], []>} : vector<2x96xf32>, vector<96x128xf32>, vector<2x128xf32> -> vector<2x128xf32>
    %766 = vector.broadcast %649 : vector<1x128xf32> to vector<2x128xf32>
    %767 = arith.addf %765, %766 : vector<2x128xf32>
    %768 = arith.negf %767 : vector<2x128xf32>
    %769 = math.exp %768 : vector<2x128xf32>
    %cst_238 = arith.constant 1.000000e+00 : f32
    %770 = vector.broadcast %cst_238 : f32 to vector<2x128xf32>
    %771 = arith.addf %770, %769 : vector<2x128xf32>
    %772 = arith.divf %770, %771 : vector<2x128xf32>
    %773 = math.tanh %767 : vector<2x128xf32>
    %774 = vector.extract_strided_slice %772 {offsets = [0, 0], sizes = [2, 32], strides = [1, 1]} : vector<2x128xf32> to vector<2x32xf32>
    %775 = vector.extract_strided_slice %772 {offsets = [0, 32], sizes = [2, 32], strides = [1, 1]} : vector<2x128xf32> to vector<2x32xf32>
    %776 = vector.extract_strided_slice %773 {offsets = [0, 64], sizes = [2, 32], strides = [1, 1]} : vector<2x128xf32> to vector<2x32xf32>
    %777 = vector.extract_strided_slice %772 {offsets = [0, 96], sizes = [2, 32], strides = [1, 1]} : vector<2x128xf32> to vector<2x32xf32>
    %778 = arith.mulf %775, %753 : vector<2x32xf32>
    %779 = arith.mulf %774, %776 : vector<2x32xf32>
    %780 = arith.addf %778, %779 : vector<2x32xf32>
    %781 = math.tanh %780 : vector<2x32xf32>
    %782 = arith.mulf %777, %781 : vector<2x32xf32>
    %783 = arith.index_cast %760 : i32 to index
    %c0_239 = arith.constant 0 : index
    %c0_240 = arith.constant 0 : index
    %784 = vector.load %arg13[%783, %c0_239, %c0_240] : memref<8x2x32xf32, #tpu.memory_space<vmem>>, vector<1x2x32xf32>
    %785 = vector.shape_cast %784 : vector<1x2x32xf32> to vector<2x32xf32>
    %786 = vector.shape_cast %782 : vector<2x32xf32> to vector<1x2x32xf32>
    tpu.vector_store %arg13[%783, %c0_239, %c0_240], %786 {strides = array<i32>} : memref<8x2x32xf32, #tpu.memory_space<vmem>>, vector<1x2x32xf32>,
    %c5_i32_241 = arith.constant 5 : i32
    %c7_i32_242 = arith.constant 7 : i32
    %787 = arith.subi %c7_i32_242, %c5_i32_241 : i32
    %788 = arith.index_cast %787 : i32 to index
    %c0_243 = arith.constant 0 : index
    %c0_244 = arith.constant 0 : index
    %789 = vector.load %arg11[%788, %c0_243, %c0_244] : memref<8x2x64xf32, #tpu.memory_space<vmem>>, vector<1x2x64xf32>
    %790 = vector.shape_cast %789 : vector<1x2x64xf32> to vector<2x64xf32>
    %791 = tpu.concatenate %790, %782 in 1 : vector<2x64xf32>, vector<2x32xf32> -> vector<2x96xf32>
    %cst_245 = arith.constant dense<0.000000e+00> : vector<2x128xf32>
    %792 = tpu.matmul %791, %648, %cst_245 {dimension_numbers = #tpu.dot_dimension_numbers<[1], [0], [0], [1], [0, 0, 1, 1], [], []>} : vector<2x96xf32>, vector<96x128xf32>, vector<2x128xf32> -> vector<2x128xf32>
    %793 = vector.broadcast %649 : vector<1x128xf32> to vector<2x128xf32>
    %794 = arith.addf %792, %793 : vector<2x128xf32>
    %795 = arith.negf %794 : vector<2x128xf32>
    %796 = math.exp %795 : vector<2x128xf32>
    %cst_246 = arith.constant 1.000000e+00 : f32
    %797 = vector.broadcast %cst_246 : f32 to vector<2x128xf32>
    %798 = arith.addf %797, %796 : vector<2x128xf32>
    %799 = arith.divf %797, %798 : vector<2x128xf32>
    %800 = math.tanh %794 : vector<2x128xf32>
    %801 = vector.extract_strided_slice %799 {offsets = [0, 0], sizes = [2, 32], strides = [1, 1]} : vector<2x128xf32> to vector<2x32xf32>
    %802 = vector.extract_strided_slice %799 {offsets = [0, 32], sizes = [2, 32], strides = [1, 1]} : vector<2x128xf32> to vector<2x32xf32>
    %803 = vector.extract_strided_slice %800 {offsets = [0, 64], sizes = [2, 32], strides = [1, 1]} : vector<2x128xf32> to vector<2x32xf32>
    %804 = vector.extract_strided_slice %799 {offsets = [0, 96], sizes = [2, 32], strides = [1, 1]} : vector<2x128xf32> to vector<2x32xf32>
    %805 = arith.mulf %802, %780 : vector<2x32xf32>
    %806 = arith.mulf %801, %803 : vector<2x32xf32>
    %807 = arith.addf %805, %806 : vector<2x32xf32>
    %808 = math.tanh %807 : vector<2x32xf32>
    %809 = arith.mulf %804, %808 : vector<2x32xf32>
    %810 = arith.index_cast %787 : i32 to index
    %c0_247 = arith.constant 0 : index
    %c0_248 = arith.constant 0 : index
    %811 = vector.load %arg13[%810, %c0_247, %c0_248] : memref<8x2x32xf32, #tpu.memory_space<vmem>>, vector<1x2x32xf32>
    %812 = vector.shape_cast %811 : vector<1x2x32xf32> to vector<2x32xf32>
    %813 = vector.shape_cast %809 : vector<2x32xf32> to vector<1x2x32xf32>
    tpu.vector_store %arg13[%810, %c0_247, %c0_248], %813 {strides = array<i32>} : memref<8x2x32xf32, #tpu.memory_space<vmem>>, vector<1x2x32xf32>,
    %c6_i32_249 = arith.constant 6 : i32
    %c7_i32_250 = arith.constant 7 : i32
    %814 = arith.subi %c7_i32_250, %c6_i32_249 : i32
    %815 = arith.index_cast %814 : i32 to index
    %c0_251 = arith.constant 0 : index
    %c0_252 = arith.constant 0 : index
    %816 = vector.load %arg11[%815, %c0_251, %c0_252] : memref<8x2x64xf32, #tpu.memory_space<vmem>>, vector<1x2x64xf32>
    %817 = vector.shape_cast %816 : vector<1x2x64xf32> to vector<2x64xf32>
    %818 = tpu.concatenate %817, %809 in 1 : vector<2x64xf32>, vector<2x32xf32> -> vector<2x96xf32>
    %cst_253 = arith.constant dense<0.000000e+00> : vector<2x128xf32>
    %819 = tpu.matmul %818, %648, %cst_253 {dimension_numbers = #tpu.dot_dimension_numbers<[1], [0], [0], [1], [0, 0, 1, 1], [], []>} : vector<2x96xf32>, vector<96x128xf32>, vector<2x128xf32> -> vector<2x128xf32>
    %820 = vector.broadcast %649 : vector<1x128xf32> to vector<2x128xf32>
    %821 = arith.addf %819, %820 : vector<2x128xf32>
    %822 = arith.negf %821 : vector<2x128xf32>
    %823 = math.exp %822 : vector<2x128xf32>
    %cst_254 = arith.constant 1.000000e+00 : f32
    %824 = vector.broadcast %cst_254 : f32 to vector<2x128xf32>
    %825 = arith.addf %824, %823 : vector<2x128xf32>
    %826 = arith.divf %824, %825 : vector<2x128xf32>
    %827 = math.tanh %821 : vector<2x128xf32>
    %828 = vector.extract_strided_slice %826 {offsets = [0, 0], sizes = [2, 32], strides = [1, 1]} : vector<2x128xf32> to vector<2x32xf32>
    %829 = vector.extract_strided_slice %826 {offsets = [0, 32], sizes = [2, 32], strides = [1, 1]} : vector<2x128xf32> to vector<2x32xf32>
    %830 = vector.extract_strided_slice %827 {offsets = [0, 64], sizes = [2, 32], strides = [1, 1]} : vector<2x128xf32> to vector<2x32xf32>
    %831 = vector.extract_strided_slice %826 {offsets = [0, 96], sizes = [2, 32], strides = [1, 1]} : vector<2x128xf32> to vector<2x32xf32>
    %832 = arith.mulf %829, %807 : vector<2x32xf32>
    %833 = arith.mulf %828, %830 : vector<2x32xf32>
    %834 = arith.addf %832, %833 : vector<2x32xf32>
    %835 = math.tanh %834 : vector<2x32xf32>
    %836 = arith.mulf %831, %835 : vector<2x32xf32>
    %837 = arith.index_cast %814 : i32 to index
    %c0_255 = arith.constant 0 : index
    %c0_256 = arith.constant 0 : index
    %838 = vector.load %arg13[%837, %c0_255, %c0_256] : memref<8x2x32xf32, #tpu.memory_space<vmem>>, vector<1x2x32xf32>
    %839 = vector.shape_cast %838 : vector<1x2x32xf32> to vector<2x32xf32>
    %840 = vector.shape_cast %836 : vector<2x32xf32> to vector<1x2x32xf32>
    tpu.vector_store %arg13[%837, %c0_255, %c0_256], %840 {strides = array<i32>} : memref<8x2x32xf32, #tpu.memory_space<vmem>>, vector<1x2x32xf32>,
    %c7_i32_257 = arith.constant 7 : i32
    %c7_i32_258 = arith.constant 7 : i32
    %841 = arith.subi %c7_i32_258, %c7_i32_257 : i32
    %842 = arith.index_cast %841 : i32 to index
    %c0_259 = arith.constant 0 : index
    %c0_260 = arith.constant 0 : index
    %843 = vector.load %arg11[%842, %c0_259, %c0_260] : memref<8x2x64xf32, #tpu.memory_space<vmem>>, vector<1x2x64xf32>
    %844 = vector.shape_cast %843 : vector<1x2x64xf32> to vector<2x64xf32>
    %845 = tpu.concatenate %844, %836 in 1 : vector<2x64xf32>, vector<2x32xf32> -> vector<2x96xf32>
    %cst_261 = arith.constant dense<0.000000e+00> : vector<2x128xf32>
    %846 = tpu.matmul %845, %648, %cst_261 {dimension_numbers = #tpu.dot_dimension_numbers<[1], [0], [0], [1], [0, 0, 1, 1], [], []>} : vector<2x96xf32>, vector<96x128xf32>, vector<2x128xf32> -> vector<2x128xf32>
    %847 = vector.broadcast %649 : vector<1x128xf32> to vector<2x128xf32>
    %848 = arith.addf %846, %847 : vector<2x128xf32>
    %849 = arith.negf %848 : vector<2x128xf32>
    %850 = math.exp %849 : vector<2x128xf32>
    %cst_262 = arith.constant 1.000000e+00 : f32
    %851 = vector.broadcast %cst_262 : f32 to vector<2x128xf32>
    %852 = arith.addf %851, %850 : vector<2x128xf32>
    %853 = arith.divf %851, %852 : vector<2x128xf32>
    %854 = math.tanh %848 : vector<2x128xf32>
    %855 = vector.extract_strided_slice %853 {offsets = [0, 0], sizes = [2, 32], strides = [1, 1]} : vector<2x128xf32> to vector<2x32xf32>
    %856 = vector.extract_strided_slice %853 {offsets = [0, 32], sizes = [2, 32], strides = [1, 1]} : vector<2x128xf32> to vector<2x32xf32>
    %857 = vector.extract_strided_slice %854 {offsets = [0, 64], sizes = [2, 32], strides = [1, 1]} : vector<2x128xf32> to vector<2x32xf32>
    %858 = vector.extract_strided_slice %853 {offsets = [0, 96], sizes = [2, 32], strides = [1, 1]} : vector<2x128xf32> to vector<2x32xf32>
    %859 = arith.mulf %856, %834 : vector<2x32xf32>
    %860 = arith.mulf %855, %857 : vector<2x32xf32>
    %861 = arith.addf %859, %860 : vector<2x32xf32>
    %862 = math.tanh %861 : vector<2x32xf32>
    %863 = arith.mulf %858, %862 : vector<2x32xf32>
    %864 = arith.index_cast %841 : i32 to index
    %c0_263 = arith.constant 0 : index
    %c0_264 = arith.constant 0 : index
    %865 = vector.load %arg13[%864, %c0_263, %c0_264] : memref<8x2x32xf32, #tpu.memory_space<vmem>>, vector<1x2x32xf32>
    %866 = vector.shape_cast %865 : vector<1x2x32xf32> to vector<2x32xf32>
    %867 = vector.shape_cast %863 : vector<2x32xf32> to vector<1x2x32xf32>
    tpu.vector_store %arg13[%864, %c0_263, %c0_264], %867 {strides = array<i32>} : memref<8x2x32xf32, #tpu.memory_space<vmem>>, vector<1x2x32xf32>,
    %c8_i32_265 = arith.constant 8 : i32
    %c0_266 = arith.constant 0 : index
    %c0_267 = arith.constant 0 : index
    %c0_268 = arith.constant 0 : index
    %868 = vector.load %arg12[%c0_266, %c0_267, %c0_268] : memref<8x2x32xf32, #tpu.memory_space<vmem>>, vector<8x2x32xf32>
    %c0_269 = arith.constant 0 : index
    %c0_270 = arith.constant 0 : index
    %c0_271 = arith.constant 0 : index
    %869 = vector.load %arg13[%c0_269, %c0_270, %c0_271] : memref<8x2x32xf32, #tpu.memory_space<vmem>>, vector<8x2x32xf32>
    %870 = tpu.concatenate %868, %869 in 2 : vector<8x2x32xf32>, vector<8x2x32xf32> -> vector<8x2x64xf32>
    %c0_272 = arith.constant 0 : index
    %c0_273 = arith.constant 0 : index
    %c0_274 = arith.constant 0 : index
    %871 = vector.load %arg10[%c0_272, %c0_273, %c0_274] : memref<8x2x64xf32, #tpu.memory_space<vmem>>, vector<8x2x64xf32>
    tpu.vector_store %arg10[%c0_272, %c0_273, %c0_274], %870 {strides = array<i32>} : memref<8x2x64xf32, #tpu.memory_space<vmem>>, vector<8x2x64xf32>,
    return
  }
  func.func @transform_0(%arg0: i32) -> (i32, i32, i32) {
    %c0_i32 = arith.constant 0 : i32
    %c0_i32_0 = arith.constant 0 : i32
    %c0_i32_1 = arith.constant 0 : i32
    %c0_i32_2 = arith.constant 0 : i32
    return %c0_i32, %c0_i32_0, %c0_i32_1 : i32, i32, i32
  }
  func.func @transform_1(%arg0: i32) -> (i32, i32) {
    %c0_i32 = arith.constant 0 : i32
    %c0_i32_0 = arith.constant 0 : i32
    %c0_i32_1 = arith.constant 0 : i32
    return %c0_i32, %c0_i32_0 : i32, i32
  }
  func.func @transform_2(%arg0: i32) -> (i32, i32) {
    %c0_i32 = arith.constant 0 : i32
    %c0_i32_0 = arith.constant 0 : i32
    %c0_i32_1 = arith.constant 0 : i32
    return %c0_i32, %c0_i32_0 : i32, i32
  }
  func.func @transform_3(%arg0: i32) -> (i32, i32) {
    %c0_i32 = arith.constant 0 : i32
    %c0_i32_0 = arith.constant 0 : i32
    %c0_i32_1 = arith.constant 0 : i32
    return %c0_i32, %c0_i32_0 : i32, i32
  }
  func.func @transform_4(%arg0: i32) -> (i32, i32) {
    %c0_i32 = arith.constant 0 : i32
    %c0_i32_0 = arith.constant 0 : i32
    %c0_i32_1 = arith.constant 0 : i32
    return %c0_i32, %c0_i32_0 : i32, i32
  }
  func.func @transform_5(%arg0: i32) -> (i32, i32) {
    %c0_i32 = arith.constant 0 : i32
    %c0_i32_0 = arith.constant 0 : i32
    %c0_i32_1 = arith.constant 0 : i32
    return %c0_i32, %c0_i32_0 : i32, i32
  }
  func.func @transform_6(%arg0: i32) -> (i32, i32) {
    %c0_i32 = arith.constant 0 : i32
    %c0_i32_0 = arith.constant 0 : i32
    %c0_i32_1 = arith.constant 0 : i32
    return %c0_i32, %c0_i32_0 : i32, i32
  }
  func.func @transform_7(%arg0: i32) -> (i32, i32) {
    %c0_i32 = arith.constant 0 : i32
    %c0_i32_0 = arith.constant 0 : i32
    %c0_i32_1 = arith.constant 0 : i32
    return %c0_i32, %c0_i32_0 : i32, i32
  }
  func.func @transform_8(%arg0: i32) -> (i32, i32) {
    %c0_i32 = arith.constant 0 : i32
    %c0_i32_0 = arith.constant 0 : i32
    %c0_i32_1 = arith.constant 0 : i32
    return %c0_i32, %c0_i32_0 : i32, i32
  }
  func.func @transform_9(%arg0: i32) -> (i32, i32, i32) {
    %c0_i32 = arith.constant 0 : i32
    %c0_i32_0 = arith.constant 0 : i32
    %c0_i32_1 = arith.constant 0 : i32
    %c0_i32_2 = arith.constant 0 : i32
    return %c0_i32, %c0_i32_0, %c0_i32_1 : i32, i32, i32
  }
}

</mosaic_0001>

<llo_original>
// kernel: tpu_custom_call.1
$region0: #{tpu_custom_call.1}
  #allocation0 [shape = 'u32[]', space=smem, size = 0x4, offset = 0x4, fixed_abs, tag = 'smem constant byte address 0x4 - core index']
  #allocation1 [shape = 'u32[144,128]{1,0:T(1,128)}', space=vmem, size = 0x12000, scoped, tag = 'internal scratch']
  #allocation2 [shape = 'f32[8,2,64]{2,1,0:T(2,128)}', space=vmem, size = 0x2000, scoped, tag = 'scratch operand']
  #allocation3 [shape = 'f32[8,2,32]{2,1,0:T(2,128)}', space=vmem, size = 0x2000, scoped, tag = 'scratch operand']
  #allocation4 [shape = 'f32[8,2,32]{2,1,0:T(2,128)}', space=vmem, size = 0x2000, scoped, tag = 'scratch operand']
  %s0 = inlined_call_operand.hbm [shape: f32[8,2,16], index: 0, kind: input, shape index: {}]
  %s1 = inlined_call_operand.hbm [shape: f32[48,128], index: 1, kind: input, shape index: {}]
  %s2 = inlined_call_operand.hbm [shape: f32[48,128], index: 2, kind: input, shape index: {}]
  %s3 = inlined_call_operand.hbm [shape: f32[96,128], index: 3, kind: input, shape index: {}]
  %s4 = inlined_call_operand.hbm [shape: f32[96,128], index: 4, kind: input, shape index: {}]
  %s5 = inlined_call_operand.vmem [shape: f32[1,128], index: 5, kind: input, shape index: {}]
  %s6 = inlined_call_operand.vmem [shape: f32[1,128], index: 6, kind: input, shape index: {}]
  %s7 = inlined_call_operand.vmem [shape: f32[1,128], index: 7, kind: input, shape index: {}]
  %s8 = inlined_call_operand.vmem [shape: f32[1,128], index: 8, kind: input, shape index: {}]
  %s9 = inlined_call_operand.hbm [shape: f32[8,2,64], index: 9, kind: output, shape index: {}]
  %s10 = sld [smem:[#allocation0]]
  $region66: #{tpu_custom_call.1} parent=0
    _
  %s12 = ssub.s32 1, %s10
  %s13 = scalar_select 0, %s12, %s10
  $region1: #{tpu_custom_call.1} parent=0
    #allocation5 [shape = 'u8[8192]{0}', space=vmem, size = 0x2000, scoped, tag = 'input window, operand 0, single buffered']
    #allocation6 [shape = 's32[1]{0}', space=sflag, size = 0x4, scoped, tag = 'scoped memory for tpu_custom_call.1']
    #allocation7 [shape = 's32[1]{0}', space=sflag, size = 0x4, scoped, tag = 'scoped memory for tpu_custom_call.1']
    #allocation8 [shape = 'u8[24576]{0}', space=vmem, size = 0x6000, scoped, tag = 'input window, operand 1, single buffered']
    #allocation9 [shape = 's32[1]{0}', space=sflag, size = 0x4, scoped, tag = 'scoped memory for tpu_custom_call.1']
    #allocation10 [shape = 'u8[24576]{0}', space=vmem, size = 0x6000, scoped, tag = 'input window, operand 2, single buffered']
    #allocation11 [shape = 'u8[49152]{0}', space=vmem, size = 0xc000, scoped, tag = 'input window, operand 3, single buffered']
    #allocation12 [shape = 's32[1]{0}', space=sflag, size = 0x4, scoped, tag = 'scoped memory for tpu_custom_call.1']
    #allocation13 [shape = 'u8[49152]{0}', space=vmem, size = 0xc000, scoped, tag = 'input window, operand 4, single buffered']
    #allocation14 [shape = 'u8[8192]{0}', space=vmem, size = 0x2000, scoped, tag = 'output window, operand 0, single buffered']
    %14 = vsyncpa [#allocation6], 0
    %15 = vsyncpa [#allocation9], 0
    %16 = vsyncpa [#allocation12], 0
    %17 = vsyncpa [#allocation7], 0
    // Predicated region
    $region2: #{tpu_custom_call.1} parent=1 // pred_check
      _
    $region3: #{tpu_custom_call.1} parent=1 // pred_check_branch
      %19 = sbr.rel (0) target = $region5
    $region4: #{tpu_custom_call.1} parent=1 // pred_region
      %s21 = ssub.s32 256, 256
      %22 = vsyncadd [#allocation6], %s21
      %s23 = sshll.u32 [#allocation5], 4
      %s24 = int_to_ptr.vmem [resolvable:$true] %s23
      %29 = dma.hbm_to_vmem [thread:$0]  %s0, 256, %s24, [#allocation6], 32, 32, 2
    $region5: #{tpu_custom_call.1} parent=1 // pred_fallthru
      _
    // Predicated region
    $region6: #{tpu_custom_call.1} parent=1 // pred_check
      _
    $region7: #{tpu_custom_call.1} parent=1 // pred_check_branch
      %31 = sbr.rel (0) target = $region9
    $region8: #{tpu_custom_call.1} parent=1 // pred_region
      %s33 = ssub.s32 768, 768
      %34 = vsyncadd [#allocation9], %s33
      %s35 = sshll.u32 [#allocation8], 4
      %s36 = int_to_ptr.vmem [resolvable:$true] %s35
      %41 = dma.hbm_to_vmem [thread:$0]  %s1, 768, %s36, [#allocation9], 128, 128, 8
    $region9: #{tpu_custom_call.1} parent=1 // pred_fallthru
      _
    // Predicated region
    $region10: #{tpu_custom_call.1} parent=1 // pred_check
      _
    $region11: #{tpu_custom_call.1} parent=1 // pred_check_branch
      %43 = sbr.rel (0) target = $region13
    $region12: #{tpu_custom_call.1} parent=1 // pred_region
      %s45 = ssub.s32 768, 768
      %46 = vsyncadd [#allocation9], %s45
      %s47 = sshll.u32 [#allocation10], 4
      %s48 = int_to_ptr.vmem [resolvable:$true] %s47
      %53 = dma.hbm_to_vmem [thread:$0]  %s2, 768, %s48, [#allocation9], 128, 128, 8
    $region13: #{tpu_custom_call.1} parent=1 // pred_fallthru
      _
    // Predicated region
    $region14: #{tpu_custom_call.1} parent=1 // pred_check
      _
    $region15: #{tpu_custom_call.1} parent=1 // pred_check_branch
      %55 = sbr.rel (0) target = $region17
    $region16: #{tpu_custom_call.1} parent=1 // pred_region
      %s57 = ssub.s32 1536, 1536
      %58 = vsyncadd [#allocation12], %s57
      %s59 = sshll.u32 [#allocation11], 4
      %s60 = int_to_ptr.vmem [resolvable:$true] %s59
      %65 = dma.hbm_to_vmem [thread:$0]  %s3, 1536, %s60, [#allocation12], 128, 128, 8
    $region17: #{tpu_custom_call.1} parent=1 // pred_fallthru
      _
    // Predicated region
    $region18: #{tpu_custom_call.1} parent=1 // pred_check
      _
    $region19: #{tpu_custom_call.1} parent=1 // pred_check_branch
      %67 = sbr.rel (0) target = $region21
    $region20: #{tpu_custom_call.1} parent=1 // pred_region
      %s69 = ssub.s32 1536, 1536
      %70 = vsyncadd [#allocation12], %s69
      %s71 = sshll.u32 [#allocation13], 4
      %s72 = int_to_ptr.vmem [resolvable:$true] %s71
      %77 = dma.hbm_to_vmem [thread:$0]  %s4, 1536, %s72, [#allocation12], 128, 128, 8
    $region21: #{tpu_custom_call.1} parent=1 // pred_fallthru
      _
    // Predicated region
    $region22: #{tpu_custom_call.1} parent=1 // pred_check
      _
    $region23: #{tpu_custom_call.1} parent=1 // pred_check_branch
      %79 = sbr.rel (0) target = $region25
    $region24: #{tpu_custom_call.1} parent=1 // pred_region
      _
    $region25: #{tpu_custom_call.1} parent=1 // pred_fallthru
      _
    // Predicated region
    $region26: #{tpu_custom_call.1} parent=1 // pred_check
      _
    $region27: #{tpu_custom_call.1} parent=1 // pred_check_branch
      %81 = sbr.rel (0) target = $region29
    $region28: #{tpu_custom_call.1} parent=1 // pred_region
      _
    $region29: #{tpu_custom_call.1} parent=1 // pred_fallthru
      _
    // Predicated region
    $region30: #{tpu_custom_call.1} parent=1 // pred_check
      _
    $region31: #{tpu_custom_call.1} parent=1 // pred_check_branch
      %83 = sbr.rel (0) target = $region33
    $region32: #{tpu_custom_call.1} parent=1 // pred_region
      _
    $region33: #{tpu_custom_call.1} parent=1 // pred_fallthru
      _
    // Predicated region
    $region34: #{tpu_custom_call.1} parent=1 // pred_check
      _
    $region35: #{tpu_custom_call.1} parent=1 // pred_check_branch
      %85 = sbr.rel (0) target = $region37
    $region36: #{tpu_custom_call.1} parent=1 // pred_region
      _
    $region37: #{tpu_custom_call.1} parent=1 // pred_fallthru
      _
    // Predicated region
    $region38: #{tpu_custom_call.1} parent=1 // pred_check
      _
    $region39: #{tpu_custom_call.1} parent=1 // pred_check_branch
      %87 = sbr.rel (0) target = $region41
    $region40: #{tpu_custom_call.1} parent=1 // pred_region
      %88 = dma.done [#allocation6], 256
    $region41: #{tpu_custom_call.1} parent=1 // pred_fallthru
      _
    // Predicated region
    $region42: #{tpu_custom_call.1} parent=1 // pred_check
      _
    $region43: #{tpu_custom_call.1} parent=1 // pred_check_branch
      %90 = sbr.rel (0) target = $region45
    $region44: #{tpu_custom_call.1} parent=1 // pred_region
      %91 = dma.done [#allocation9], 768
    $region45: #{tpu_custom_call.1} parent=1 // pred_fallthru
      _
    // Predicated region
    $region46: #{tpu_custom_call.1} parent=1 // pred_check
      _
    $region47: #{tpu_custom_call.1} parent=1 // pred_check_branch
      %93 = sbr.rel (0) target = $region49
    $region48: #{tpu_custom_call.1} parent=1 // pred_region
      %94 = dma.done [#allocation9], 768
    $region49: #{tpu_custom_call.1} parent=1 // pred_fallthru
      _
    // Predicated region
    $region50: #{tpu_custom_call.1} parent=1 // pred_check
      _
    $region51: #{tpu_custom_call.1} parent=1 // pred_check_branch
      %96 = sbr.rel (0) target = $region53
    $region52: #{tpu_custom_call.1} parent=1 // pred_region
      %97 = dma.done [#allocation12], 1536
    $region53: #{tpu_custom_call.1} parent=1 // pred_fallthru
      _
    // Predicated region
    $region54: #{tpu_custom_call.1} parent=1 // pred_check
      _
    $region55: #{tpu_custom_call.1} parent=1 // pred_check_branch
      %99 = sbr.rel (0) target = $region57
    $region56: #{tpu_custom_call.1} parent=1 // pred_region
      %100 = dma.done [#allocation12], 1536
    $region57: #{tpu_custom_call.1} parent=1 // pred_fallthru
      _
    %v101 = vld [vmem:[#allocation8] sm:$0xff]
    %v102 = vld [vmem:[#allocation8 + $0x8] sm:$0xff]
    %v103 = vld [vmem:[#allocation8 + $0x10] sm:$0xff]
    %v104 = vld [vmem:[#allocation8 + $0x18] sm:$0xff]
    %v105 = vld [vmem:[#allocation8 + $0x20] sm:$0xff]
    %v106 = vld [vmem:[#allocation8 + $0x28] sm:$0xff]
    %v107 = vld [vmem:[%s5] sm:$0x1]
    %v108 = vld [vmem:[#allocation5] sm:$0x3]
    %vm109 = vcmask 130048
    %v110 = vsel %vm109, %v108, 0.0
    %v112 = vlaneseq
    %v113 = vshrl.u32 %v112, 7
    %v114 = vsub.s32 0, %v113
    %v115 = vrot.slane %v107, %v114
    %vm117 = vcmask 392192
    %v119 = vsel %vm117, %v110, 0
    %121 = vmatprep.subr.mxu0 0.0
    %122 = vmatpush1.msra.mxu0 %v101
    %123 = vmatprep.subr.mxu0 0.0
    %124 = vmatpush1.msra.mxu0 %v102
    %125 = vmatprep.subr.mxu0 0.0
    %126 = vmatpush1.msra.mxu0 %v103
    %127 = vmatprep.subr.mxu0 0.0
    %128 = vmatpush1.msra.mxu0 %v104
    %129 = vmatprep.subr.mxu0 0.0
    %130 = vmatpush1.msra.mxu0 %v105
    %131 = vmatprep.subr.mxu0 0.0
    %132 = vmatpush1.msra.mxu0 %v106
    %133 = vmatprep.subr.mxu0 0.0
    %134 = vmatpush1.msra.mxu0 0.0
    %135 = vmatprep.subr.mxu0 0.0
    %136 = vmatpush1.msra.mxu0 0.0
    %137 = vmatprep.subr.mxu0 0.0
    %138 = vmatpush1.msra.mxu0 0.0
    %139 = vmatprep.subr.mxu0 0.0
    %140 = vmatpush1.msra.mxu0 0.0
    %141 = vmatprep.subr.mxu0 0.0
    %142 = vmatpush1.msra.mxu0 0.0
    %143 = vmatprep.subr.mxu0 0.0
    %144 = vmatpush1.msra.mxu0 0.0
    %145 = vmatprep.subr.mxu0 0.0
    %146 = vmatpush1.msra.mxu0 0.0
    %147 = vmatprep.subr.mxu0 0.0
    %148 = vmatpush1.msra.mxu0 0.0
    %149 = vmatprep.subr.mxu0 0.0
    %150 = vmatpush1.msra.mxu0 0.0
    %151 = vmatprep.subr.mxu0 0.0
    %152 = vmatpush1.msra.mxu0 0.0
    %153 = vmatprep.subr.mxu0 0.0
    %154 = vmatpush1.msra.mxu0 0.0
    %155 = vmatprep.subr.mxu0 0.0
    %156 = vmatpush1.msra.mxu0 0.0
    %157 = vmatprep.subr.mxu0 0.0
    %158 = vmatpush1.msra.mxu0 0.0
    %159 = vmatprep.subr.mxu0 0.0
    %160 = vmatpush1.msra.mxu0 0.0
    %161 = vmatprep.subr.mxu0 0.0
    %162 = vmatpush1.msra.mxu0 0.0
    %163 = vmatprep.subr.mxu0 0.0
    %164 = vmatpush1.msra.mxu0 0.0
    %165 = vmatprep.subr.mxu0 0.0
    %166 = vmatpush1.msra.mxu0 0.0
    %167 = vmatprep.subr.mxu0 0.0
    %168 = vmatpush1.msra.mxu0 0.0
    %169 = vmatprep.subr.mxu0 0.0
    %170 = vmatpush1.msra.mxu0 0.0
    %171 = vmatprep.subr.mxu0 0.0
    %172 = vmatpush1.msra.mxu0 0.0
    %173 = vmatprep.subr.mxu0 0.0
    %174 = vmatpush1.msra.mxu0 0.0
    %175 = vmatprep.subr.mxu0 0.0
    %176 = vmatpush1.msra.mxu0 0.0
    %177 = vmatprep.subr.mxu0 0.0
    %178 = vmatpush1.msra.mxu0 0.0
    %179 = vmatprep.subr.mxu0 0.0
    %180 = vmatpush1.msra.mxu0 0.0
    %181 = vmatprep.subr.mxu0 0.0
    %182 = vmatpush1.msra.mxu0 0.0
    %183 = vmatprep.subr.mxu0 0.0
    %184 = vmatpush1.msra.mxu0 0.0
    %185 = vmatprep.mubr.f32.mxu0 0.0
    %186 = vmatmul.mubr.f32.gmra.mrb[0].mxu0 %v119
    %v187 = vpop.f32.mrb[0].mxu0
    %v188 = vadd.f32 %v115, %v187
    %v189 = vpop.f32.mrb[0].mxu0
    %190 = vdwg.mxu0
    %v191 = vxor.u32 %v188, 2147483648
    %v192 = vmul.f32 %v191, 1.442695
    %v193 = vpow.pop %v192
    %v194 = vadd.f32 %v193, 1.0
    %v195 = vrcp.pop %v194
    %v196 = vmul.f32 1.0, %v195
    %v197 = vtanh.pop %v188
    %v198 = vmul.f32 %v196, 0.0
    %200 = vrot.lane.b32.xlu0 %v197, 64
    %v201 = vpop.permute.xlu0 %200
    %v203 = vmul.f32 %v196, %v201
    %205 = vrot.lane.b32.xlu0 %v203, 32
    %v206 = vpop.permute.xlu0 %205
    %v208 = vadd.f32 %v198, %v206
    %v209 = vtanh.pop %v208
    %211 = vrot.lane.b32.xlu0 %v209, 64
    %v212 = vpop.permute.xlu0 %211
    %v214 = vmul.f32 %v196, %v212
    %216 = vrot.lane.b32.xlu0 %v214, 32
    %v217 = vpop.permute.xlu0 %216
    %vm219 = vcmask 254976
    %220 = vst.msk [vmem:[#allocation3] sm:$0x3] %vm219, %v217
    %s221 = scalar_lea.vmem [#allocation5], 2
    %v222 = vld [vmem:[%s221] sm:$0x3]
    %223 = vrot.lane.b32.xlu0 %v214, 48
    %v224 = vpop.permute.xlu0 %223
    %v226 = vsel %vm109, %v222, %v224
    %v228 = vsel %vm117, %v226, 0
    %230 = vmatprep.subr.mxu0 0.0
    %231 = vmatpush1.msra.mxu0 %v101
    %232 = vmatprep.subr.mxu0 0.0
    %233 = vmatpush1.msra.mxu0 %v102
    %234 = vmatprep.subr.mxu0 0.0
    %235 = vmatpush1.msra.mxu0 %v103
    %236 = vmatprep.subr.mxu0 0.0
    %237 = vmatpush1.msra.mxu0 %v104
    %238 = vmatprep.subr.mxu0 0.0
    %239 = vmatpush1.msra.mxu0 %v105
    %240 = vmatprep.subr.mxu0 0.0
    %241 = vmatpush1.msra.mxu0 %v106
    %242 = vmatprep.subr.mxu0 0.0
    %243 = vmatpush1.msra.mxu0 0.0
    %244 = vmatprep.subr.mxu0 0.0
    %245 = vmatpush1.msra.mxu0 0.0
    %246 = vmatprep.subr.mxu0 0.0
    %247 = vmatpush1.msra.mxu0 0.0
    %248 = vmatprep.subr.mxu0 0.0
    %249 = vmatpush1.msra.mxu0 0.0
    %250 = vmatprep.subr.mxu0 0.0
    %251 = vmatpush1.msra.mxu0 0.0
    %252 = vmatprep.subr.mxu0 0.0
    %253 = vmatpush1.msra.mxu0 0.0
    %254 = vmatprep.subr.mxu0 0.0
    %255 = vmatpush1.msra.mxu0 0.0
    %256 = vmatprep.subr.mxu0 0.0
    %257 = vmatpush1.msra.mxu0 0.0
    %258 = vmatprep.subr.mxu0 0.0
    %259 = vmatpush1.msra.mxu0 0.0
    %260 = vmatprep.subr.mxu0 0.0
    %261 = vmatpush1.msra.mxu0 0.0
    %262 = vmatprep.subr.mxu0 0.0
    %263 = vmatpush1.msra.mxu0 0.0
    %264 = vmatprep.subr.mxu0 0.0
    %265 = vmatpush1.msra.mxu0 0.0
    %266 = vmatprep.subr.mxu0 0.0
    %267 = vmatpush1.msra.mxu0 0.0
    %268 = vmatprep.subr.mxu0 0.0
    %269 = vmatpush1.msra.mxu0 0.0
    %270 = vmatprep.subr.mxu0 0.0
    %271 = vmatpush1.msra.mxu0 0.0
    %272 = vmatprep.subr.mxu0 0.0
    %273 = vmatpush1.msra.mxu0 0.0
    %274 = vmatprep.subr.mxu0 0.0
    %275 = vmatpush1.msra.mxu0 0.0
    %276 = vmatprep.subr.mxu0 0.0
    %277 = vmatpush1.msra.mxu0 0.0
    %278 = vmatprep.subr.mxu0 0.0
    %279 = vmatpush1.msra.mxu0 0.0
    %280 = vmatprep.subr.mxu0 0.0
    %281 = vmatpush1.msra.mxu0 0.0
    %282 = vmatprep.subr.mxu0 0.0
    %283 = vmatpush1.msra.mxu0 0.0
    %284 = vmatprep.subr.mxu0 0.0
    %285 = vmatpush1.msra.mxu0 0.0
    %286 = vmatprep.subr.mxu0 0.0
    %287 = vmatpush1.msra.mxu0 0.0
    %288 = vmatprep.subr.mxu0 0.0
    %289 = vmatpush1.msra.mxu0 0.0
    %290 = vmatprep.subr.mxu0 0.0
    %291 = vmatpush1.msra.mxu0 0.0
    %292 = vmatprep.subr.mxu0 0.0
    %293 = vmatpush1.msra.mxu0 0.0
    %294 = vmatprep.mubr.f32.mxu0 0.0
    %295 = vmatmul.mubr.f32.gmra.mrb[0].mxu0 %v228
    %v296 = vpop.f32.mrb[0].mxu0
    %v297 = vadd.f32 %v115, %v296
    %v298 = vpop.f32.mrb[0].mxu0
    %299 = vdwg.mxu0
    %v300 = vxor.u32 %v297, 2147483648
    %v301 = vmul.f32 %v300, 1.442695
    %v302 = vpow.pop %v301
    %v303 = vadd.f32 %v302, 1.0
    %v304 = vrcp.pop %v303
    %v305 = vmul.f32 1.0, %v304
    %v306 = vtanh.pop %v297
    %v307 = vmul.f32 %v305, %v208
    %309 = vrot.lane.b32.xlu0 %v306, 64
    %v310 = vpop.permute.xlu0 %309
    %v312 = vmul.f32 %v305, %v310
    %314 = vrot.lane.b32.xlu0 %v312, 32
    %v315 = vpop.permute.xlu0 %314
    %v317 = vadd.f32 %v307, %v315
    %v318 = vtanh.pop %v317
    %320 = vrot.lane.b32.xlu0 %v318, 64
    %v321 = vpop.permute.xlu0 %320
    %v323 = vmul.f32 %v305, %v321
    %325 = vrot.lane.b32.xlu0 %v323, 32
    %v326 = vpop.permute.xlu0 %325
    %s328 = scalar_lea.vmem [#allocation3], 2
    %329 = vst.msk [vmem:[%s328] sm:$0x3] %vm219, %v326
    %s330 = scalar_lea.vmem [#allocation5], 4
    %v331 = vld [vmem:[%s330] sm:$0x3]
    %332 = vrot.lane.b32.xlu0 %v323, 48
    %v333 = vpop.permute.xlu0 %332
    %v335 = vsel %vm109, %v331, %v333
    %v337 = vsel %vm117, %v335, 0
    %339 = vmatprep.subr.mxu0 0.0
    %340 = vmatpush1.msra.mxu0 %v101
    %341 = vmatprep.subr.mxu0 0.0
    %342 = vmatpush1.msra.mxu0 %v102
    %343 = vmatprep.subr.mxu0 0.0
    %344 = vmatpush1.msra.mxu0 %v103
    %345 = vmatprep.subr.mxu0 0.0
    %346 = vmatpush1.msra.mxu0 %v104
    %347 = vmatprep.subr.mxu0 0.0
    %348 = vmatpush1.msra.mxu0 %v105
    %349 = vmatprep.subr.mxu0 0.0
    %350 = vmatpush1.msra.mxu0 %v106
    %351 = vmatprep.subr.mxu0 0.0
    %352 = vmatpush1.msra.mxu0 0.0
    %353 = vmatprep.subr.mxu0 0.0
    %354 = vmatpush1.msra.mxu0 0.0
    %355 = vmatprep.subr.mxu0 0.0
    %356 = vmatpush1.msra.mxu0 0.0
    %357 = vmatprep.subr.mxu0 0.0
    %358 = vmatpush1.msra.mxu0 0.0
    %359 = vmatprep.subr.mxu0 0.0
    %360 = vmatpush1.msra.mxu0 0.0
    %361 = vmatprep.subr.mxu0 0.0
    %362 = vmatpush1.msra.mxu0 0.0
    %363 = vmatprep.subr.mxu0 0.0
    %364 = vmatpush1.msra.mxu0 0.0
    %365 = vmatprep.subr.mxu0 0.0
    %366 = vmatpush1.msra.mxu0 0.0
    %367 = vmatprep.subr.mxu0 0.0
    %368 = vmatpush1.msra.mxu0 0.0
    %369 = vmatprep.subr.mxu0 0.0
    %370 = vmatpush1.msra.mxu0 0.0
    %371 = vmatprep.subr.mxu0 0.0
    %372 = vmatpush1.msra.mxu0 0.0
    %373 = vmatprep.subr.mxu0 0.0
    %374 = vmatpush1.msra.mxu0 0.0
    %375 = vmatprep.subr.mxu0 0.0
    %376 = vmatpush1.msra.mxu0 0.0
    %377 = vmatprep.subr.mxu0 0.0
    %378 = vmatpush1.msra.mxu0 0.0
    %379 = vmatprep.subr.mxu0 0.0
    %380 = vmatpush1.msra.mxu0 0.0
    %381 = vmatprep.subr.mxu0 0.0
    %382 = vmatpush1.msra.mxu0 0.0
    %383 = vmatprep.subr.mxu0 0.0
    %384 = vmatpush1.msra.mxu0 0.0
    %385 = vmatprep.subr.mxu0 0.0
    %386 = vmatpush1.msra.mxu0 0.0
    %387 = vmatprep.subr.mxu0 0.0
    %388 = vmatpush1.msra.mxu0 0.0
    %389 = vmatprep.subr.mxu0 0.0
    %390 = vmatpush1.msra.mxu0 0.0
    %391 = vmatprep.subr.mxu0 0.0
    %392 = vmatpush1.msra.mxu0 0.0
    %393 = vmatprep.subr.mxu0 0.0
    %394 = vmatpush1.msra.mxu0 0.0
    %395 = vmatprep.subr.mxu0 0.0
    %396 = vmatpush1.msra.mxu0 0.0
    %397 = vmatprep.subr.mxu0 0.0
    %398 = vmatpush1.msra.mxu0 0.0
    %399 = vmatprep.subr.mxu0 0.0
    %400 = vmatpush1.msra.mxu0 0.0
    %401 = vmatprep.subr.mxu0 0.0
    %402 = vmatpush1.msra.mxu0 0.0
    %403 = vmatprep.mubr.f32.mxu0 0.0
    %404 = vmatmul.mubr.f32.gmra.mrb[0].mxu0 %v337
    %v405 = vpop.f32.mrb[0].mxu0
    %v406 = vadd.f32 %v115, %v405
    %v407 = vpop.f32.mrb[0].mxu0
    %408 = vdwg.mxu0
    %v409 = vxor.u32 %v406, 2147483648
    %v410 = vmul.f32 %v409, 1.442695
    %v411 = vpow.pop %v410
    %v412 = vadd.f32 %v411, 1.0
    %v413 = vrcp.pop %v412
    %v414 = vmul.f32 1.0, %v413
    %v415 = vtanh.pop %v406
    %v416 = vmul.f32 %v414, %v317
    %418 = vrot.lane.b32.xlu0 %v415, 64
    %v419 = vpop.permute.xlu0 %418
    %v421 = vmul.f32 %v414, %v419
    %423 = vrot.lane.b32.xlu0 %v421, 32
    %v424 = vpop.permute.xlu0 %423
    %v426 = vadd.f32 %v416, %v424
    %v427 = vtanh.pop %v426
    %429 = vrot.lane.b32.xlu0 %v427, 64
    %v430 = vpop.permute.xlu0 %429
    %v432 = vmul.f32 %v414, %v430
    %434 = vrot.lane.b32.xlu0 %v432, 32
    %v435 = vpop.permute.xlu0 %434
    %s437 = scalar_lea.vmem [#allocation3], 4
    %438 = vst.msk [vmem:[%s437] sm:$0x3] %vm219, %v435
    %s439 = scalar_lea.vmem [#allocation5], 6
    %v440 = vld [vmem:[%s439] sm:$0x3]
    %441 = vrot.lane.b32.xlu0 %v432, 48
    %v442 = vpop.permute.xlu0 %441
    %v444 = vsel %vm109, %v440, %v442
    %v446 = vsel %vm117, %v444, 0
    %448 = vmatprep.subr.mxu0 0.0
    %449 = vmatpush1.msra.mxu0 %v101
    %450 = vmatprep.subr.mxu0 0.0
    %451 = vmatpush1.msra.mxu0 %v102
    %452 = vmatprep.subr.mxu0 0.0
    %453 = vmatpush1.msra.mxu0 %v103
    %454 = vmatprep.subr.mxu0 0.0
    %455 = vmatpush1.msra.mxu0 %v104
    %456 = vmatprep.subr.mxu0 0.0
    %457 = vmatpush1.msra.mxu0 %v105
    %458 = vmatprep.subr.mxu0 0.0
    %459 = vmatpush1.msra.mxu0 %v106
    %460 = vmatprep.subr.mxu0 0.0
    %461 = vmatpush1.msra.mxu0 0.0
    %462 = vmatprep.subr.mxu0 0.0
    %463 = vmatpush1.msra.mxu0 0.0
    %464 = vmatprep.subr.mxu0 0.0
    %465 = vmatpush1.msra.mxu0 0.0
    %466 = vmatprep.subr.mxu0 0.0
    %467 = vmatpush1.msra.mxu0 0.0
    %468 = vmatprep.subr.mxu0 0.0
    %469 = vmatpush1.msra.mxu0 0.0
    %470 = vmatprep.subr.mxu0 0.0
    %471 = vmatpush1.msra.mxu0 0.0
    %472 = vmatprep.subr.mxu0 0.0
    %473 = vmatpush1.msra.mxu0 0.0
    %474 = vmatprep.subr.mxu0 0.0
    %475 = vmatpush1.msra.mxu0 0.0
    %476 = vmatprep.subr.mxu0 0.0
    %477 = vmatpush1.msra.mxu0 0.0
    %478 = vmatprep.subr.mxu0 0.0
    %479 = vmatpush1.msra.mxu0 0.0
    %480 = vmatprep.subr.mxu0 0.0
    %481 = vmatpush1.msra.mxu0 0.0
    %482 = vmatprep.subr.mxu0 0.0
    %483 = vmatpush1.msra.mxu0 0.0
    %484 = vmatprep.subr.mxu0 0.0
    %485 = vmatpush1.msra.mxu0 0.0
    %486 = vmatprep.subr.mxu0 0.0
    %487 = vmatpush1.msra.mxu0 0.0
    %488 = vmatprep.subr.mxu0 0.0
    %489 = vmatpush1.msra.mxu0 0.0
    %490 = vmatprep.subr.mxu0 0.0
    %491 = vmatpush1.msra.mxu0 0.0
    %492 = vmatprep.subr.mxu0 0.0
    %493 = vmatpush1.msra.mxu0 0.0
    %494 = vmatprep.subr.mxu0 0.0
    %495 = vmatpush1.msra.mxu0 0.0
    %496 = vmatprep.subr.mxu0 0.0
    %497 = vmatpush1.msra.mxu0 0.0
    %498 = vmatprep.subr.mxu0 0.0
    %499 = vmatpush1.msra.mxu0 0.0
    %500 = vmatprep.subr.mxu0 0.0
    %501 = vmatpush1.msra.mxu0 0.0
    %502 = vmatprep.subr.mxu0 0.0
    %503 = vmatpush1.msra.mxu0 0.0
    %504 = vmatprep.subr.mxu0 0.0
    %505 = vmatpush1.msra.mxu0 0.0
    %506 = vmatprep.subr.mxu0 0.0
    %507 = vmatpush1.msra.mxu0 0.0
    %508 = vmatprep.subr.mxu0 0.0
    %509 = vmatpush1.msra.mxu0 0.0
    %510 = vmatprep.subr.mxu0 0.0
    %511 = vmatpush1.msra.mxu0 0.0
    %512 = vmatprep.mubr.f32.mxu0 0.0
    %513 = vmatmul.mubr.f32.gmra.mrb[0].mxu0 %v446
    %v514 = vpop.f32.mrb[0].mxu0
    %v515 = vadd.f32 %v115, %v514
    %v516 = vpop.f32.mrb[0].mxu0
    %517 = vdwg.mxu0
    %v518 = vxor.u32 %v515, 2147483648
    %v519 = vmul.f32 %v518, 1.442695
    %v520 = vpow.pop %v519
    %v521 = vadd.f32 %v520, 1.0
    %v522 = vrcp.pop %v521
    %v523 = vmul.f32 1.0, %v522
    %v524 = vtanh.pop %v515
    %v525 = vmul.f32 %v523, %v426
    %527 = vrot.lane.b32.xlu0 %v524, 64
    %v528 = vpop.permute.xlu0 %527
    %v530 = vmul.f32 %v523, %v528
    %532 = vrot.lane.b32.xlu0 %v530, 32
    %v533 = vpop.permute.xlu0 %532
    %v535 = vadd.f32 %v525, %v533
    %v536 = vtanh.pop %v535
    %538 = vrot.lane.b32.xlu0 %v536, 64
    %v539 = vpop.permute.xlu0 %538
    %v541 = vmul.f32 %v523, %v539
    %543 = vrot.lane.b32.xlu0 %v541, 32
    %v544 = vpop.permute.xlu0 %543
    %s546 = scalar_lea.vmem [#allocation3], 6
    %547 = vst.msk [vmem:[%s546] sm:$0x3] %vm219, %v544
    %s548 = scalar_lea.vmem [#allocation5], 8
    %v549 = vld [vmem:[%s548] sm:$0x3]
    %550 = vrot.lane.b32.xlu0 %v541, 48
    %v551 = vpop.permute.xlu0 %550
    %v553 = vsel %vm109, %v549, %v551
    %v555 = vsel %vm117, %v553, 0
    %557 = vmatprep.subr.mxu0 0.0
    %558 = vmatpush1.msra.mxu0 %v101
    %559 = vmatprep.subr.mxu0 0.0
    %560 = vmatpush1.msra.mxu0 %v102
    %561 = vmatprep.subr.mxu0 0.0
    %562 = vmatpush1.msra.mxu0 %v103
    %563 = vmatprep.subr.mxu0 0.0
    %564 = vmatpush1.msra.mxu0 %v104
    %565 = vmatprep.subr.mxu0 0.0
    %566 = vmatpush1.msra.mxu0 %v105
    %567 = vmatprep.subr.mxu0 0.0
    %568 = vmatpush1.msra.mxu0 %v106
    %569 = vmatprep.subr.mxu0 0.0
    %570 = vmatpush1.msra.mxu0 0.0
    %571 = vmatprep.subr.mxu0 0.0
    %572 = vmatpush1.msra.mxu0 0.0
    %573 = vmatprep.subr.mxu0 0.0
    %574 = vmatpush1.msra.mxu0 0.0
    %575 = vmatprep.subr.mxu0 0.0
    %576 = vmatpush1.msra.mxu0 0.0
    %577 = vmatprep.subr.mxu0 0.0
    %578 = vmatpush1.msra.mxu0 0.0
    %579 = vmatprep.subr.mxu0 0.0
    %580 = vmatpush1.msra.mxu0 0.0
    %581 = vmatprep.subr.mxu0 0.0
    %582 = vmatpush1.msra.mxu0 0.0
    %583 = vmatprep.subr.mxu0 0.0
    %584 = vmatpush1.msra.mxu0 0.0
    %585 = vmatprep.subr.mxu0 0.0
    %586 = vmatpush1.msra.mxu0 0.0
    %587 = vmatprep.subr.mxu0 0.0
    %588 = vmatpush1.msra.mxu0 0.0
    %589 = vmatprep.subr.mxu0 0.0
    %590 = vmatpush1.msra.mxu0 0.0
    %591 = vmatprep.subr.mxu0 0.0
    %592 = vmatpush1.msra.mxu0 0.0
    %593 = vmatprep.subr.mxu0 0.0
    %594 = vmatpush1.msra.mxu0 0.0
    %595 = vmatprep.subr.mxu0 0.0
    %596 = vmatpush1.msra.mxu0 0.0
    %597 = vmatprep.subr.mxu0 0.0
    %598 = vmatpush1.msra.mxu0 0.0
    %599 = vmatprep.subr.mxu0 0.0
    %600 = vmatpush1.msra.mxu0 0.0
    %601 = vmatprep.subr.mxu0 0.0
    %602 = vmatpush1.msra.mxu0 0.0
    %603 = vmatprep.subr.mxu0 0.0
    %604 = vmatpush1.msra.mxu0 0.0
    %605 = vmatprep.subr.mxu0 0.0
    %606 = vmatpush1.msra.mxu0 0.0
    %607 = vmatprep.subr.mxu0 0.0
    %608 = vmatpush1.msra.mxu0 0.0
    %609 = vmatprep.subr.mxu0 0.0
    %610 = vmatpush1.msra.mxu0 0.0
    %611 = vmatprep.subr.mxu0 0.0
    %612 = vmatpush1.msra.mxu0 0.0
    %613 = vmatprep.subr.mxu0 0.0
    %614 = vmatpush1.msra.mxu0 0.0
    %615 = vmatprep.subr.mxu0 0.0
    %616 = vmatpush1.msra.mxu0 0.0
    %617 = vmatprep.subr.mxu0 0.0
    %618 = vmatpush1.msra.mxu0 0.0
    %619 = vmatprep.subr.mxu0 0.0
    %620 = vmatpush1.msra.mxu0 0.0
    %621 = vmatprep.mubr.f32.mxu0 0.0
    %622 = vmatmul.mubr.f32.gmra.mrb[0].mxu0 %v555
    %v623 = vpop.f32.mrb[0].mxu0
    %v624 = vadd.f32 %v115, %v623
    %v625 = vpop.f32.mrb[0].mxu0
    %626 = vdwg.mxu0
    %v627 = vxor.u32 %v624, 2147483648
    %v628 = vmul.f32 %v627, 1.442695
    %v629 = vpow.pop %v628
    %v630 = vadd.f32 %v629, 1.0
    %v631 = vrcp.pop %v630
    %v632 = vmul.f32 1.0, %v631
    %v633 = vtanh.pop %v624
    %v634 = vmul.f32 %v632, %v535
    %636 = vrot.lane.b32.xlu0 %v633, 64
    %v637 = vpop.permute.xlu0 %636
    %v639 = vmul.f32 %v632, %v637
    %641 = vrot.lane.b32.xlu0 %v639, 32
    %v642 = vpop.permute.xlu0 %641
    %v644 = vadd.f32 %v634, %v642
    %v645 = vtanh.pop %v644
    %647 = vrot.lane.b32.xlu0 %v645, 64
    %v648 = vpop.permute.xlu0 %647
    %v650 = vmul.f32 %v632, %v648
    %652 = vrot.lane.b32.xlu0 %v650, 32
    %v653 = vpop.permute.xlu0 %652
    %s655 = scalar_lea.vmem [#allocation3], 8
    %656 = vst.msk [vmem:[%s655] sm:$0x3] %vm219, %v653
    %s657 = scalar_lea.vmem [#allocation5], 10
    %v658 = vld [vmem:[%s657] sm:$0x3]
    %659 = vrot.lane.b32.xlu0 %v650, 48
    %v660 = vpop.permute.xlu0 %659
    %v662 = vsel %vm109, %v658, %v660
    %v664 = vsel %vm117, %v662, 0
    %666 = vmatprep.subr.mxu0 0.0
    %667 = vmatpush1.msra.mxu0 %v101
    %668 = vmatprep.subr.mxu0 0.0
    %669 = vmatpush1.msra.mxu0 %v102
    %670 = vmatprep.subr.mxu0 0.0
    %671 = vmatpush1.msra.mxu0 %v103
    %672 = vmatprep.subr.mxu0 0.0
    %673 = vmatpush1.msra.mxu0 %v104
    %674 = vmatprep.subr.mxu0 0.0
    %675 = vmatpush1.msra.mxu0 %v105
    %676 = vmatprep.subr.mxu0 0.0
    %677 = vmatpush1.msra.mxu0 %v106
    %678 = vmatprep.subr.mxu0 0.0
    %679 = vmatpush1.msra.mxu0 0.0
    %680 = vmatprep.subr.mxu0 0.0
    %681 = vmatpush1.msra.mxu0 0.0
    %682 = vmatprep.subr.mxu0 0.0
    %683 = vmatpush1.msra.mxu0 0.0
    %684 = vmatprep.subr.mxu0 0.0
    %685 = vmatpush1.msra.mxu0 0.0
    %686 = vmatprep.subr.mxu0 0.0
    %687 = vmatpush1.msra.mxu0 0.0
    %688 = vmatprep.subr.mxu0 0.0
    %689 = vmatpush1.msra.mxu0 0.0
    %690 = vmatprep.subr.mxu0 0.0
    %691 = vmatpush1.msra.mxu0 0.0
    %692 = vmatprep.subr.mxu0 0.0
    %693 = vmatpush1.msra.mxu0 0.0
    %694 = vmatprep.subr.mxu0 0.0
    %695 = vmatpush1.msra.mxu0 0.0
    %696 = vmatprep.subr.mxu0 0.0
    %697 = vmatpush1.msra.mxu0 0.0
    %698 = vmatprep.subr.mxu0 0.0
    %699 = vmatpush1.msra.mxu0 0.0
    %700 = vmatprep.subr.mxu0 0.0
    %701 = vmatpush1.msra.mxu0 0.0
    %702 = vmatprep.subr.mxu0 0.0
    %703 = vmatpush1.msra.mxu0 0.0
    %704 = vmatprep.subr.mxu0 0.0
    %705 = vmatpush1.msra.mxu0 0.0
    %706 = vmatprep.subr.mxu0 0.0
    %707 = vmatpush1.msra.mxu0 0.0
    %708 = vmatprep.subr.mxu0 0.0
    %709 = vmatpush1.msra.mxu0 0.0
    %710 = vmatprep.subr.mxu0 0.0
    %711 = vmatpush1.msra.mxu0 0.0
    %712 = vmatprep.subr.mxu0 0.0
    %713 = vmatpush1.msra.mxu0 0.0
    %714 = vmatprep.subr.mxu0 0.0
    %715 = vmatpush1.msra.mxu0 0.0
    %716 = vmatprep.subr.mxu0 0.0
    %717 = vmatpush1.msra.mxu0 0.0
    %718 = vmatprep.subr.mxu0 0.0
    %719 = vmatpush1.msra.mxu0 0.0
    %720 = vmatprep.subr.mxu0 0.0
    %721 = vmatpush1.msra.mxu0 0.0
    %722 = vmatprep.subr.mxu0 0.0
    %723 = vmatpush1.msra.mxu0 0.0
    %724 = vmatprep.subr.mxu0 0.0
    %725 = vmatpush1.msra.mxu0 0.0
    %726 = vmatprep.subr.mxu0 0.0
    %727 = vmatpush1.msra.mxu0 0.0
    %728 = vmatprep.subr.mxu0 0.0
    %729 = vmatpush1.msra.mxu0 0.0
    %730 = vmatprep.mubr.f32.mxu0 0.0
    %731 = vmatmul.mubr.f32.gmra.mrb[0].mxu0 %v664
    %v732 = vpop.f32.mrb[0].mxu0
    %v733 = vadd.f32 %v115, %v732
    %v734 = vpop.f32.mrb[0].mxu0
    %735 = vdwg.mxu0
    %v736 = vxor.u32 %v733, 2147483648
    %v737 = vmul.f32 %v736, 1.442695
    %v738 = vpow.pop %v737
    %v739 = vadd.f32 %v738, 1.0
    %v740 = vrcp.pop %v739
    %v741 = vmul.f32 1.0, %v740
    %v742 = vtanh.pop %v733
    %v743 = vmul.f32 %v741, %v644
    %745 = vrot.lane.b32.xlu0 %v742, 64
    %v746 = vpop.permute.xlu0 %745
    %v748 = vmul.f32 %v741, %v746
    %750 = vrot.lane.b32.xlu0 %v748, 32
    %v751 = vpop.permute.xlu0 %750
    %v753 = vadd.f32 %v743, %v751
    %v754 = vtanh.pop %v753
    %756 = vrot.lane.b32.xlu0 %v754, 64
    %v757 = vpop.permute.xlu0 %756
    %v759 = vmul.f32 %v741, %v757
    %761 = vrot.lane.b32.xlu0 %v759, 32
    %v762 = vpop.permute.xlu0 %761
    %s764 = scalar_lea.vmem [#allocation3], 10
    %765 = vst.msk [vmem:[%s764] sm:$0x3] %vm219, %v762
    %s766 = scalar_lea.vmem [#allocation5], 12
    %v767 = vld [vmem:[%s766] sm:$0x3]
    %768 = vrot.lane.b32.xlu0 %v759, 48
    %v769 = vpop.permute.xlu0 %768
    %v771 = vsel %vm109, %v767, %v769
    %v773 = vsel %vm117, %v771, 0
    %775 = vmatprep.subr.mxu0 0.0
    %776 = vmatpush1.msra.mxu0 %v101
    %777 = vmatprep.subr.mxu0 0.0
    %778 = vmatpush1.msra.mxu0 %v102
    %779 = vmatprep.subr.mxu0 0.0
    %780 = vmatpush1.msra.mxu0 %v103
    %781 = vmatprep.subr.mxu0 0.0
    %782 = vmatpush1.msra.mxu0 %v104
    %783 = vmatprep.subr.mxu0 0.0
    %784 = vmatpush1.msra.mxu0 %v105
    %785 = vmatprep.subr.mxu0 0.0
    %786 = vmatpush1.msra.mxu0 %v106
    %787 = vmatprep.subr.mxu0 0.0
    %788 = vmatpush1.msra.mxu0 0.0
    %789 = vmatprep.subr.mxu0 0.0
    %790 = vmatpush1.msra.mxu0 0.0
    %791 = vmatprep.subr.mxu0 0.0
    %792 = vmatpush1.msra.mxu0 0.0
    %793 = vmatprep.subr.mxu0 0.0
    %794 = vmatpush1.msra.mxu0 0.0
    %795 = vmatprep.subr.mxu0 0.0
    %796 = vmatpush1.msra.mxu0 0.0
    %797 = vmatprep.subr.mxu0 0.0
    %798 = vmatpush1.msra.mxu0 0.0
    %799 = vmatprep.subr.mxu0 0.0
    %800 = vmatpush1.msra.mxu0 0.0
    %801 = vmatprep.subr.mxu0 0.0
    %802 = vmatpush1.msra.mxu0 0.0
    %803 = vmatprep.subr.mxu0 0.0
    %804 = vmatpush1.msra.mxu0 0.0
    %805 = vmatprep.subr.mxu0 0.0
    %806 = vmatpush1.msra.mxu0 0.0
    %807 = vmatprep.subr.mxu0 0.0
    %808 = vmatpush1.msra.mxu0 0.0
    %809 = vmatprep.subr.mxu0 0.0
    %810 = vmatpush1.msra.mxu0 0.0
    %811 = vmatprep.subr.mxu0 0.0
    %812 = vmatpush1.msra.mxu0 0.0
    %813 = vmatprep.subr.mxu0 0.0
    %814 = vmatpush1.msra.mxu0 0.0
    %815 = vmatprep.subr.mxu0 0.0
    %816 = vmatpush1.msra.mxu0 0.0
    %817 = vmatprep.subr.mxu0 0.0
    %818 = vmatpush1.msra.mxu0 0.0
    %819 = vmatprep.subr.mxu0 0.0
    %820 = vmatpush1.msra.mxu0 0.0
    %821 = vmatprep.subr.mxu0 0.0
    %822 = vmatpush1.msra.mxu0 0.0
    %823 = vmatprep.subr.mxu0 0.0
    %824 = vmatpush1.msra.mxu0 0.0
    %825 = vmatprep.subr.mxu0 0.0
    %826 = vmatpush1.msra.mxu0 0.0
    %827 = vmatprep.subr.mxu0 0.0
    %828 = vmatpush1.msra.mxu0 0.0
    %829 = vmatprep.subr.mxu0 0.0
    %830 = vmatpush1.msra.mxu0 0.0
    %831 = vmatprep.subr.mxu0 0.0
    %832 = vmatpush1.msra.mxu0 0.0
    %833 = vmatprep.subr.mxu0 0.0
    %834 = vmatpush1.msra.mxu0 0.0
    %835 = vmatprep.subr.mxu0 0.0
    %836 = vmatpush1.msra.mxu0 0.0
    %837 = vmatprep.subr.mxu0 0.0
    %838 = vmatpush1.msra.mxu0 0.0
    %839 = vmatprep.mubr.f32.mxu0 0.0
    %840 = vmatmul.mubr.f32.gmra.mrb[0].mxu0 %v773
    %v841 = vpop.f32.mrb[0].mxu0
    %v842 = vadd.f32 %v115, %v841
    %v843 = vpop.f32.mrb[0].mxu0
    %844 = vdwg.mxu0
    %v845 = vxor.u32 %v842, 2147483648
    %v846 = vmul.f32 %v845, 1.442695
    %v847 = vpow.pop %v846
    %v848 = vadd.f32 %v847, 1.0
    %v849 = vrcp.pop %v848
    %v850 = vmul.f32 1.0, %v849
    %v851 = vtanh.pop %v842
    %v852 = vmul.f32 %v850, %v753
    %854 = vrot.lane.b32.xlu0 %v851, 64
    %v855 = vpop.permute.xlu0 %854
    %v857 = vmul.f32 %v850, %v855
    %859 = vrot.lane.b32.xlu0 %v857, 32
    %v860 = vpop.permute.xlu0 %859
    %v862 = vadd.f32 %v852, %v860
    %v863 = vtanh.pop %v862
    %865 = vrot.lane.b32.xlu0 %v863, 64
    %v866 = vpop.permute.xlu0 %865
    %v868 = vmul.f32 %v850, %v866
    %870 = vrot.lane.b32.xlu0 %v868, 32
    %v871 = vpop.permute.xlu0 %870
    %s873 = scalar_lea.vmem [#allocation3], 12
    %874 = vst.msk [vmem:[%s873] sm:$0x3] %vm219, %v871
    %s875 = scalar_lea.vmem [#allocation5], 14
    %v876 = vld [vmem:[%s875] sm:$0x3]
    %877 = vrot.lane.b32.xlu0 %v868, 48
    %v878 = vpop.permute.xlu0 %877
    %v880 = vsel %vm109, %v876, %v878
    %v882 = vsel %vm117, %v880, 0
    %884 = vmatprep.subr.mxu0 0.0
    %885 = vmatpush1.msra.mxu0 %v101
    %886 = vmatprep.subr.mxu0 0.0
    %887 = vmatpush1.msra.mxu0 %v102
    %888 = vmatprep.subr.mxu0 0.0
    %889 = vmatpush1.msra.mxu0 %v103
    %890 = vmatprep.subr.mxu0 0.0
    %891 = vmatpush1.msra.mxu0 %v104
    %892 = vmatprep.subr.mxu0 0.0
    %893 = vmatpush1.msra.mxu0 %v105
    %894 = vmatprep.subr.mxu0 0.0
    %895 = vmatpush1.msra.mxu0 %v106
    %896 = vmatprep.subr.mxu0 0.0
    %897 = vmatpush1.msra.mxu0 0.0
    %898 = vmatprep.subr.mxu0 0.0
    %899 = vmatpush1.msra.mxu0 0.0
    %900 = vmatprep.subr.mxu0 0.0
    %901 = vmatpush1.msra.mxu0 0.0
    %902 = vmatprep.subr.mxu0 0.0
    %903 = vmatpush1.msra.mxu0 0.0
    %904 = vmatprep.subr.mxu0 0.0
    %905 = vmatpush1.msra.mxu0 0.0
    %906 = vmatprep.subr.mxu0 0.0
    %907 = vmatpush1.msra.mxu0 0.0
    %908 = vmatprep.subr.mxu0 0.0
    %909 = vmatpush1.msra.mxu0 0.0
    %910 = vmatprep.subr.mxu0 0.0
    %911 = vmatpush1.msra.mxu0 0.0
    %912 = vmatprep.subr.mxu0 0.0
    %913 = vmatpush1.msra.mxu0 0.0
    %914 = vmatprep.subr.mxu0 0.0
    %915 = vmatpush1.msra.mxu0 0.0
    %916 = vmatprep.subr.mxu0 0.0
    %917 = vmatpush1.msra.mxu0 0.0
    %918 = vmatprep.subr.mxu0 0.0
    %919 = vmatpush1.msra.mxu0 0.0
    %920 = vmatprep.subr.mxu0 0.0
    %921 = vmatpush1.msra.mxu0 0.0
    %922 = vmatprep.subr.mxu0 0.0
    %923 = vmatpush1.msra.mxu0 0.0
    %924 = vmatprep.subr.mxu0 0.0
    %925 = vmatpush1.msra.mxu0 0.0
    %926 = vmatprep.subr.mxu0 0.0
    %927 = vmatpush1.msra.mxu0 0.0
    %928 = vmatprep.subr.mxu0 0.0
    %929 = vmatpush1.msra.mxu0 0.0
    %930 = vmatprep.subr.mxu0 0.0
    %931 = vmatpush1.msra.mxu0 0.0
    %932 = vmatprep.subr.mxu0 0.0
    %933 = vmatpush1.msra.mxu0 0.0
    %934 = vmatprep.subr.mxu0 0.0
    %935 = vmatpush1.msra.mxu0 0.0
    %936 = vmatprep.subr.mxu0 0.0
    %937 = vmatpush1.msra.mxu0 0.0
    %938 = vmatprep.subr.mxu0 0.0
    %939 = vmatpush1.msra.mxu0 0.0
    %940 = vmatprep.subr.mxu0 0.0
    %941 = vmatpush1.msra.mxu0 0.0
    %942 = vmatprep.subr.mxu0 0.0
    %943 = vmatpush1.msra.mxu0 0.0
    %944 = vmatprep.subr.mxu0 0.0
    %945 = vmatpush1.msra.mxu0 0.0
    %946 = vmatprep.subr.mxu0 0.0
    %947 = vmatpush1.msra.mxu0 0.0
    %948 = vmatprep.mubr.f32.mxu0 0.0
    %949 = vmatmul.mubr.f32.gmra.mrb[0].mxu0 %v882
    %v950 = vpop.f32.mrb[0].mxu0
    %v951 = vadd.f32 %v115, %v950
    %v952 = vpop.f32.mrb[0].mxu0
    %953 = vdwg.mxu0
    %v954 = vxor.u32 %v951, 2147483648
    %v955 = vmul.f32 %v954, 1.442695
    %v956 = vpow.pop %v955
    %v957 = vadd.f32 %v956, 1.0
    %v958 = vrcp.pop %v957
    %v959 = vmul.f32 1.0, %v958
    %v960 = vtanh.pop %v951
    %v961 = vmul.f32 %v959, %v862
    %963 = vrot.lane.b32.xlu0 %v960, 64
    %v964 = vpop.permute.xlu0 %963
    %v966 = vmul.f32 %v959, %v964
    %968 = vrot.lane.b32.xlu0 %v966, 32
    %v969 = vpop.permute.xlu0 %968
    %v971 = vadd.f32 %v961, %v969
    %v972 = vtanh.pop %v971
    %974 = vrot.lane.b32.xlu0 %v972, 64
    %v975 = vpop.permute.xlu0 %974
    %v977 = vmul.f32 %v959, %v975
    %979 = vrot.lane.b32.xlu0 %v977, 32
    %v980 = vpop.permute.xlu0 %979
    %s982 = scalar_lea.vmem [#allocation3], 14
    %983 = vst.msk [vmem:[%s982] sm:$0x3] %vm219, %v980
    %v984 = vld [vmem:[#allocation10] sm:$0xff]
    %v985 = vld [vmem:[#allocation10 + $0x8] sm:$0xff]
    %v986 = vld [vmem:[#allocation10 + $0x10] sm:$0xff]
    %v987 = vld [vmem:[#allocation10 + $0x18] sm:$0xff]
    %v988 = vld [vmem:[#allocation10 + $0x20] sm:$0xff]
    %v989 = vld [vmem:[#allocation10 + $0x28] sm:$0xff]
    %v990 = vld [vmem:[%s6] sm:$0x1]
    %v991 = vld [vmem:[%s875] sm:$0x3]
    %v992 = vsel %vm109, %v991, 0.0
    %v994 = vlaneseq
    %v995 = vshrl.u32 %v994, 7
    %v996 = vsub.s32 0, %v995
    %v997 = vrot.slane %v990, %v996
    %v1000 = vsel %vm117, %v992, 0
    %1002 = vmatprep.subr.mxu0 0.0
    %1003 = vmatpush1.msra.mxu0 %v984
    %1004 = vmatprep.subr.mxu0 0.0
    %1005 = vmatpush1.msra.mxu0 %v985
    %1006 = vmatprep.subr.mxu0 0.0
    %1007 = vmatpush1.msra.mxu0 %v986
    %1008 = vmatprep.subr.mxu0 0.0
    %1009 = vmatpush1.msra.mxu0 %v987
    %1010 = vmatprep.subr.mxu0 0.0
    %1011 = vmatpush1.msra.mxu0 %v988
    %1012 = vmatprep.subr.mxu0 0.0
    %1013 = vmatpush1.msra.mxu0 %v989
    %1014 = vmatprep.subr.mxu0 0.0
    %1015 = vmatpush1.msra.mxu0 0.0
    %1016 = vmatprep.subr.mxu0 0.0
    %1017 = vmatpush1.msra.mxu0 0.0
    %1018 = vmatprep.subr.mxu0 0.0
    %1019 = vmatpush1.msra.mxu0 0.0
    %1020 = vmatprep.subr.mxu0 0.0
    %1021 = vmatpush1.msra.mxu0 0.0
    %1022 = vmatprep.subr.mxu0 0.0
    %1023 = vmatpush1.msra.mxu0 0.0
    %1024 = vmatprep.subr.mxu0 0.0
    %1025 = vmatpush1.msra.mxu0 0.0
    %1026 = vmatprep.subr.mxu0 0.0
    %1027 = vmatpush1.msra.mxu0 0.0
    %1028 = vmatprep.subr.mxu0 0.0
    %1029 = vmatpush1.msra.mxu0 0.0
    %1030 = vmatprep.subr.mxu0 0.0
    %1031 = vmatpush1.msra.mxu0 0.0
    %1032 = vmatprep.subr.mxu0 0.0
    %1033 = vmatpush1.msra.mxu0 0.0
    %1034 = vmatprep.subr.mxu0 0.0
    %1035 = vmatpush1.msra.mxu0 0.0
    %1036 = vmatprep.subr.mxu0 0.0
    %1037 = vmatpush1.msra.mxu0 0.0
    %1038 = vmatprep.subr.mxu0 0.0
    %1039 = vmatpush1.msra.mxu0 0.0
    %1040 = vmatprep.subr.mxu0 0.0
    %1041 = vmatpush1.msra.mxu0 0.0
    %1042 = vmatprep.subr.mxu0 0.0
    %1043 = vmatpush1.msra.mxu0 0.0
    %1044 = vmatprep.subr.mxu0 0.0
    %1045 = vmatpush1.msra.mxu0 0.0
    %1046 = vmatprep.subr.mxu0 0.0
    %1047 = vmatpush1.msra.mxu0 0.0
    %1048 = vmatprep.subr.mxu0 0.0
    %1049 = vmatpush1.msra.mxu0 0.0
    %1050 = vmatprep.subr.mxu0 0.0
    %1051 = vmatpush1.msra.mxu0 0.0
    %1052 = vmatprep.subr.mxu0 0.0
    %1053 = vmatpush1.msra.mxu0 0.0
    %1054 = vmatprep.subr.mxu0 0.0
    %1055 = vmatpush1.msra.mxu0 0.0
    %1056 = vmatprep.subr.mxu0 0.0
    %1057 = vmatpush1.msra.mxu0 0.0
    %1058 = vmatprep.subr.mxu0 0.0
    %1059 = vmatpush1.msra.mxu0 0.0
    %1060 = vmatprep.subr.mxu0 0.0
    %1061 = vmatpush1.msra.mxu0 0.0
    %1062 = vmatprep.subr.mxu0 0.0
    %1063 = vmatpush1.msra.mxu0 0.0
    %1064 = vmatprep.subr.mxu0 0.0
    %1065 = vmatpush1.msra.mxu0 0.0
    %1066 = vmatprep.mubr.f32.mxu0 0.0
    %1067 = vmatmul.mubr.f32.gmra.mrb[0].mxu0 %v1000
    %v1068 = vpop.f32.mrb[0].mxu0
    %v1069 = vadd.f32 %v997, %v1068
    %v1070 = vpop.f32.mrb[0].mxu0
    %1071 = vdwg.mxu0
    %v1072 = vxor.u32 %v1069, 2147483648
    %v1073 = vmul.f32 %v1072, 1.442695
    %v1074 = vpow.pop %v1073
    %v1075 = vadd.f32 %v1074, 1.0
    %v1076 = vrcp.pop %v1075
    %v1077 = vmul.f32 1.0, %v1076
    %v1078 = vtanh.pop %v1069
    %v1079 = vmul.f32 %v1077, 0.0
    %1081 = vrot.lane.b32.xlu0 %v1078, 64
    %v1082 = vpop.permute.xlu0 %1081
    %v1084 = vmul.f32 %v1077, %v1082
    %1086 = vrot.lane.b32.xlu0 %v1084, 32
    %v1087 = vpop.permute.xlu0 %1086
    %v1089 = vadd.f32 %v1079, %v1087
    %v1090 = vtanh.pop %v1089
    %1092 = vrot.lane.b32.xlu0 %v1090, 64
    %v1093 = vpop.permute.xlu0 %1092
    %v1095 = vmul.f32 %v1077, %v1093
    %1097 = vrot.lane.b32.xlu0 %v1095, 32
    %v1098 = vpop.permute.xlu0 %1097
    %s1100 = scalar_lea.vmem [#allocation4], 14
    %1101 = vst.msk [vmem:[%s1100] sm:$0x3] %vm219, %v1098
    %v1102 = vld [vmem:[%s766] sm:$0x3]
    %1103 = vrot.lane.b32.xlu0 %v1095, 48
    %v1104 = vpop.permute.xlu0 %1103
    %v1106 = vsel %vm109, %v1102, %v1104
    %v1108 = vsel %vm117, %v1106, 0
    %1110 = vmatprep.subr.mxu0 0.0
    %1111 = vmatpush1.msra.mxu0 %v984
    %1112 = vmatprep.subr.mxu0 0.0
    %1113 = vmatpush1.msra.mxu0 %v985
    %1114 = vmatprep.subr.mxu0 0.0
    %1115 = vmatpush1.msra.mxu0 %v986
    %1116 = vmatprep.subr.mxu0 0.0
    %1117 = vmatpush1.msra.mxu0 %v987
    %1118 = vmatprep.subr.mxu0 0.0
    %1119 = vmatpush1.msra.mxu0 %v988
    %1120 = vmatprep.subr.mxu0 0.0
    %1121 = vmatpush1.msra.mxu0 %v989
    %1122 = vmatprep.subr.mxu0 0.0
    %1123 = vmatpush1.msra.mxu0 0.0
    %1124 = vmatprep.subr.mxu0 0.0
    %1125 = vmatpush1.msra.mxu0 0.0
    %1126 = vmatprep.subr.mxu0 0.0
    %1127 = vmatpush1.msra.mxu0 0.0
    %1128 = vmatprep.subr.mxu0 0.0
    %1129 = vmatpush1.msra.mxu0 0.0
    %1130 = vmatprep.subr.mxu0 0.0
    %1131 = vmatpush1.msra.mxu0 0.0
    %1132 = vmatprep.subr.mxu0 0.0
    %1133 = vmatpush1.msra.mxu0 0.0
    %1134 = vmatprep.subr.mxu0 0.0
    %1135 = vmatpush1.msra.mxu0 0.0
    %1136 = vmatprep.subr.mxu0 0.0
    %1137 = vmatpush1.msra.mxu0 0.0
    %1138 = vmatprep.subr.mxu0 0.0
    %1139 = vmatpush1.msra.mxu0 0.0
    %1140 = vmatprep.subr.mxu0 0.0
    %1141 = vmatpush1.msra.mxu0 0.0
    %1142 = vmatprep.subr.mxu0 0.0
    %1143 = vmatpush1.msra.mxu0 0.0
    %1144 = vmatprep.subr.mxu0 0.0
    %1145 = vmatpush1.msra.mxu0 0.0
    %1146 = vmatprep.subr.mxu0 0.0
    %1147 = vmatpush1.msra.mxu0 0.0
    %1148 = vmatprep.subr.mxu0 0.0
    %1149 = vmatpush1.msra.mxu0 0.0
    %1150 = vmatprep.subr.mxu0 0.0
    %1151 = vmatpush1.msra.mxu0 0.0
    %1152 = vmatprep.subr.mxu0 0.0
    %1153 = vmatpush1.msra.mxu0 0.0
    %1154 = vmatprep.subr.mxu0 0.0
    %1155 = vmatpush1.msra.mxu0 0.0
    %1156 = vmatprep.subr.mxu0 0.0
    %1157 = vmatpush1.msra.mxu0 0.0
    %1158 = vmatprep.subr.mxu0 0.0
    %1159 = vmatpush1.msra.mxu0 0.0
    %1160 = vmatprep.subr.mxu0 0.0
    %1161 = vmatpush1.msra.mxu0 0.0
    %1162 = vmatprep.subr.mxu0 0.0
    %1163 = vmatpush1.msra.mxu0 0.0
    %1164 = vmatprep.subr.mxu0 0.0
    %1165 = vmatpush1.msra.mxu0 0.0
    %1166 = vmatprep.subr.mxu0 0.0
    %1167 = vmatpush1.msra.mxu0 0.0
    %1168 = vmatprep.subr.mxu0 0.0
    %1169 = vmatpush1.msra.mxu0 0.0
    %1170 = vmatprep.subr.mxu0 0.0
    %1171 = vmatpush1.msra.mxu0 0.0
    %1172 = vmatprep.subr.mxu0 0.0
    %1173 = vmatpush1.msra.mxu0 0.0
    %1174 = vmatprep.mubr.f32.mxu0 0.0
    %1175 = vmatmul.mubr.f32.gmra.mrb[0].mxu0 %v1108
    %v1176 = vpop.f32.mrb[0].mxu0
    %v1177 = vadd.f32 %v997, %v1176
    %v1178 = vpop.f32.mrb[0].mxu0
    %1179 = vdwg.mxu0
    %v1180 = vxor.u32 %v1177, 2147483648
    %v1181 = vmul.f32 %v1180, 1.442695
    %v1182 = vpow.pop %v1181
    %v1183 = vadd.f32 %v1182, 1.0
    %v1184 = vrcp.pop %v1183
    %v1185 = vmul.f32 1.0, %v1184
    %v1186 = vtanh.pop %v1177
    %v1187 = vmul.f32 %v1185, %v1089
    %1189 = vrot.lane.b32.xlu0 %v1186, 64
    %v1190 = vpop.permute.xlu0 %1189
    %v1192 = vmul.f32 %v1185, %v1190
    %1194 = vrot.lane.b32.xlu0 %v1192, 32
    %v1195 = vpop.permute.xlu0 %1194
    %v1197 = vadd.f32 %v1187, %v1195
    %v1198 = vtanh.pop %v1197
    %1200 = vrot.lane.b32.xlu0 %v1198, 64
    %v1201 = vpop.permute.xlu0 %1200
    %v1203 = vmul.f32 %v1185, %v1201
    %1205 = vrot.lane.b32.xlu0 %v1203, 32
    %v1206 = vpop.permute.xlu0 %1205
    %s1208 = scalar_lea.vmem [#allocation4], 12
    %1209 = vst.msk [vmem:[%s1208] sm:$0x3] %vm219, %v1206
    %v1210 = vld [vmem:[%s657] sm:$0x3]
    %1211 = vrot.lane.b32.xlu0 %v1203, 48
    %v1212 = vpop.permute.xlu0 %1211
    %v1214 = vsel %vm109, %v1210, %v1212
    %v1216 = vsel %vm117, %v1214, 0
    %1218 = vmatprep.subr.mxu0 0.0
    %1219 = vmatpush1.msra.mxu0 %v984
    %1220 = vmatprep.subr.mxu0 0.0
    %1221 = vmatpush1.msra.mxu0 %v985
    %1222 = vmatprep.subr.mxu0 0.0
    %1223 = vmatpush1.msra.mxu0 %v986
    %1224 = vmatprep.subr.mxu0 0.0
    %1225 = vmatpush1.msra.mxu0 %v987
    %1226 = vmatprep.subr.mxu0 0.0
    %1227 = vmatpush1.msra.mxu0 %v988
    %1228 = vmatprep.subr.mxu0 0.0
    %1229 = vmatpush1.msra.mxu0 %v989
    %1230 = vmatprep.subr.mxu0 0.0
    %1231 = vmatpush1.msra.mxu0 0.0
    %1232 = vmatprep.subr.mxu0 0.0
    %1233 = vmatpush1.msra.mxu0 0.0
    %1234 = vmatprep.subr.mxu0 0.0
    %1235 = vmatpush1.msra.mxu0 0.0
    %1236 = vmatprep.subr.mxu0 0.0
    %1237 = vmatpush1.msra.mxu0 0.0
    %1238 = vmatprep.subr.mxu0 0.0
    %1239 = vmatpush1.msra.mxu0 0.0
    %1240 = vmatprep.subr.mxu0 0.0
    %1241 = vmatpush1.msra.mxu0 0.0
    %1242 = vmatprep.subr.mxu0 0.0
    %1243 = vmatpush1.msra.mxu0 0.0
    %1244 = vmatprep.subr.mxu0 0.0
    %1245 = vmatpush1.msra.mxu0 0.0
    %1246 = vmatprep.subr.mxu0 0.0
    %1247 = vmatpush1.msra.mxu0 0.0
    %1248 = vmatprep.subr.mxu0 0.0
    %1249 = vmatpush1.msra.mxu0 0.0
    %1250 = vmatprep.subr.mxu0 0.0
    %1251 = vmatpush1.msra.mxu0 0.0
    %1252 = vmatprep.subr.mxu0 0.0
    %1253 = vmatpush1.msra.mxu0 0.0
    %1254 = vmatprep.subr.mxu0 0.0
    %1255 = vmatpush1.msra.mxu0 0.0
    %1256 = vmatprep.subr.mxu0 0.0
    %1257 = vmatpush1.msra.mxu0 0.0
    %1258 = vmatprep.subr.mxu0 0.0
    %1259 = vmatpush1.msra.mxu0 0.0
    %1260 = vmatprep.subr.mxu0 0.0
    %1261 = vmatpush1.msra.mxu0 0.0
    %1262 = vmatprep.subr.mxu0 0.0
    %1263 = vmatpush1.msra.mxu0 0.0
    %1264 = vmatprep.subr.mxu0 0.0
    %1265 = vmatpush1.msra.mxu0 0.0
    %1266 = vmatprep.subr.mxu0 0.0
    %1267 = vmatpush1.msra.mxu0 0.0
    %1268 = vmatprep.subr.mxu0 0.0
    %1269 = vmatpush1.msra.mxu0 0.0
    %1270 = vmatprep.subr.mxu0 0.0
    %1271 = vmatpush1.msra.mxu0 0.0
    %1272 = vmatprep.subr.mxu0 0.0
    %1273 = vmatpush1.msra.mxu0 0.0
    %1274 = vmatprep.subr.mxu0 0.0
    %1275 = vmatpush1.msra.mxu0 0.0
    %1276 = vmatprep.subr.mxu0 0.0
    %1277 = vmatpush1.msra.mxu0 0.0
    %1278 = vmatprep.subr.mxu0 0.0
    %1279 = vmatpush1.msra.mxu0 0.0
    %1280 = vmatprep.subr.mxu0 0.0
    %1281 = vmatpush1.msra.mxu0 0.0
    %1282 = vmatprep.mubr.f32.mxu0 0.0
    %1283 = vmatmul.mubr.f32.gmra.mrb[0].mxu0 %v1216
    %v1284 = vpop.f32.mrb[0].mxu0
    %v1285 = vadd.f32 %v997, %v1284
    %v1286 = vpop.f32.mrb[0].mxu0
    %1287 = vdwg.mxu0
    %v1288 = vxor.u32 %v1285, 2147483648
    %v1289 = vmul.f32 %v1288, 1.442695
    %v1290 = vpow.pop %v1289
    %v1291 = vadd.f32 %v1290, 1.0
    %v1292 = vrcp.pop %v1291
    %v1293 = vmul.f32 1.0, %v1292
    %v1294 = vtanh.pop %v1285
    %v1295 = vmul.f32 %v1293, %v1197
    %1297 = vrot.lane.b32.xlu0 %v1294, 64
    %v1298 = vpop.permute.xlu0 %1297
    %v1300 = vmul.f32 %v1293, %v1298
    %1302 = vrot.lane.b32.xlu0 %v1300, 32
    %v1303 = vpop.permute.xlu0 %1302
    %v1305 = vadd.f32 %v1295, %v1303
    %v1306 = vtanh.pop %v1305
    %1308 = vrot.lane.b32.xlu0 %v1306, 64
    %v1309 = vpop.permute.xlu0 %1308
    %v1311 = vmul.f32 %v1293, %v1309
    %1313 = vrot.lane.b32.xlu0 %v1311, 32
    %v1314 = vpop.permute.xlu0 %1313
    %s1316 = scalar_lea.vmem [#allocation4], 10
    %1317 = vst.msk [vmem:[%s1316] sm:$0x3] %vm219, %v1314
    %v1318 = vld [vmem:[%s548] sm:$0x3]
    %1319 = vrot.lane.b32.xlu0 %v1311, 48
    %v1320 = vpop.permute.xlu0 %1319
    %v1322 = vsel %vm109, %v1318, %v1320
    %v1324 = vsel %vm117, %v1322, 0
    %1326 = vmatprep.subr.mxu0 0.0
    %1327 = vmatpush1.msra.mxu0 %v984
    %1328 = vmatprep.subr.mxu0 0.0
    %1329 = vmatpush1.msra.mxu0 %v985
    %1330 = vmatprep.subr.mxu0 0.0
    %1331 = vmatpush1.msra.mxu0 %v986
    %1332 = vmatprep.subr.mxu0 0.0
    %1333 = vmatpush1.msra.mxu0 %v987
    %1334 = vmatprep.subr.mxu0 0.0
    %1335 = vmatpush1.msra.mxu0 %v988
    %1336 = vmatprep.subr.mxu0 0.0
    %1337 = vmatpush1.msra.mxu0 %v989
    %1338 = vmatprep.subr.mxu0 0.0
    %1339 = vmatpush1.msra.mxu0 0.0
    %1340 = vmatprep.subr.mxu0 0.0
    %1341 = vmatpush1.msra.mxu0 0.0
    %1342 = vmatprep.subr.mxu0 0.0
    %1343 = vmatpush1.msra.mxu0 0.0
    %1344 = vmatprep.subr.mxu0 0.0
    %1345 = vmatpush1.msra.mxu0 0.0
    %1346 = vmatprep.subr.mxu0 0.0
    %1347 = vmatpush1.msra.mxu0 0.0
    %1348 = vmatprep.subr.mxu0 0.0
    %1349 = vmatpush1.msra.mxu0 0.0
    %1350 = vmatprep.subr.mxu0 0.0
    %1351 = vmatpush1.msra.mxu0 0.0
    %1352 = vmatprep.subr.mxu0 0.0
    %1353 = vmatpush1.msra.mxu0 0.0
    %1354 = vmatprep.subr.mxu0 0.0
    %1355 = vmatpush1.msra.mxu0 0.0
    %1356 = vmatprep.subr.mxu0 0.0
    %1357 = vmatpush1.msra.mxu0 0.0
    %1358 = vmatprep.subr.mxu0 0.0
    %1359 = vmatpush1.msra.mxu0 0.0
    %1360 = vmatprep.subr.mxu0 0.0
    %1361 = vmatpush1.msra.mxu0 0.0
    %1362 = vmatprep.subr.mxu0 0.0
    %1363 = vmatpush1.msra.mxu0 0.0
    %1364 = vmatprep.subr.mxu0 0.0
    %1365 = vmatpush1.msra.mxu0 0.0
    %1366 = vmatprep.subr.mxu0 0.0
    %1367 = vmatpush1.msra.mxu0 0.0
    %1368 = vmatprep.subr.mxu0 0.0
    %1369 = vmatpush1.msra.mxu0 0.0
    %1370 = vmatprep.subr.mxu0 0.0
    %1371 = vmatpush1.msra.mxu0 0.0
    %1372 = vmatprep.subr.mxu0 0.0
    %1373 = vmatpush1.msra.mxu0 0.0
    %1374 = vmatprep.subr.mxu0 0.0
    %1375 = vmatpush1.msra.mxu0 0.0
    %1376 = vmatprep.subr.mxu0 0.0
    %1377 = vmatpush1.msra.mxu0 0.0
    %1378 = vmatprep.subr.mxu0 0.0
    %1379 = vmatpush1.msra.mxu0 0.0
    %1380 = vmatprep.subr.mxu0 0.0
    %1381 = vmatpush1.msra.mxu0 0.0
    %1382 = vmatprep.subr.mxu0 0.0
    %1383 = vmatpush1.msra.mxu0 0.0
    %1384 = vmatprep.subr.mxu0 0.0
    %1385 = vmatpush1.msra.mxu0 0.0
    %1386 = vmatprep.subr.mxu0 0.0
    %1387 = vmatpush1.msra.mxu0 0.0
    %1388 = vmatprep.subr.mxu0 0.0
    %1389 = vmatpush1.msra.mxu0 0.0
    %1390 = vmatprep.mubr.f32.mxu0 0.0
    %1391 = vmatmul.mubr.f32.gmra.mrb[0].mxu0 %v1324
    %v1392 = vpop.f32.mrb[0].mxu0
    %v1393 = vadd.f32 %v997, %v1392
    %v1394 = vpop.f32.mrb[0].mxu0
    %1395 = vdwg.mxu0
    %v1396 = vxor.u32 %v1393, 2147483648
    %v1397 = vmul.f32 %v1396, 1.442695
    %v1398 = vpow.pop %v1397
    %v1399 = vadd.f32 %v1398, 1.0
    %v1400 = vrcp.pop %v1399
    %v1401 = vmul.f32 1.0, %v1400
    %v1402 = vtanh.pop %v1393
    %v1403 = vmul.f32 %v1401, %v1305
    %1405 = vrot.lane.b32.xlu0 %v1402, 64
    %v1406 = vpop.permute.xlu0 %1405
    %v1408 = vmul.f32 %v1401, %v1406
    %1410 = vrot.lane.b32.xlu0 %v1408, 32
    %v1411 = vpop.permute.xlu0 %1410
    %v1413 = vadd.f32 %v1403, %v1411
    %v1414 = vtanh.pop %v1413
    %1416 = vrot.lane.b32.xlu0 %v1414, 64
    %v1417 = vpop.permute.xlu0 %1416
    %v1419 = vmul.f32 %v1401, %v1417
    %1421 = vrot.lane.b32.xlu0 %v1419, 32
    %v1422 = vpop.permute.xlu0 %1421
    %s1424 = scalar_lea.vmem [#allocation4], 8
    %1425 = vst.msk [vmem:[%s1424] sm:$0x3] %vm219, %v1422
    %v1426 = vld [vmem:[%s439] sm:$0x3]
    %1427 = vrot.lane.b32.xlu0 %v1419, 48
    %v1428 = vpop.permute.xlu0 %1427
    %v1430 = vsel %vm109, %v1426, %v1428
    %v1432 = vsel %vm117, %v1430, 0
    %1434 = vmatprep.subr.mxu0 0.0
    %1435 = vmatpush1.msra.mxu0 %v984
    %1436 = vmatprep.subr.mxu0 0.0
    %1437 = vmatpush1.msra.mxu0 %v985
    %1438 = vmatprep.subr.mxu0 0.0
    %1439 = vmatpush1.msra.mxu0 %v986
    %1440 = vmatprep.subr.mxu0 0.0
    %1441 = vmatpush1.msra.mxu0 %v987
    %1442 = vmatprep.subr.mxu0 0.0
    %1443 = vmatpush1.msra.mxu0 %v988
    %1444 = vmatprep.subr.mxu0 0.0
    %1445 = vmatpush1.msra.mxu0 %v989
    %1446 = vmatprep.subr.mxu0 0.0
    %1447 = vmatpush1.msra.mxu0 0.0
    %1448 = vmatprep.subr.mxu0 0.0
    %1449 = vmatpush1.msra.mxu0 0.0
    %1450 = vmatprep.subr.mxu0 0.0
    %1451 = vmatpush1.msra.mxu0 0.0
    %1452 = vmatprep.subr.mxu0 0.0
    %1453 = vmatpush1.msra.mxu0 0.0
    %1454 = vmatprep.subr.mxu0 0.0
    %1455 = vmatpush1.msra.mxu0 0.0
    %1456 = vmatprep.subr.mxu0 0.0
    %1457 = vmatpush1.msra.mxu0 0.0
    %1458 = vmatprep.subr.mxu0 0.0
    %1459 = vmatpush1.msra.mxu0 0.0
    %1460 = vmatprep.subr.mxu0 0.0
    %1461 = vmatpush1.msra.mxu0 0.0
    %1462 = vmatprep.subr.mxu0 0.0
    %1463 = vmatpush1.msra.mxu0 0.0
    %1464 = vmatprep.subr.mxu0 0.0
    %1465 = vmatpush1.msra.mxu0 0.0
    %1466 = vmatprep.subr.mxu0 0.0
    %1467 = vmatpush1.msra.mxu0 0.0
    %1468 = vmatprep.subr.mxu0 0.0
    %1469 = vmatpush1.msra.mxu0 0.0
    %1470 = vmatprep.subr.mxu0 0.0
    %1471 = vmatpush1.msra.mxu0 0.0
    %1472 = vmatprep.subr.mxu0 0.0
    %1473 = vmatpush1.msra.mxu0 0.0
    %1474 = vmatprep.subr.mxu0 0.0
    %1475 = vmatpush1.msra.mxu0 0.0
    %1476 = vmatprep.subr.mxu0 0.0
    %1477 = vmatpush1.msra.mxu0 0.0
    %1478 = vmatprep.subr.mxu0 0.0
    %1479 = vmatpush1.msra.mxu0 0.0
    %1480 = vmatprep.subr.mxu0 0.0
    %1481 = vmatpush1.msra.mxu0 0.0
    %1482 = vmatprep.subr.mxu0 0.0
    %1483 = vmatpush1.msra.mxu0 0.0
    %1484 = vmatprep.subr.mxu0 0.0
    %1485 = vmatpush1.msra.mxu0 0.0
    %1486 = vmatprep.subr.mxu0 0.0
    %1487 = vmatpush1.msra.mxu0 0.0
    %1488 = vmatprep.subr.mxu0 0.0
    %1489 = vmatpush1.msra.mxu0 0.0
    %1490 = vmatprep.subr.mxu0 0.0
    %1491 = vmatpush1.msra.mxu0 0.0
    %1492 = vmatprep.subr.mxu0 0.0
    %1493 = vmatpush1.msra.mxu0 0.0
    %1494 = vmatprep.subr.mxu0 0.0
    %1495 = vmatpush1.msra.mxu0 0.0
    %1496 = vmatprep.subr.mxu0 0.0
    %1497 = vmatpush1.msra.mxu0 0.0
    %1498 = vmatprep.mubr.f32.mxu0 0.0
    %1499 = vmatmul.mubr.f32.gmra.mrb[0].mxu0 %v1432
    %v1500 = vpop.f32.mrb[0].mxu0
    %v1501 = vadd.f32 %v997, %v1500
    %v1502 = vpop.f32.mrb[0].mxu0
    %1503 = vdwg.mxu0
    %v1504 = vxor.u32 %v1501, 2147483648
    %v1505 = vmul.f32 %v1504, 1.442695
    %v1506 = vpow.pop %v1505
    %v1507 = vadd.f32 %v1506, 1.0
    %v1508 = vrcp.pop %v1507
    %v1509 = vmul.f32 1.0, %v1508
    %v1510 = vtanh.pop %v1501
    %v1511 = vmul.f32 %v1509, %v1413
    %1513 = vrot.lane.b32.xlu0 %v1510, 64
    %v1514 = vpop.permute.xlu0 %1513
    %v1516 = vmul.f32 %v1509, %v1514
    %1518 = vrot.lane.b32.xlu0 %v1516, 32
    %v1519 = vpop.permute.xlu0 %1518
    %v1521 = vadd.f32 %v1511, %v1519
    %v1522 = vtanh.pop %v1521
    %1524 = vrot.lane.b32.xlu0 %v1522, 64
    %v1525 = vpop.permute.xlu0 %1524
    %v1527 = vmul.f32 %v1509, %v1525
    %1529 = vrot.lane.b32.xlu0 %v1527, 32
    %v1530 = vpop.permute.xlu0 %1529
    %s1532 = scalar_lea.vmem [#allocation4], 6
    %1533 = vst.msk [vmem:[%s1532] sm:$0x3] %vm219, %v1530
    %v1534 = vld [vmem:[%s330] sm:$0x3]
    %1535 = vrot.lane.b32.xlu0 %v1527, 48
    %v1536 = vpop.permute.xlu0 %1535
    %v1538 = vsel %vm109, %v1534, %v1536
    %v1540 = vsel %vm117, %v1538, 0
    %1542 = vmatprep.subr.mxu0 0.0
    %1543 = vmatpush1.msra.mxu0 %v984
    %1544 = vmatprep.subr.mxu0 0.0
    %1545 = vmatpush1.msra.mxu0 %v985
    %1546 = vmatprep.subr.mxu0 0.0
    %1547 = vmatpush1.msra.mxu0 %v986
    %1548 = vmatprep.subr.mxu0 0.0
    %1549 = vmatpush1.msra.mxu0 %v987
    %1550 = vmatprep.subr.mxu0 0.0
    %1551 = vmatpush1.msra.mxu0 %v988
    %1552 = vmatprep.subr.mxu0 0.0
    %1553 = vmatpush1.msra.mxu0 %v989
    %1554 = vmatprep.subr.mxu0 0.0
    %1555 = vmatpush1.msra.mxu0 0.0
    %1556 = vmatprep.subr.mxu0 0.0
    %1557 = vmatpush1.msra.mxu0 0.0
    %1558 = vmatprep.subr.mxu0 0.0
    %1559 = vmatpush1.msra.mxu0 0.0
    %1560 = vmatprep.subr.mxu0 0.0
    %1561 = vmatpush1.msra.mxu0 0.0
    %1562 = vmatprep.subr.mxu0 0.0
    %1563 = vmatpush1.msra.mxu0 0.0
    %1564 = vmatprep.subr.mxu0 0.0
    %1565 = vmatpush1.msra.mxu0 0.0
    %1566 = vmatprep.subr.mxu0 0.0
    %1567 = vmatpush1.msra.mxu0 0.0
    %1568 = vmatprep.subr.mxu0 0.0
    %1569 = vmatpush1.msra.mxu0 0.0
    %1570 = vmatprep.subr.mxu0 0.0
    %1571 = vmatpush1.msra.mxu0 0.0
    %1572 = vmatprep.subr.mxu0 0.0
    %1573 = vmatpush1.msra.mxu0 0.0
    %1574 = vmatprep.subr.mxu0 0.0
    %1575 = vmatpush1.msra.mxu0 0.0
    %1576 = vmatprep.subr.mxu0 0.0
    %1577 = vmatpush1.msra.mxu0 0.0
    %1578 = vmatprep.subr.mxu0 0.0
    %1579 = vmatpush1.msra.mxu0 0.0
    %1580 = vmatprep.subr.mxu0 0.0
    %1581 = vmatpush1.msra.mxu0 0.0
    %1582 = vmatprep.subr.mxu0 0.0
    %1583 = vmatpush1.msra.mxu0 0.0
    %1584 = vmatprep.subr.mxu0 0.0
    %1585 = vmatpush1.msra.mxu0 0.0
    %1586 = vmatprep.subr.mxu0 0.0
    %1587 = vmatpush1.msra.mxu0 0.0
    %1588 = vmatprep.subr.mxu0 0.0
    %1589 = vmatpush1.msra.mxu0 0.0
    %1590 = vmatprep.subr.mxu0 0.0
    %1591 = vmatpush1.msra.mxu0 0.0
    %1592 = vmatprep.subr.mxu0 0.0
    %1593 = vmatpush1.msra.mxu0 0.0
    %1594 = vmatprep.subr.mxu0 0.0
    %1595 = vmatpush1.msra.mxu0 0.0
    %1596 = vmatprep.subr.mxu0 0.0
    %1597 = vmatpush1.msra.mxu0 0.0
    %1598 = vmatprep.subr.mxu0 0.0
    %1599 = vmatpush1.msra.mxu0 0.0
    %1600 = vmatprep.subr.mxu0 0.0
    %1601 = vmatpush1.msra.mxu0 0.0
    %1602 = vmatprep.subr.mxu0 0.0
    %1603 = vmatpush1.msra.mxu0 0.0
    %1604 = vmatprep.subr.mxu0 0.0
    %1605 = vmatpush1.msra.mxu0 0.0
    %1606 = vmatprep.mubr.f32.mxu0 0.0
    %1607 = vmatmul.mubr.f32.gmra.mrb[0].mxu0 %v1540
    %v1608 = vpop.f32.mrb[0].mxu0
    %v1609 = vadd.f32 %v997, %v1608
    %v1610 = vpop.f32.mrb[0].mxu0
    %1611 = vdwg.mxu0
    %v1612 = vxor.u32 %v1609, 2147483648
    %v1613 = vmul.f32 %v1612, 1.442695
    %v1614 = vpow.pop %v1613
    %v1615 = vadd.f32 %v1614, 1.0
    %v1616 = vrcp.pop %v1615
    %v1617 = vmul.f32 1.0, %v1616
    %v1618 = vtanh.pop %v1609
    %v1619 = vmul.f32 %v1617, %v1521
    %1621 = vrot.lane.b32.xlu0 %v1618, 64
    %v1622 = vpop.permute.xlu0 %1621
    %v1624 = vmul.f32 %v1617, %v1622
    %1626 = vrot.lane.b32.xlu0 %v1624, 32
    %v1627 = vpop.permute.xlu0 %1626
    %v1629 = vadd.f32 %v1619, %v1627
    %v1630 = vtanh.pop %v1629
    %1632 = vrot.lane.b32.xlu0 %v1630, 64
    %v1633 = vpop.permute.xlu0 %1632
    %v1635 = vmul.f32 %v1617, %v1633
    %1637 = vrot.lane.b32.xlu0 %v1635, 32
    %v1638 = vpop.permute.xlu0 %1637
    %s1640 = scalar_lea.vmem [#allocation4], 4
    %1641 = vst.msk [vmem:[%s1640] sm:$0x3] %vm219, %v1638
    %v1642 = vld [vmem:[%s221] sm:$0x3]
    %1643 = vrot.lane.b32.xlu0 %v1635, 48
    %v1644 = vpop.permute.xlu0 %1643
    %v1646 = vsel %vm109, %v1642, %v1644
    %v1648 = vsel %vm117, %v1646, 0
    %1650 = vmatprep.subr.mxu0 0.0
    %1651 = vmatpush1.msra.mxu0 %v984
    %1652 = vmatprep.subr.mxu0 0.0
    %1653 = vmatpush1.msra.mxu0 %v985
    %1654 = vmatprep.subr.mxu0 0.0
    %1655 = vmatpush1.msra.mxu0 %v986
    %1656 = vmatprep.subr.mxu0 0.0
    %1657 = vmatpush1.msra.mxu0 %v987
    %1658 = vmatprep.subr.mxu0 0.0
    %1659 = vmatpush1.msra.mxu0 %v988
    %1660 = vmatprep.subr.mxu0 0.0
    %1661 = vmatpush1.msra.mxu0 %v989
    %1662 = vmatprep.subr.mxu0 0.0
    %1663 = vmatpush1.msra.mxu0 0.0
    %1664 = vmatprep.subr.mxu0 0.0
    %1665 = vmatpush1.msra.mxu0 0.0
    %1666 = vmatprep.subr.mxu0 0.0
    %1667 = vmatpush1.msra.mxu0 0.0
    %1668 = vmatprep.subr.mxu0 0.0
    %1669 = vmatpush1.msra.mxu0 0.0
    %1670 = vmatprep.subr.mxu0 0.0
    %1671 = vmatpush1.msra.mxu0 0.0
    %1672 = vmatprep.subr.mxu0 0.0
    %1673 = vmatpush1.msra.mxu0 0.0
    %1674 = vmatprep.subr.mxu0 0.0
    %1675 = vmatpush1.msra.mxu0 0.0
    %1676 = vmatprep.subr.mxu0 0.0
    %1677 = vmatpush1.msra.mxu0 0.0
    %1678 = vmatprep.subr.mxu0 0.0
    %1679 = vmatpush1.msra.mxu0 0.0
    %1680 = vmatprep.subr.mxu0 0.0
    %1681 = vmatpush1.msra.mxu0 0.0
    %1682 = vmatprep.subr.mxu0 0.0
    %1683 = vmatpush1.msra.mxu0 0.0
    %1684 = vmatprep.subr.mxu0 0.0
    %1685 = vmatpush1.msra.mxu0 0.0
    %1686 = vmatprep.subr.mxu0 0.0
    %1687 = vmatpush1.msra.mxu0 0.0
    %1688 = vmatprep.subr.mxu0 0.0
    %1689 = vmatpush1.msra.mxu0 0.0
    %1690 = vmatprep.subr.mxu0 0.0
    %1691 = vmatpush1.msra.mxu0 0.0
    %1692 = vmatprep.subr.mxu0 0.0
    %1693 = vmatpush1.msra.mxu0 0.0
    %1694 = vmatprep.subr.mxu0 0.0
    %1695 = vmatpush1.msra.mxu0 0.0
    %1696 = vmatprep.subr.mxu0 0.0
    %1697 = vmatpush1.msra.mxu0 0.0
    %1698 = vmatprep.subr.mxu0 0.0
    %1699 = vmatpush1.msra.mxu0 0.0
    %1700 = vmatprep.subr.mxu0 0.0
    %1701 = vmatpush1.msra.mxu0 0.0
    %1702 = vmatprep.subr.mxu0 0.0
    %1703 = vmatpush1.msra.mxu0 0.0
    %1704 = vmatprep.subr.mxu0 0.0
    %1705 = vmatpush1.msra.mxu0 0.0
    %1706 = vmatprep.subr.mxu0 0.0
    %1707 = vmatpush1.msra.mxu0 0.0
    %1708 = vmatprep.subr.mxu0 0.0
    %1709 = vmatpush1.msra.mxu0 0.0
    %1710 = vmatprep.subr.mxu0 0.0
    %1711 = vmatpush1.msra.mxu0 0.0
    %1712 = vmatprep.subr.mxu0 0.0
    %1713 = vmatpush1.msra.mxu0 0.0
    %1714 = vmatprep.mubr.f32.mxu0 0.0
    %1715 = vmatmul.mubr.f32.gmra.mrb[0].mxu0 %v1648
    %v1716 = vpop.f32.mrb[0].mxu0
    %v1717 = vadd.f32 %v997, %v1716
    %v1718 = vpop.f32.mrb[0].mxu0
    %1719 = vdwg.mxu0
    %v1720 = vxor.u32 %v1717, 2147483648
    %v1721 = vmul.f32 %v1720, 1.442695
    %v1722 = vpow.pop %v1721
    %v1723 = vadd.f32 %v1722, 1.0
    %v1724 = vrcp.pop %v1723
    %v1725 = vmul.f32 1.0, %v1724
    %v1726 = vtanh.pop %v1717
    %v1727 = vmul.f32 %v1725, %v1629
    %1729 = vrot.lane.b32.xlu0 %v1726, 64
    %v1730 = vpop.permute.xlu0 %1729
    %v1732 = vmul.f32 %v1725, %v1730
    %1734 = vrot.lane.b32.xlu0 %v1732, 32
    %v1735 = vpop.permute.xlu0 %1734
    %v1737 = vadd.f32 %v1727, %v1735
    %v1738 = vtanh.pop %v1737
    %1740 = vrot.lane.b32.xlu0 %v1738, 64
    %v1741 = vpop.permute.xlu0 %1740
    %v1743 = vmul.f32 %v1725, %v1741
    %1745 = vrot.lane.b32.xlu0 %v1743, 32
    %v1746 = vpop.permute.xlu0 %1745
    %s1748 = scalar_lea.vmem [#allocation4], 2
    %1749 = vst.msk [vmem:[%s1748] sm:$0x3] %vm219, %v1746
    %v1750 = vld [vmem:[#allocation5] sm:$0x3]
    %1751 = vrot.lane.b32.xlu0 %v1743, 48
    %v1752 = vpop.permute.xlu0 %1751
    %v1754 = vsel %vm109, %v1750, %v1752
    %v1756 = vsel %vm117, %v1754, 0
    %1758 = vmatprep.subr.mxu0 0.0
    %1759 = vmatpush1.msra.mxu0 %v984
    %1760 = vmatprep.subr.mxu0 0.0
    %1761 = vmatpush1.msra.mxu0 %v985
    %1762 = vmatprep.subr.mxu0 0.0
    %1763 = vmatpush1.msra.mxu0 %v986
    %1764 = vmatprep.subr.mxu0 0.0
    %1765 = vmatpush1.msra.mxu0 %v987
    %1766 = vmatprep.subr.mxu0 0.0
    %1767 = vmatpush1.msra.mxu0 %v988
    %1768 = vmatprep.subr.mxu0 0.0
    %1769 = vmatpush1.msra.mxu0 %v989
    %1770 = vmatprep.subr.mxu0 0.0
    %1771 = vmatpush1.msra.mxu0 0.0
    %1772 = vmatprep.subr.mxu0 0.0
    %1773 = vmatpush1.msra.mxu0 0.0
    %1774 = vmatprep.subr.mxu0 0.0
    %1775 = vmatpush1.msra.mxu0 0.0
    %1776 = vmatprep.subr.mxu0 0.0
    %1777 = vmatpush1.msra.mxu0 0.0
    %1778 = vmatprep.subr.mxu0 0.0
    %1779 = vmatpush1.msra.mxu0 0.0
    %1780 = vmatprep.subr.mxu0 0.0
    %1781 = vmatpush1.msra.mxu0 0.0
    %1782 = vmatprep.subr.mxu0 0.0
    %1783 = vmatpush1.msra.mxu0 0.0
    %1784 = vmatprep.subr.mxu0 0.0
    %1785 = vmatpush1.msra.mxu0 0.0
    %1786 = vmatprep.subr.mxu0 0.0
    %1787 = vmatpush1.msra.mxu0 0.0
    %1788 = vmatprep.subr.mxu0 0.0
    %1789 = vmatpush1.msra.mxu0 0.0
    %1790 = vmatprep.subr.mxu0 0.0
    %1791 = vmatpush1.msra.mxu0 0.0
    %1792 = vmatprep.subr.mxu0 0.0
    %1793 = vmatpush1.msra.mxu0 0.0
    %1794 = vmatprep.subr.mxu0 0.0
    %1795 = vmatpush1.msra.mxu0 0.0
    %1796 = vmatprep.subr.mxu0 0.0
    %1797 = vmatpush1.msra.mxu0 0.0
    %1798 = vmatprep.subr.mxu0 0.0
    %1799 = vmatpush1.msra.mxu0 0.0
    %1800 = vmatprep.subr.mxu0 0.0
    %1801 = vmatpush1.msra.mxu0 0.0
    %1802 = vmatprep.subr.mxu0 0.0
    %1803 = vmatpush1.msra.mxu0 0.0
    %1804 = vmatprep.subr.mxu0 0.0
    %1805 = vmatpush1.msra.mxu0 0.0
    %1806 = vmatprep.subr.mxu0 0.0
    %1807 = vmatpush1.msra.mxu0 0.0
    %1808 = vmatprep.subr.mxu0 0.0
    %1809 = vmatpush1.msra.mxu0 0.0
    %1810 = vmatprep.subr.mxu0 0.0
    %1811 = vmatpush1.msra.mxu0 0.0
    %1812 = vmatprep.subr.mxu0 0.0
    %1813 = vmatpush1.msra.mxu0 0.0
    %1814 = vmatprep.subr.mxu0 0.0
    %1815 = vmatpush1.msra.mxu0 0.0
    %1816 = vmatprep.subr.mxu0 0.0
    %1817 = vmatpush1.msra.mxu0 0.0
    %1818 = vmatprep.subr.mxu0 0.0
    %1819 = vmatpush1.msra.mxu0 0.0
    %1820 = vmatprep.subr.mxu0 0.0
    %1821 = vmatpush1.msra.mxu0 0.0
    %1822 = vmatprep.mubr.f32.mxu0 0.0
    %1823 = vmatmul.mubr.f32.gmra.mrb[0].mxu0 %v1756
    %v1824 = vpop.f32.mrb[0].mxu0
    %v1825 = vadd.f32 %v997, %v1824
    %v1826 = vpop.f32.mrb[0].mxu0
    %1827 = vdwg.mxu0
    %v1828 = vxor.u32 %v1825, 2147483648
    %v1829 = vmul.f32 %v1828, 1.442695
    %v1830 = vpow.pop %v1829
    %v1831 = vadd.f32 %v1830, 1.0
    %v1832 = vrcp.pop %v1831
    %v1833 = vmul.f32 1.0, %v1832
    %v1834 = vtanh.pop %v1825
    %v1835 = vmul.f32 %v1833, %v1737
    %1837 = vrot.lane.b32.xlu0 %v1834, 64
    %v1838 = vpop.permute.xlu0 %1837
    %v1840 = vmul.f32 %v1833, %v1838
    %1842 = vrot.lane.b32.xlu0 %v1840, 32
    %v1843 = vpop.permute.xlu0 %1842
    %v1845 = vadd.f32 %v1835, %v1843
    %v1846 = vtanh.pop %v1845
    %1848 = vrot.lane.b32.xlu0 %v1846, 64
    %v1849 = vpop.permute.xlu0 %1848
    %v1851 = vmul.f32 %v1833, %v1849
    %1853 = vrot.lane.b32.xlu0 %v1851, 32
    %v1854 = vpop.permute.xlu0 %1853
    %1856 = vst.msk [vmem:[#allocation4] sm:$0x3] %vm219, %v1854
    %v1857 = vld [vmem:[#allocation3] sm:$0x3]
    %v1858 = vld [vmem:[#allocation3 + $0x2] sm:$0x3]
    %v1859 = vld [vmem:[#allocation3 + $0x4] sm:$0x3]
    %v1860 = vld [vmem:[#allocation3 + $0x6] sm:$0x3]
    %v1861 = vld [vmem:[#allocation3 + $0x8] sm:$0x3]
    %v1862 = vld [vmem:[#allocation3 + $0xa] sm:$0x3]
    %v1863 = vld [vmem:[#allocation3 + $0xc] sm:$0x3]
    %v1864 = vld [vmem:[#allocation3 + $0xe] sm:$0x3]
    %v1865 = vld [vmem:[#allocation4] sm:$0x3]
    %v1866 = vld [vmem:[#allocation4 + $0x2] sm:$0x3]
    %v1867 = vld [vmem:[#allocation4 + $0x4] sm:$0x3]
    %v1868 = vld [vmem:[#allocation4 + $0x6] sm:$0x3]
    %v1869 = vld [vmem:[#allocation4 + $0x8] sm:$0x3]
    %v1870 = vld [vmem:[#allocation4 + $0xa] sm:$0x3]
    %v1871 = vld [vmem:[#allocation4 + $0xc] sm:$0x3]
    %v1872 = vld [vmem:[#allocation4 + $0xe] sm:$0x3]
    %1881 = vrot.lane.b32.xlu0 %v1865, 32
    %v1882 = vpop.permute.xlu0 %1881
    %1883 = vrot.lane.b32.xlu0 %v1866, 32
    %v1884 = vpop.permute.xlu0 %1883
    %1885 = vrot.lane.b32.xlu0 %v1867, 32
    %v1886 = vpop.permute.xlu0 %1885
    %1887 = vrot.lane.b32.xlu0 %v1868, 32
    %v1888 = vpop.permute.xlu0 %1887
    %1889 = vrot.lane.b32.xlu0 %v1869, 32
    %v1890 = vpop.permute.xlu0 %1889
    %1891 = vrot.lane.b32.xlu0 %v1870, 32
    %v1892 = vpop.permute.xlu0 %1891
    %1893 = vrot.lane.b32.xlu0 %v1871, 32
    %v1894 = vpop.permute.xlu0 %1893
    %1895 = vrot.lane.b32.xlu0 %v1872, 32
    %v1896 = vpop.permute.xlu0 %1895
    %vm1905 = vcmask 261120
    %v1906 = vsel %vm1905, %v1857, %v1882
    %v1907 = vsel %vm1905, %v1858, %v1884
    %v1908 = vsel %vm1905, %v1859, %v1886
    %v1909 = vsel %vm1905, %v1860, %v1888
    %v1910 = vsel %vm1905, %v1861, %v1890
    %v1911 = vsel %vm1905, %v1862, %v1892
    %v1912 = vsel %vm1905, %v1863, %v1894
    %v1913 = vsel %vm1905, %v1864, %v1896
    %vm1914 = vcmask 517120
    %1915 = vst.msk [vmem:[#allocation2] sm:$0x3] %vm1914, %v1906
    %1916 = vst.msk [vmem:[#allocation2 + $0x2] sm:$0x3] %vm1914, %v1907
    %1917 = vst.msk [vmem:[#allocation2 + $0x4] sm:$0x3] %vm1914, %v1908
    %1918 = vst.msk [vmem:[#allocation2 + $0x6] sm:$0x3] %vm1914, %v1909
    %1919 = vst.msk [vmem:[#allocation2 + $0x8] sm:$0x3] %vm1914, %v1910
    %1920 = vst.msk [vmem:[#allocation2 + $0xa] sm:$0x3] %vm1914, %v1911
    %1921 = vst.msk [vmem:[#allocation2 + $0xc] sm:$0x3] %vm1914, %v1912
    %1922 = vst.msk [vmem:[#allocation2 + $0xe] sm:$0x3] %vm1914, %v1913
    %v1923 = vld [vmem:[#allocation11] sm:$0xff]
    %v1924 = vld [vmem:[#allocation11 + $0x8] sm:$0xff]
    %v1925 = vld [vmem:[#allocation11 + $0x10] sm:$0xff]
    %v1926 = vld [vmem:[#allocation11 + $0x18] sm:$0xff]
    %v1927 = vld [vmem:[#allocation11 + $0x20] sm:$0xff]
    %v1928 = vld [vmem:[#allocation11 + $0x28] sm:$0xff]
    %v1929 = vld [vmem:[#allocation11 + $0x30] sm:$0xff]
    %v1930 = vld [vmem:[#allocation11 + $0x38] sm:$0xff]
    %v1931 = vld [vmem:[#allocation11 + $0x40] sm:$0xff]
    %v1932 = vld [vmem:[#allocation11 + $0x48] sm:$0xff]
    %v1933 = vld [vmem:[#allocation11 + $0x50] sm:$0xff]
    %v1934 = vld [vmem:[#allocation11 + $0x58] sm:$0xff]
    %v1935 = vld [vmem:[%s7] sm:$0x1]
    %v1936 = vld [vmem:[#allocation2] sm:$0x3]
    %vm1937 = vcmask 523264
    %v1938 = vsel %vm1937, %v1936, 0.0
    %v1940 = vlaneseq
    %v1941 = vshrl.u32 %v1940, 7
    %v1942 = vsub.s32 0, %v1941
    %v1943 = vrot.slane %v1935, %v1942
    %vm1945 = vcmask 785408
    %v1947 = vsel %vm1945, %v1938, 0
    %1949 = vmatprep.subr.mxu0 0.0
    %1950 = vmatpush1.msra.mxu0 %v1923
    %1951 = vmatprep.subr.mxu0 0.0
    %1952 = vmatpush1.msra.mxu0 %v1924
    %1953 = vmatprep.subr.mxu0 0.0
    %1954 = vmatpush1.msra.mxu0 %v1925
    %1955 = vmatprep.subr.mxu0 0.0
    %1956 = vmatpush1.msra.mxu0 %v1926
    %1957 = vmatprep.subr.mxu0 0.0
    %1958 = vmatpush1.msra.mxu0 %v1927
    %1959 = vmatprep.subr.mxu0 0.0
    %1960 = vmatpush1.msra.mxu0 %v1928
    %1961 = vmatprep.subr.mxu0 0.0
    %1962 = vmatpush1.msra.mxu0 %v1929
    %1963 = vmatprep.subr.mxu0 0.0
    %1964 = vmatpush1.msra.mxu0 %v1930
    %1965 = vmatprep.subr.mxu0 0.0
    %1966 = vmatpush1.msra.mxu0 %v1931
    %1967 = vmatprep.subr.mxu0 0.0
    %1968 = vmatpush1.msra.mxu0 %v1932
    %1969 = vmatprep.subr.mxu0 0.0
    %1970 = vmatpush1.msra.mxu0 %v1933
    %1971 = vmatprep.subr.mxu0 0.0
    %1972 = vmatpush1.msra.mxu0 %v1934
    %1973 = vmatprep.subr.mxu0 0.0
    %1974 = vmatpush1.msra.mxu0 0.0
    %1975 = vmatprep.subr.mxu0 0.0
    %1976 = vmatpush1.msra.mxu0 0.0
    %1977 = vmatprep.subr.mxu0 0.0
    %1978 = vmatpush1.msra.mxu0 0.0
    %1979 = vmatprep.subr.mxu0 0.0
    %1980 = vmatpush1.msra.mxu0 0.0
    %1981 = vmatprep.subr.mxu0 0.0
    %1982 = vmatpush1.msra.mxu0 0.0
    %1983 = vmatprep.subr.mxu0 0.0
    %1984 = vmatpush1.msra.mxu0 0.0
    %1985 = vmatprep.subr.mxu0 0.0
    %1986 = vmatpush1.msra.mxu0 0.0
    %1987 = vmatprep.subr.mxu0 0.0
    %1988 = vmatpush1.msra.mxu0 0.0
    %1989 = vmatprep.subr.mxu0 0.0
    %1990 = vmatpush1.msra.mxu0 0.0
    %1991 = vmatprep.subr.mxu0 0.0
    %1992 = vmatpush1.msra.mxu0 0.0
    %1993 = vmatprep.subr.mxu0 0.0
    %1994 = vmatpush1.msra.mxu0 0.0
    %1995 = vmatprep.subr.mxu0 0.0
    %1996 = vmatpush1.msra.mxu0 0.0
    %1997 = vmatprep.subr.mxu0 0.0
    %1998 = vmatpush1.msra.mxu0 0.0
    %1999 = vmatprep.subr.mxu0 0.0
    %2000 = vmatpush1.msra.mxu0 0.0
    %2001 = vmatprep.subr.mxu0 0.0
    %2002 = vmatpush1.msra.mxu0 0.0
    %2003 = vmatprep.subr.mxu0 0.0
    %2004 = vmatpush1.msra.mxu0 0.0
    %2005 = vmatprep.subr.mxu0 0.0
    %2006 = vmatpush1.msra.mxu0 0.0
    %2007 = vmatprep.subr.mxu0 0.0
    %2008 = vmatpush1.msra.mxu0 0.0
    %2009 = vmatprep.subr.mxu0 0.0
    %2010 = vmatpush1.msra.mxu0 0.0
    %2011 = vmatprep.subr.mxu0 0.0
    %2012 = vmatpush1.msra.mxu0 0.0
    %2013 = vmatprep.mubr.f32.mxu0 0.0
    %2014 = vmatmul.mubr.f32.gmra.mrb[0].mxu0 %v1947
    %v2015 = vpop.f32.mrb[0].mxu0
    %v2016 = vadd.f32 %v1943, %v2015
    %v2017 = vpop.f32.mrb[0].mxu0
    %2018 = vdwg.mxu0
    %v2019 = vxor.u32 %v2016, 2147483648
    %v2020 = vmul.f32 %v2019, 1.442695
    %v2021 = vpow.pop %v2020
    %v2022 = vadd.f32 %v2021, 1.0
    %v2023 = vrcp.pop %v2022
    %v2024 = vmul.f32 1.0, %v2023
    %v2025 = vtanh.pop %v2016
    %v2026 = vmul.f32 %v2024, 0.0
    %2028 = vrot.lane.b32.xlu0 %v2025, 64
    %v2029 = vpop.permute.xlu0 %2028
    %v2031 = vmul.f32 %v2024, %v2029
    %2033 = vrot.lane.b32.xlu0 %v2031, 32
    %v2034 = vpop.permute.xlu0 %2033
    %v2036 = vadd.f32 %v2026, %v2034
    %v2037 = vtanh.pop %v2036
    %2039 = vrot.lane.b32.xlu0 %v2037, 64
    %v2040 = vpop.permute.xlu0 %2039
    %v2042 = vmul.f32 %v2024, %v2040
    %2044 = vrot.lane.b32.xlu0 %v2042, 32
    %v2045 = vpop.permute.xlu0 %2044
    %2047 = vst.msk [vmem:[#allocation3] sm:$0x3] %vm219, %v2045
    %s2048 = scalar_lea.vmem [#allocation2], 2
    %v2049 = vld [vmem:[%s2048] sm:$0x3]
    %2050 = vrot.lane.b32.xlu0 %v2042, 96
    %v2051 = vpop.permute.xlu0 %2050
    %v2053 = vsel %vm1937, %v2049, %v2051
    %v2055 = vsel %vm1945, %v2053, 0
    %2057 = vmatprep.subr.mxu0 0.0
    %2058 = vmatpush1.msra.mxu0 %v1923
    %2059 = vmatprep.subr.mxu0 0.0
    %2060 = vmatpush1.msra.mxu0 %v1924
    %2061 = vmatprep.subr.mxu0 0.0
    %2062 = vmatpush1.msra.mxu0 %v1925
    %2063 = vmatprep.subr.mxu0 0.0
    %2064 = vmatpush1.msra.mxu0 %v1926
    %2065 = vmatprep.subr.mxu0 0.0
    %2066 = vmatpush1.msra.mxu0 %v1927
    %2067 = vmatprep.subr.mxu0 0.0
    %2068 = vmatpush1.msra.mxu0 %v1928
    %2069 = vmatprep.subr.mxu0 0.0
    %2070 = vmatpush1.msra.mxu0 %v1929
    %2071 = vmatprep.subr.mxu0 0.0
    %2072 = vmatpush1.msra.mxu0 %v1930
    %2073 = vmatprep.subr.mxu0 0.0
    %2074 = vmatpush1.msra.mxu0 %v1931
    %2075 = vmatprep.subr.mxu0 0.0
    %2076 = vmatpush1.msra.mxu0 %v1932
    %2077 = vmatprep.subr.mxu0 0.0
    %2078 = vmatpush1.msra.mxu0 %v1933
    %2079 = vmatprep.subr.mxu0 0.0
    %2080 = vmatpush1.msra.mxu0 %v1934
    %2081 = vmatprep.subr.mxu0 0.0
    %2082 = vmatpush1.msra.mxu0 0.0
    %2083 = vmatprep.subr.mxu0 0.0
    %2084 = vmatpush1.msra.mxu0 0.0
    %2085 = vmatprep.subr.mxu0 0.0
    %2086 = vmatpush1.msra.mxu0 0.0
    %2087 = vmatprep.subr.mxu0 0.0
    %2088 = vmatpush1.msra.mxu0 0.0
    %2089 = vmatprep.subr.mxu0 0.0
    %2090 = vmatpush1.msra.mxu0 0.0
    %2091 = vmatprep.subr.mxu0 0.0
    %2092 = vmatpush1.msra.mxu0 0.0
    %2093 = vmatprep.subr.mxu0 0.0
    %2094 = vmatpush1.msra.mxu0 0.0
    %2095 = vmatprep.subr.mxu0 0.0
    %2096 = vmatpush1.msra.mxu0 0.0
    %2097 = vmatprep.subr.mxu0 0.0
    %2098 = vmatpush1.msra.mxu0 0.0
    %2099 = vmatprep.subr.mxu0 0.0
    %2100 = vmatpush1.msra.mxu0 0.0
    %2101 = vmatprep.subr.mxu0 0.0
    %2102 = vmatpush1.msra.mxu0 0.0
    %2103 = vmatprep.subr.mxu0 0.0
    %2104 = vmatpush1.msra.mxu0 0.0
    %2105 = vmatprep.subr.mxu0 0.0
    %2106 = vmatpush1.msra.mxu0 0.0
    %2107 = vmatprep.subr.mxu0 0.0
    %2108 = vmatpush1.msra.mxu0 0.0
    %2109 = vmatprep.subr.mxu0 0.0
    %2110 = vmatpush1.msra.mxu0 0.0
    %2111 = vmatprep.subr.mxu0 0.0
    %2112 = vmatpush1.msra.mxu0 0.0
    %2113 = vmatprep.subr.mxu0 0.0
    %2114 = vmatpush1.msra.mxu0 0.0
    %2115 = vmatprep.subr.mxu0 0.0
    %2116 = vmatpush1.msra.mxu0 0.0
    %2117 = vmatprep.subr.mxu0 0.0
    %2118 = vmatpush1.msra.mxu0 0.0
    %2119 = vmatprep.subr.mxu0 0.0
    %2120 = vmatpush1.msra.mxu0 0.0
    %2121 = vmatprep.mubr.f32.mxu0 0.0
    %2122 = vmatmul.mubr.f32.gmra.mrb[0].mxu0 %v2055
    %v2123 = vpop.f32.mrb[0].mxu0
    %v2124 = vadd.f32 %v1943, %v2123
    %v2125 = vpop.f32.mrb[0].mxu0
    %2126 = vdwg.mxu0
    %v2127 = vxor.u32 %v2124, 2147483648
    %v2128 = vmul.f32 %v2127, 1.442695
    %v2129 = vpow.pop %v2128
    %v2130 = vadd.f32 %v2129, 1.0
    %v2131 = vrcp.pop %v2130
    %v2132 = vmul.f32 1.0, %v2131
    %v2133 = vtanh.pop %v2124
    %v2134 = vmul.f32 %v2132, %v2036
    %2136 = vrot.lane.b32.xlu0 %v2133, 64
    %v2137 = vpop.permute.xlu0 %2136
    %v2139 = vmul.f32 %v2132, %v2137
    %2141 = vrot.lane.b32.xlu0 %v2139, 32
    %v2142 = vpop.permute.xlu0 %2141
    %v2144 = vadd.f32 %v2134, %v2142
    %v2145 = vtanh.pop %v2144
    %2147 = vrot.lane.b32.xlu0 %v2145, 64
    %v2148 = vpop.permute.xlu0 %2147
    %v2150 = vmul.f32 %v2132, %v2148
    %2152 = vrot.lane.b32.xlu0 %v2150, 32
    %v2153 = vpop.permute.xlu0 %2152
    %2155 = vst.msk [vmem:[%s328] sm:$0x3] %vm219, %v2153
    %s2156 = scalar_lea.vmem [#allocation2], 4
    %v2157 = vld [vmem:[%s2156] sm:$0x3]
    %2158 = vrot.lane.b32.xlu0 %v2150, 96
    %v2159 = vpop.permute.xlu0 %2158
    %v2161 = vsel %vm1937, %v2157, %v2159
    %v2163 = vsel %vm1945, %v2161, 0
    %2165 = vmatprep.subr.mxu0 0.0
    %2166 = vmatpush1.msra.mxu0 %v1923
    %2167 = vmatprep.subr.mxu0 0.0
    %2168 = vmatpush1.msra.mxu0 %v1924
    %2169 = vmatprep.subr.mxu0 0.0
    %2170 = vmatpush1.msra.mxu0 %v1925
    %2171 = vmatprep.subr.mxu0 0.0
    %2172 = vmatpush1.msra.mxu0 %v1926
    %2173 = vmatprep.subr.mxu0 0.0
    %2174 = vmatpush1.msra.mxu0 %v1927
    %2175 = vmatprep.subr.mxu0 0.0
    %2176 = vmatpush1.msra.mxu0 %v1928
    %2177 = vmatprep.subr.mxu0 0.0
    %2178 = vmatpush1.msra.mxu0 %v1929
    %2179 = vmatprep.subr.mxu0 0.0
    %2180 = vmatpush1.msra.mxu0 %v1930
    %2181 = vmatprep.subr.mxu0 0.0
    %2182 = vmatpush1.msra.mxu0 %v1931
    %2183 = vmatprep.subr.mxu0 0.0
    %2184 = vmatpush1.msra.mxu0 %v1932
    %2185 = vmatprep.subr.mxu0 0.0
    %2186 = vmatpush1.msra.mxu0 %v1933
    %2187 = vmatprep.subr.mxu0 0.0
    %2188 = vmatpush1.msra.mxu0 %v1934
    %2189 = vmatprep.subr.mxu0 0.0
    %2190 = vmatpush1.msra.mxu0 0.0
    %2191 = vmatprep.subr.mxu0 0.0
    %2192 = vmatpush1.msra.mxu0 0.0
    %2193 = vmatprep.subr.mxu0 0.0
    %2194 = vmatpush1.msra.mxu0 0.0
    %2195 = vmatprep.subr.mxu0 0.0
    %2196 = vmatpush1.msra.mxu0 0.0
    %2197 = vmatprep.subr.mxu0 0.0
    %2198 = vmatpush1.msra.mxu0 0.0
    %2199 = vmatprep.subr.mxu0 0.0
    %2200 = vmatpush1.msra.mxu0 0.0
    %2201 = vmatprep.subr.mxu0 0.0
    %2202 = vmatpush1.msra.mxu0 0.0
    %2203 = vmatprep.subr.mxu0 0.0
    %2204 = vmatpush1.msra.mxu0 0.0
    %2205 = vmatprep.subr.mxu0 0.0
    %2206 = vmatpush1.msra.mxu0 0.0
    %2207 = vmatprep.subr.mxu0 0.0
    %2208 = vmatpush1.msra.mxu0 0.0
    %2209 = vmatprep.subr.mxu0 0.0
    %2210 = vmatpush1.msra.mxu0 0.0
    %2211 = vmatprep.subr.mxu0 0.0
    %2212 = vmatpush1.msra.mxu0 0.0
    %2213 = vmatprep.subr.mxu0 0.0
    %2214 = vmatpush1.msra.mxu0 0.0
    %2215 = vmatprep.subr.mxu0 0.0
    %2216 = vmatpush1.msra.mxu0 0.0
    %2217 = vmatprep.subr.mxu0 0.0
    %2218 = vmatpush1.msra.mxu0 0.0
    %2219 = vmatprep.subr.mxu0 0.0
    %2220 = vmatpush1.msra.mxu0 0.0
    %2221 = vmatprep.subr.mxu0 0.0
    %2222 = vmatpush1.msra.mxu0 0.0
    %2223 = vmatprep.subr.mxu0 0.0
    %2224 = vmatpush1.msra.mxu0 0.0
    %2225 = vmatprep.subr.mxu0 0.0
    %2226 = vmatpush1.msra.mxu0 0.0
    %2227 = vmatprep.subr.mxu0 0.0
    %2228 = vmatpush1.msra.mxu0 0.0
    %2229 = vmatprep.mubr.f32.mxu0 0.0
    %2230 = vmatmul.mubr.f32.gmra.mrb[0].mxu0 %v2163
    %v2231 = vpop.f32.mrb[0].mxu0
    %v2232 = vadd.f32 %v1943, %v2231
    %v2233 = vpop.f32.mrb[0].mxu0
    %2234 = vdwg.mxu0
    %v2235 = vxor.u32 %v2232, 2147483648
    %v2236 = vmul.f32 %v2235, 1.442695
    %v2237 = vpow.pop %v2236
    %v2238 = vadd.f32 %v2237, 1.0
    %v2239 = vrcp.pop %v2238
    %v2240 = vmul.f32 1.0, %v2239
    %v2241 = vtanh.pop %v2232
    %v2242 = vmul.f32 %v2240, %v2144
    %2244 = vrot.lane.b32.xlu0 %v2241, 64
    %v2245 = vpop.permute.xlu0 %2244
    %v2247 = vmul.f32 %v2240, %v2245
    %2249 = vrot.lane.b32.xlu0 %v2247, 32
    %v2250 = vpop.permute.xlu0 %2249
    %v2252 = vadd.f32 %v2242, %v2250
    %v2253 = vtanh.pop %v2252
    %2255 = vrot.lane.b32.xlu0 %v2253, 64
    %v2256 = vpop.permute.xlu0 %2255
    %v2258 = vmul.f32 %v2240, %v2256
    %2260 = vrot.lane.b32.xlu0 %v2258, 32
    %v2261 = vpop.permute.xlu0 %2260
    %2263 = vst.msk [vmem:[%s437] sm:$0x3] %vm219, %v2261
    %s2264 = scalar_lea.vmem [#allocation2], 6
    %v2265 = vld [vmem:[%s2264] sm:$0x3]
    %2266 = vrot.lane.b32.xlu0 %v2258, 96
    %v2267 = vpop.permute.xlu0 %2266
    %v2269 = vsel %vm1937, %v2265, %v2267
    %v2271 = vsel %vm1945, %v2269, 0
    %2273 = vmatprep.subr.mxu0 0.0
    %2274 = vmatpush1.msra.mxu0 %v1923
    %2275 = vmatprep.subr.mxu0 0.0
    %2276 = vmatpush1.msra.mxu0 %v1924
    %2277 = vmatprep.subr.mxu0 0.0
    %2278 = vmatpush1.msra.mxu0 %v1925
    %2279 = vmatprep.subr.mxu0 0.0
    %2280 = vmatpush1.msra.mxu0 %v1926
    %2281 = vmatprep.subr.mxu0 0.0
    %2282 = vmatpush1.msra.mxu0 %v1927
    %2283 = vmatprep.subr.mxu0 0.0
    %2284 = vmatpush1.msra.mxu0 %v1928
    %2285 = vmatprep.subr.mxu0 0.0
    %2286 = vmatpush1.msra.mxu0 %v1929
    %2287 = vmatprep.subr.mxu0 0.0
    %2288 = vmatpush1.msra.mxu0 %v1930
    %2289 = vmatprep.subr.mxu0 0.0
    %2290 = vmatpush1.msra.mxu0 %v1931
    %2291 = vmatprep.subr.mxu0 0.0
    %2292 = vmatpush1.msra.mxu0 %v1932
    %2293 = vmatprep.subr.mxu0 0.0
    %2294 = vmatpush1.msra.mxu0 %v1933
    %2295 = vmatprep.subr.mxu0 0.0
    %2296 = vmatpush1.msra.mxu0 %v1934
    %2297 = vmatprep.subr.mxu0 0.0
    %2298 = vmatpush1.msra.mxu0 0.0
    %2299 = vmatprep.subr.mxu0 0.0
    %2300 = vmatpush1.msra.mxu0 0.0
    %2301 = vmatprep.subr.mxu0 0.0
    %2302 = vmatpush1.msra.mxu0 0.0
    %2303 = vmatprep.subr.mxu0 0.0
    %2304 = vmatpush1.msra.mxu0 0.0
    %2305 = vmatprep.subr.mxu0 0.0
    %2306 = vmatpush1.msra.mxu0 0.0
    %2307 = vmatprep.subr.mxu0 0.0
    %2308 = vmatpush1.msra.mxu0 0.0
    %2309 = vmatprep.subr.mxu0 0.0
    %2310 = vmatpush1.msra.mxu0 0.0
    %2311 = vmatprep.subr.mxu0 0.0
    %2312 = vmatpush1.msra.mxu0 0.0
    %2313 = vmatprep.subr.mxu0 0.0
    %2314 = vmatpush1.msra.mxu0 0.0
    %2315 = vmatprep.subr.mxu0 0.0
    %2316 = vmatpush1.msra.mxu0 0.0
    %2317 = vmatprep.subr.mxu0 0.0
    %2318 = vmatpush1.msra.mxu0 0.0
    %2319 = vmatprep.subr.mxu0 0.0
    %2320 = vmatpush1.msra.mxu0 0.0
    %2321 = vmatprep.subr.mxu0 0.0
    %2322 = vmatpush1.msra.mxu0 0.0
    %2323 = vmatprep.subr.mxu0 0.0
    %2324 = vmatpush1.msra.mxu0 0.0
    %2325 = vmatprep.subr.mxu0 0.0
    %2326 = vmatpush1.msra.mxu0 0.0
    %2327 = vmatprep.subr.mxu0 0.0
    %2328 = vmatpush1.msra.mxu0 0.0
    %2329 = vmatprep.subr.mxu0 0.0
    %2330 = vmatpush1.msra.mxu0 0.0
    %2331 = vmatprep.subr.mxu0 0.0
    %2332 = vmatpush1.msra.mxu0 0.0
    %2333 = vmatprep.subr.mxu0 0.0
    %2334 = vmatpush1.msra.mxu0 0.0
    %2335 = vmatprep.subr.mxu0 0.0
    %2336 = vmatpush1.msra.mxu0 0.0
    %2337 = vmatprep.mubr.f32.mxu0 0.0
    %2338 = vmatmul.mubr.f32.gmra.mrb[0].mxu0 %v2271
    %v2339 = vpop.f32.mrb[0].mxu0
    %v2340 = vadd.f32 %v1943, %v2339
    %v2341 = vpop.f32.mrb[0].mxu0
    %2342 = vdwg.mxu0
    %v2343 = vxor.u32 %v2340, 2147483648
    %v2344 = vmul.f32 %v2343, 1.442695
    %v2345 = vpow.pop %v2344
    %v2346 = vadd.f32 %v2345, 1.0
    %v2347 = vrcp.pop %v2346
    %v2348 = vmul.f32 1.0, %v2347
    %v2349 = vtanh.pop %v2340
    %v2350 = vmul.f32 %v2348, %v2252
    %2352 = vrot.lane.b32.xlu0 %v2349, 64
    %v2353 = vpop.permute.xlu0 %2352
    %v2355 = vmul.f32 %v2348, %v2353
    %2357 = vrot.lane.b32.xlu0 %v2355, 32
    %v2358 = vpop.permute.xlu0 %2357
    %v2360 = vadd.f32 %v2350, %v2358
    %v2361 = vtanh.pop %v2360
    %2363 = vrot.lane.b32.xlu0 %v2361, 64
    %v2364 = vpop.permute.xlu0 %2363
    %v2366 = vmul.f32 %v2348, %v2364
    %2368 = vrot.lane.b32.xlu0 %v2366, 32
    %v2369 = vpop.permute.xlu0 %2368
    %2371 = vst.msk [vmem:[%s546] sm:$0x3] %vm219, %v2369
    %s2372 = scalar_lea.vmem [#allocation2], 8
    %v2373 = vld [vmem:[%s2372] sm:$0x3]
    %2374 = vrot.lane.b32.xlu0 %v2366, 96
    %v2375 = vpop.permute.xlu0 %2374
    %v2377 = vsel %vm1937, %v2373, %v2375
    %v2379 = vsel %vm1945, %v2377, 0
    %2381 = vmatprep.subr.mxu0 0.0
    %2382 = vmatpush1.msra.mxu0 %v1923
    %2383 = vmatprep.subr.mxu0 0.0
    %2384 = vmatpush1.msra.mxu0 %v1924
    %2385 = vmatprep.subr.mxu0 0.0
    %2386 = vmatpush1.msra.mxu0 %v1925
    %2387 = vmatprep.subr.mxu0 0.0
    %2388 = vmatpush1.msra.mxu0 %v1926
    %2389 = vmatprep.subr.mxu0 0.0
    %2390 = vmatpush1.msra.mxu0 %v1927
    %2391 = vmatprep.subr.mxu0 0.0
    %2392 = vmatpush1.msra.mxu0 %v1928
    %2393 = vmatprep.subr.mxu0 0.0
    %2394 = vmatpush1.msra.mxu0 %v1929
    %2395 = vmatprep.subr.mxu0 0.0
    %2396 = vmatpush1.msra.mxu0 %v1930
    %2397 = vmatprep.subr.mxu0 0.0
    %2398 = vmatpush1.msra.mxu0 %v1931
    %2399 = vmatprep.subr.mxu0 0.0
    %2400 = vmatpush1.msra.mxu0 %v1932
    %2401 = vmatprep.subr.mxu0 0.0
    %2402 = vmatpush1.msra.mxu0 %v1933
    %2403 = vmatprep.subr.mxu0 0.0
    %2404 = vmatpush1.msra.mxu0 %v1934
    %2405 = vmatprep.subr.mxu0 0.0
    %2406 = vmatpush1.msra.mxu0 0.0
    %2407 = vmatprep.subr.mxu0 0.0
    %2408 = vmatpush1.msra.mxu0 0.0
    %2409 = vmatprep.subr.mxu0 0.0
    %2410 = vmatpush1.msra.mxu0 0.0
    %2411 = vmatprep.subr.mxu0 0.0
    %2412 = vmatpush1.msra.mxu0 0.0
    %2413 = vmatprep.subr.mxu0 0.0
    %2414 = vmatpush1.msra.mxu0 0.0
    %2415 = vmatprep.subr.mxu0 0.0
    %2416 = vmatpush1.msra.mxu0 0.0
    %2417 = vmatprep.subr.mxu0 0.0
    %2418 = vmatpush1.msra.mxu0 0.0
    %2419 = vmatprep.subr.mxu0 0.0
    %2420 = vmatpush1.msra.mxu0 0.0
    %2421 = vmatprep.subr.mxu0 0.0
    %2422 = vmatpush1.msra.mxu0 0.0
    %2423 = vmatprep.subr.mxu0 0.0
    %2424 = vmatpush1.msra.mxu0 0.0
    %2425 = vmatprep.subr.mxu0 0.0
    %2426 = vmatpush1.msra.mxu0 0.0
    %2427 = vmatprep.subr.mxu0 0.0
    %2428 = vmatpush1.msra.mxu0 0.0
    %2429 = vmatprep.subr.mxu0 0.0
    %2430 = vmatpush1.msra.mxu0 0.0
    %2431 = vmatprep.subr.mxu0 0.0
    %2432 = vmatpush1.msra.mxu0 0.0
    %2433 = vmatprep.subr.mxu0 0.0
    %2434 = vmatpush1.msra.mxu0 0.0
    %2435 = vmatprep.subr.mxu0 0.0
    %2436 = vmatpush1.msra.mxu0 0.0
    %2437 = vmatprep.subr.mxu0 0.0
    %2438 = vmatpush1.msra.mxu0 0.0
    %2439 = vmatprep.subr.mxu0 0.0
    %2440 = vmatpush1.msra.mxu0 0.0
    %2441 = vmatprep.subr.mxu0 0.0
    %2442 = vmatpush1.msra.mxu0 0.0
    %2443 = vmatprep.subr.mxu0 0.0
    %2444 = vmatpush1.msra.mxu0 0.0
    %2445 = vmatprep.mubr.f32.mxu0 0.0
    %2446 = vmatmul.mubr.f32.gmra.mrb[0].mxu0 %v2379
    %v2447 = vpop.f32.mrb[0].mxu0
    %v2448 = vadd.f32 %v1943, %v2447
    %v2449 = vpop.f32.mrb[0].mxu0
    %2450 = vdwg.mxu0
    %v2451 = vxor.u32 %v2448, 2147483648
    %v2452 = vmul.f32 %v2451, 1.442695
    %v2453 = vpow.pop %v2452
    %v2454 = vadd.f32 %v2453, 1.0
    %v2455 = vrcp.pop %v2454
    %v2456 = vmul.f32 1.0, %v2455
    %v2457 = vtanh.pop %v2448
    %v2458 = vmul.f32 %v2456, %v2360
    %2460 = vrot.lane.b32.xlu0 %v2457, 64
    %v2461 = vpop.permute.xlu0 %2460
    %v2463 = vmul.f32 %v2456, %v2461
    %2465 = vrot.lane.b32.xlu0 %v2463, 32
    %v2466 = vpop.permute.xlu0 %2465
    %v2468 = vadd.f32 %v2458, %v2466
    %v2469 = vtanh.pop %v2468
    %2471 = vrot.lane.b32.xlu0 %v2469, 64
    %v2472 = vpop.permute.xlu0 %2471
    %v2474 = vmul.f32 %v2456, %v2472
    %2476 = vrot.lane.b32.xlu0 %v2474, 32
    %v2477 = vpop.permute.xlu0 %2476
    %2479 = vst.msk [vmem:[%s655] sm:$0x3] %vm219, %v2477
    %s2480 = scalar_lea.vmem [#allocation2], 10
    %v2481 = vld [vmem:[%s2480] sm:$0x3]
    %2482 = vrot.lane.b32.xlu0 %v2474, 96
    %v2483 = vpop.permute.xlu0 %2482
    %v2485 = vsel %vm1937, %v2481, %v2483
    %v2487 = vsel %vm1945, %v2485, 0
    %2489 = vmatprep.subr.mxu0 0.0
    %2490 = vmatpush1.msra.mxu0 %v1923
    %2491 = vmatprep.subr.mxu0 0.0
    %2492 = vmatpush1.msra.mxu0 %v1924
    %2493 = vmatprep.subr.mxu0 0.0
    %2494 = vmatpush1.msra.mxu0 %v1925
    %2495 = vmatprep.subr.mxu0 0.0
    %2496 = vmatpush1.msra.mxu0 %v1926
    %2497 = vmatprep.subr.mxu0 0.0
    %2498 = vmatpush1.msra.mxu0 %v1927
    %2499 = vmatprep.subr.mxu0 0.0
    %2500 = vmatpush1.msra.mxu0 %v1928
    %2501 = vmatprep.subr.mxu0 0.0
    %2502 = vmatpush1.msra.mxu0 %v1929
    %2503 = vmatprep.subr.mxu0 0.0
    %2504 = vmatpush1.msra.mxu0 %v1930
    %2505 = vmatprep.subr.mxu0 0.0
    %2506 = vmatpush1.msra.mxu0 %v1931
    %2507 = vmatprep.subr.mxu0 0.0
    %2508 = vmatpush1.msra.mxu0 %v1932
    %2509 = vmatprep.subr.mxu0 0.0
    %2510 = vmatpush1.msra.mxu0 %v1933
    %2511 = vmatprep.subr.mxu0 0.0
    %2512 = vmatpush1.msra.mxu0 %v1934
    %2513 = vmatprep.subr.mxu0 0.0
    %2514 = vmatpush1.msra.mxu0 0.0
    %2515 = vmatprep.subr.mxu0 0.0
    %2516 = vmatpush1.msra.mxu0 0.0
    %2517 = vmatprep.subr.mxu0 0.0
    %2518 = vmatpush1.msra.mxu0 0.0
    %2519 = vmatprep.subr.mxu0 0.0
    %2520 = vmatpush1.msra.mxu0 0.0
    %2521 = vmatprep.subr.mxu0 0.0
    %2522 = vmatpush1.msra.mxu0 0.0
    %2523 = vmatprep.subr.mxu0 0.0
    %2524 = vmatpush1.msra.mxu0 0.0
    %2525 = vmatprep.subr.mxu0 0.0
    %2526 = vmatpush1.msra.mxu0 0.0
    %2527 = vmatprep.subr.mxu0 0.0
    %2528 = vmatpush1.msra.mxu0 0.0
    %2529 = vmatprep.subr.mxu0 0.0
    %2530 = vmatpush1.msra.mxu0 0.0
    %2531 = vmatprep.subr.mxu0 0.0
    %2532 = vmatpush1.msra.mxu0 0.0
    %2533 = vmatprep.subr.mxu0 0.0
    %2534 = vmatpush1.msra.mxu0 0.0
    %2535 = vmatprep.subr.mxu0 0.0
    %2536 = vmatpush1.msra.mxu0 0.0
    %2537 = vmatprep.subr.mxu0 0.0
    %2538 = vmatpush1.msra.mxu0 0.0
    %2539 = vmatprep.subr.mxu0 0.0
    %2540 = vmatpush1.msra.mxu0 0.0
    %2541 = vmatprep.subr.mxu0 0.0
    %2542 = vmatpush1.msra.mxu0 0.0
    %2543 = vmatprep.subr.mxu0 0.0
    %2544 = vmatpush1.msra.mxu0 0.0
    %2545 = vmatprep.subr.mxu0 0.0
    %2546 = vmatpush1.msra.mxu0 0.0
    %2547 = vmatprep.subr.mxu0 0.0
    %2548 = vmatpush1.msra.mxu0 0.0
    %2549 = vmatprep.subr.mxu0 0.0
    %2550 = vmatpush1.msra.mxu0 0.0
    %2551 = vmatprep.subr.mxu0 0.0
    %2552 = vmatpush1.msra.mxu0 0.0
    %2553 = vmatprep.mubr.f32.mxu0 0.0
    %2554 = vmatmul.mubr.f32.gmra.mrb[0].mxu0 %v2487
    %v2555 = vpop.f32.mrb[0].mxu0
    %v2556 = vadd.f32 %v1943, %v2555
    %v2557 = vpop.f32.mrb[0].mxu0
    %2558 = vdwg.mxu0
    %v2559 = vxor.u32 %v2556, 2147483648
    %v2560 = vmul.f32 %v2559, 1.442695
    %v2561 = vpow.pop %v2560
    %v2562 = vadd.f32 %v2561, 1.0
    %v2563 = vrcp.pop %v2562
    %v2564 = vmul.f32 1.0, %v2563
    %v2565 = vtanh.pop %v2556
    %v2566 = vmul.f32 %v2564, %v2468
    %2568 = vrot.lane.b32.xlu0 %v2565, 64
    %v2569 = vpop.permute.xlu0 %2568
    %v2571 = vmul.f32 %v2564, %v2569
    %2573 = vrot.lane.b32.xlu0 %v2571, 32
    %v2574 = vpop.permute.xlu0 %2573
    %v2576 = vadd.f32 %v2566, %v2574
    %v2577 = vtanh.pop %v2576
    %2579 = vrot.lane.b32.xlu0 %v2577, 64
    %v2580 = vpop.permute.xlu0 %2579
    %v2582 = vmul.f32 %v2564, %v2580
    %2584 = vrot.lane.b32.xlu0 %v2582, 32
    %v2585 = vpop.permute.xlu0 %2584
    %2587 = vst.msk [vmem:[%s764] sm:$0x3] %vm219, %v2585
    %s2588 = scalar_lea.vmem [#allocation2], 12
    %v2589 = vld [vmem:[%s2588] sm:$0x3]
    %2590 = vrot.lane.b32.xlu0 %v2582, 96
    %v2591 = vpop.permute.xlu0 %2590
    %v2593 = vsel %vm1937, %v2589, %v2591
    %v2595 = vsel %vm1945, %v2593, 0
    %2597 = vmatprep.subr.mxu0 0.0
    %2598 = vmatpush1.msra.mxu0 %v1923
    %2599 = vmatprep.subr.mxu0 0.0
    %2600 = vmatpush1.msra.mxu0 %v1924
    %2601 = vmatprep.subr.mxu0 0.0
    %2602 = vmatpush1.msra.mxu0 %v1925
    %2603 = vmatprep.subr.mxu0 0.0
    %2604 = vmatpush1.msra.mxu0 %v1926
    %2605 = vmatprep.subr.mxu0 0.0
    %2606 = vmatpush1.msra.mxu0 %v1927
    %2607 = vmatprep.subr.mxu0 0.0
    %2608 = vmatpush1.msra.mxu0 %v1928
    %2609 = vmatprep.subr.mxu0 0.0
    %2610 = vmatpush1.msra.mxu0 %v1929
    %2611 = vmatprep.subr.mxu0 0.0
    %2612 = vmatpush1.msra.mxu0 %v1930
    %2613 = vmatprep.subr.mxu0 0.0
    %2614 = vmatpush1.msra.mxu0 %v1931
    %2615 = vmatprep.subr.mxu0 0.0
    %2616 = vmatpush1.msra.mxu0 %v1932
    %2617 = vmatprep.subr.mxu0 0.0
    %2618 = vmatpush1.msra.mxu0 %v1933
    %2619 = vmatprep.subr.mxu0 0.0
    %2620 = vmatpush1.msra.mxu0 %v1934
    %2621 = vmatprep.subr.mxu0 0.0
    %2622 = vmatpush1.msra.mxu0 0.0
    %2623 = vmatprep.subr.mxu0 0.0
    %2624 = vmatpush1.msra.mxu0 0.0
    %2625 = vmatprep.subr.mxu0 0.0
    %2626 = vmatpush1.msra.mxu0 0.0
    %2627 = vmatprep.subr.mxu0 0.0
    %2628 = vmatpush1.msra.mxu0 0.0
    %2629 = vmatprep.subr.mxu0 0.0
    %2630 = vmatpush1.msra.mxu0 0.0
    %2631 = vmatprep.subr.mxu0 0.0
    %2632 = vmatpush1.msra.mxu0 0.0
    %2633 = vmatprep.subr.mxu0 0.0
    %2634 = vmatpush1.msra.mxu0 0.0
    %2635 = vmatprep.subr.mxu0 0.0
    %2636 = vmatpush1.msra.mxu0 0.0
    %2637 = vmatprep.subr.mxu0 0.0
    %2638 = vmatpush1.msra.mxu0 0.0
    %2639 = vmatprep.subr.mxu0 0.0
    %2640 = vmatpush1.msra.mxu0 0.0
    %2641 = vmatprep.subr.mxu0 0.0
    %2642 = vmatpush1.msra.mxu0 0.0
    %2643 = vmatprep.subr.mxu0 0.0
    %2644 = vmatpush1.msra.mxu0 0.0
    %2645 = vmatprep.subr.mxu0 0.0
    %2646 = vmatpush1.msra.mxu0 0.0
    %2647 = vmatprep.subr.mxu0 0.0
    %2648 = vmatpush1.msra.mxu0 0.0
    %2649 = vmatprep.subr.mxu0 0.0
    %2650 = vmatpush1.msra.mxu0 0.0
    %2651 = vmatprep.subr.mxu0 0.0
    %2652 = vmatpush1.msra.mxu0 0.0
    %2653 = vmatprep.subr.mxu0 0.0
    %2654 = vmatpush1.msra.mxu0 0.0
    %2655 = vmatprep.subr.mxu0 0.0
    %2656 = vmatpush1.msra.mxu0 0.0
    %2657 = vmatprep.subr.mxu0 0.0
    %2658 = vmatpush1.msra.mxu0 0.0
    %2659 = vmatprep.subr.mxu0 0.0
    %2660 = vmatpush1.msra.mxu0 0.0
    %2661 = vmatprep.mubr.f32.mxu0 0.0
    %2662 = vmatmul.mubr.f32.gmra.mrb[0].mxu0 %v2595
    %v2663 = vpop.f32.mrb[0].mxu0
    %v2664 = vadd.f32 %v1943, %v2663
    %v2665 = vpop.f32.mrb[0].mxu0
    %2666 = vdwg.mxu0
    %v2667 = vxor.u32 %v2664, 2147483648
    %v2668 = vmul.f32 %v2667, 1.442695
    %v2669 = vpow.pop %v2668
    %v2670 = vadd.f32 %v2669, 1.0
    %v2671 = vrcp.pop %v2670
    %v2672 = vmul.f32 1.0, %v2671
    %v2673 = vtanh.pop %v2664
    %v2674 = vmul.f32 %v2672, %v2576
    %2676 = vrot.lane.b32.xlu0 %v2673, 64
    %v2677 = vpop.permute.xlu0 %2676
    %v2679 = vmul.f32 %v2672, %v2677
    %2681 = vrot.lane.b32.xlu0 %v2679, 32
    %v2682 = vpop.permute.xlu0 %2681
    %v2684 = vadd.f32 %v2674, %v2682
    %v2685 = vtanh.pop %v2684
    %2687 = vrot.lane.b32.xlu0 %v2685, 64
    %v2688 = vpop.permute.xlu0 %2687
    %v2690 = vmul.f32 %v2672, %v2688
    %2692 = vrot.lane.b32.xlu0 %v2690, 32
    %v2693 = vpop.permute.xlu0 %2692
    %2695 = vst.msk [vmem:[%s873] sm:$0x3] %vm219, %v2693
    %s2696 = scalar_lea.vmem [#allocation2], 14
    %v2697 = vld [vmem:[%s2696] sm:$0x3]
    %2698 = vrot.lane.b32.xlu0 %v2690, 96
    %v2699 = vpop.permute.xlu0 %2698
    %v2701 = vsel %vm1937, %v2697, %v2699
    %v2703 = vsel %vm1945, %v2701, 0
    %2705 = vmatprep.subr.mxu0 0.0
    %2706 = vmatpush1.msra.mxu0 %v1923
    %2707 = vmatprep.subr.mxu0 0.0
    %2708 = vmatpush1.msra.mxu0 %v1924
    %2709 = vmatprep.subr.mxu0 0.0
    %2710 = vmatpush1.msra.mxu0 %v1925
    %2711 = vmatprep.subr.mxu0 0.0
    %2712 = vmatpush1.msra.mxu0 %v1926
    %2713 = vmatprep.subr.mxu0 0.0
    %2714 = vmatpush1.msra.mxu0 %v1927
    %2715 = vmatprep.subr.mxu0 0.0
    %2716 = vmatpush1.msra.mxu0 %v1928
    %2717 = vmatprep.subr.mxu0 0.0
    %2718 = vmatpush1.msra.mxu0 %v1929
    %2719 = vmatprep.subr.mxu0 0.0
    %2720 = vmatpush1.msra.mxu0 %v1930
    %2721 = vmatprep.subr.mxu0 0.0
    %2722 = vmatpush1.msra.mxu0 %v1931
    %2723 = vmatprep.subr.mxu0 0.0
    %2724 = vmatpush1.msra.mxu0 %v1932
    %2725 = vmatprep.subr.mxu0 0.0
    %2726 = vmatpush1.msra.mxu0 %v1933
    %2727 = vmatprep.subr.mxu0 0.0
    %2728 = vmatpush1.msra.mxu0 %v1934
    %2729 = vmatprep.subr.mxu0 0.0
    %2730 = vmatpush1.msra.mxu0 0.0
    %2731 = vmatprep.subr.mxu0 0.0
    %2732 = vmatpush1.msra.mxu0 0.0
    %2733 = vmatprep.subr.mxu0 0.0
    %2734 = vmatpush1.msra.mxu0 0.0
    %2735 = vmatprep.subr.mxu0 0.0
    %2736 = vmatpush1.msra.mxu0 0.0
    %2737 = vmatprep.subr.mxu0 0.0
    %2738 = vmatpush1.msra.mxu0 0.0
    %2739 = vmatprep.subr.mxu0 0.0
    %2740 = vmatpush1.msra.mxu0 0.0
    %2741 = vmatprep.subr.mxu0 0.0
    %2742 = vmatpush1.msra.mxu0 0.0
    %2743 = vmatprep.subr.mxu0 0.0
    %2744 = vmatpush1.msra.mxu0 0.0
    %2745 = vmatprep.subr.mxu0 0.0
    %2746 = vmatpush1.msra.mxu0 0.0
    %2747 = vmatprep.subr.mxu0 0.0
    %2748 = vmatpush1.msra.mxu0 0.0
    %2749 = vmatprep.subr.mxu0 0.0
    %2750 = vmatpush1.msra.mxu0 0.0
    %2751 = vmatprep.subr.mxu0 0.0
    %2752 = vmatpush1.msra.mxu0 0.0
    %2753 = vmatprep.subr.mxu0 0.0
    %2754 = vmatpush1.msra.mxu0 0.0
    %2755 = vmatprep.subr.mxu0 0.0
    %2756 = vmatpush1.msra.mxu0 0.0
    %2757 = vmatprep.subr.mxu0 0.0
    %2758 = vmatpush1.msra.mxu0 0.0
    %2759 = vmatprep.subr.mxu0 0.0
    %2760 = vmatpush1.msra.mxu0 0.0
    %2761 = vmatprep.subr.mxu0 0.0
    %2762 = vmatpush1.msra.mxu0 0.0
    %2763 = vmatprep.subr.mxu0 0.0
    %2764 = vmatpush1.msra.mxu0 0.0
    %2765 = vmatprep.subr.mxu0 0.0
    %2766 = vmatpush1.msra.mxu0 0.0
    %2767 = vmatprep.subr.mxu0 0.0
    %2768 = vmatpush1.msra.mxu0 0.0
    %2769 = vmatprep.mubr.f32.mxu0 0.0
    %2770 = vmatmul.mubr.f32.gmra.mrb[0].mxu0 %v2703
    %v2771 = vpop.f32.mrb[0].mxu0
    %v2772 = vadd.f32 %v1943, %v2771
    %v2773 = vpop.f32.mrb[0].mxu0
    %2774 = vdwg.mxu0
    %v2775 = vxor.u32 %v2772, 2147483648
    %v2776 = vmul.f32 %v2775, 1.442695
    %v2777 = vpow.pop %v2776
    %v2778 = vadd.f32 %v2777, 1.0
    %v2779 = vrcp.pop %v2778
    %v2780 = vmul.f32 1.0, %v2779
    %v2781 = vtanh.pop %v2772
    %v2782 = vmul.f32 %v2780, %v2684
    %2784 = vrot.lane.b32.xlu0 %v2781, 64
    %v2785 = vpop.permute.xlu0 %2784
    %v2787 = vmul.f32 %v2780, %v2785
    %2789 = vrot.lane.b32.xlu0 %v2787, 32
    %v2790 = vpop.permute.xlu0 %2789
    %v2792 = vadd.f32 %v2782, %v2790
    %v2793 = vtanh.pop %v2792
    %2795 = vrot.lane.b32.xlu0 %v2793, 64
    %v2796 = vpop.permute.xlu0 %2795
    %v2798 = vmul.f32 %v2780, %v2796
    %2800 = vrot.lane.b32.xlu0 %v2798, 32
    %v2801 = vpop.permute.xlu0 %2800
    %2803 = vst.msk [vmem:[%s982] sm:$0x3] %vm219, %v2801
    %v2804 = vld [vmem:[#allocation13] sm:$0xff]
    %v2805 = vld [vmem:[#allocation13 + $0x8] sm:$0xff]
    %v2806 = vld [vmem:[#allocation13 + $0x10] sm:$0xff]
    %v2807 = vld [vmem:[#allocation13 + $0x18] sm:$0xff]
    %v2808 = vld [vmem:[#allocation13 + $0x20] sm:$0xff]
    %v2809 = vld [vmem:[#allocation13 + $0x28] sm:$0xff]
    %v2810 = vld [vmem:[#allocation13 + $0x30] sm:$0xff]
    %v2811 = vld [vmem:[#allocation13 + $0x38] sm:$0xff]
    %v2812 = vld [vmem:[#allocation13 + $0x40] sm:$0xff]
    %v2813 = vld [vmem:[#allocation13 + $0x48] sm:$0xff]
    %v2814 = vld [vmem:[#allocation13 + $0x50] sm:$0xff]
    %v2815 = vld [vmem:[#allocation13 + $0x58] sm:$0xff]
    %v2816 = vld [vmem:[%s8] sm:$0x1]
    %v2817 = vld [vmem:[%s2696] sm:$0x3]
    %v2818 = vsel %vm1937, %v2817, 0.0
    %v2820 = vlaneseq
    %v2821 = vshrl.u32 %v2820, 7
    %v2822 = vsub.s32 0, %v2821
    %v2823 = vrot.slane %v2816, %v2822
    %v2826 = vsel %vm1945, %v2818, 0
    %2828 = vmatprep.subr.mxu0 0.0
    %2829 = vmatpush1.msra.mxu0 %v2804
    %2830 = vmatprep.subr.mxu0 0.0
    %2831 = vmatpush1.msra.mxu0 %v2805
    %2832 = vmatprep.subr.mxu0 0.0
    %2833 = vmatpush1.msra.mxu0 %v2806
    %2834 = vmatprep.subr.mxu0 0.0
    %2835 = vmatpush1.msra.mxu0 %v2807
    %2836 = vmatprep.subr.mxu0 0.0
    %2837 = vmatpush1.msra.mxu0 %v2808
    %2838 = vmatprep.subr.mxu0 0.0
    %2839 = vmatpush1.msra.mxu0 %v2809
    %2840 = vmatprep.subr.mxu0 0.0
    %2841 = vmatpush1.msra.mxu0 %v2810
    %2842 = vmatprep.subr.mxu0 0.0
    %2843 = vmatpush1.msra.mxu0 %v2811
    %2844 = vmatprep.subr.mxu0 0.0
    %2845 = vmatpush1.msra.mxu0 %v2812
    %2846 = vmatprep.subr.mxu0 0.0
    %2847 = vmatpush1.msra.mxu0 %v2813
    %2848 = vmatprep.subr.mxu0 0.0
    %2849 = vmatpush1.msra.mxu0 %v2814
    %2850 = vmatprep.subr.mxu0 0.0
    %2851 = vmatpush1.msra.mxu0 %v2815
    %2852 = vmatprep.subr.mxu0 0.0
    %2853 = vmatpush1.msra.mxu0 0.0
    %2854 = vmatprep.subr.mxu0 0.0
    %2855 = vmatpush1.msra.mxu0 0.0
    %2856 = vmatprep.subr.mxu0 0.0
    %2857 = vmatpush1.msra.mxu0 0.0
    %2858 = vmatprep.subr.mxu0 0.0
    %2859 = vmatpush1.msra.mxu0 0.0
    %2860 = vmatprep.subr.mxu0 0.0
    %2861 = vmatpush1.msra.mxu0 0.0
    %2862 = vmatprep.subr.mxu0 0.0
    %2863 = vmatpush1.msra.mxu0 0.0
    %2864 = vmatprep.subr.mxu0 0.0
    %2865 = vmatpush1.msra.mxu0 0.0
    %2866 = vmatprep.subr.mxu0 0.0
    %2867 = vmatpush1.msra.mxu0 0.0
    %2868 = vmatprep.subr.mxu0 0.0
    %2869 = vmatpush1.msra.mxu0 0.0
    %2870 = vmatprep.subr.mxu0 0.0
    %2871 = vmatpush1.msra.mxu0 0.0
    %2872 = vmatprep.subr.mxu0 0.0
    %2873 = vmatpush1.msra.mxu0 0.0
    %2874 = vmatprep.subr.mxu0 0.0
    %2875 = vmatpush1.msra.mxu0 0.0
    %2876 = vmatprep.subr.mxu0 0.0
    %2877 = vmatpush1.msra.mxu0 0.0
    %2878 = vmatprep.subr.mxu0 0.0
    %2879 = vmatpush1.msra.mxu0 0.0
    %2880 = vmatprep.subr.mxu0 0.0
    %2881 = vmatpush1.msra.mxu0 0.0
    %2882 = vmatprep.subr.mxu0 0.0
    %2883 = vmatpush1.msra.mxu0 0.0
    %2884 = vmatprep.subr.mxu0 0.0
    %2885 = vmatpush1.msra.mxu0 0.0
    %2886 = vmatprep.subr.mxu0 0.0
    %2887 = vmatpush1.msra.mxu0 0.0
    %2888 = vmatprep.subr.mxu0 0.0
    %2889 = vmatpush1.msra.mxu0 0.0
    %2890 = vmatprep.subr.mxu0 0.0
    %2891 = vmatpush1.msra.mxu0 0.0
    %2892 = vmatprep.mubr.f32.mxu0 0.0
    %2893 = vmatmul.mubr.f32.gmra.mrb[0].mxu0 %v2826
    %v2894 = vpop.f32.mrb[0].mxu0
    %v2895 = vadd.f32 %v2823, %v2894
    %v2896 = vpop.f32.mrb[0].mxu0
    %2897 = vdwg.mxu0
    %v2898 = vxor.u32 %v2895, 2147483648
    %v2899 = vmul.f32 %v2898, 1.442695
    %v2900 = vpow.pop %v2899
    %v2901 = vadd.f32 %v2900, 1.0
    %v2902 = vrcp.pop %v2901
    %v2903 = vmul.f32 1.0, %v2902
    %v2904 = vtanh.pop %v2895
    %v2905 = vmul.f32 %v2903, 0.0
    %2907 = vrot.lane.b32.xlu0 %v2904, 64
    %v2908 = vpop.permute.xlu0 %2907
    %v2910 = vmul.f32 %v2903, %v2908
    %2912 = vrot.lane.b32.xlu0 %v2910, 32
    %v2913 = vpop.permute.xlu0 %2912
    %v2915 = vadd.f32 %v2905, %v2913
    %v2916 = vtanh.pop %v2915
    %2918 = vrot.lane.b32.xlu0 %v2916, 64
    %v2919 = vpop.permute.xlu0 %2918
    %v2921 = vmul.f32 %v2903, %v2919
    %2923 = vrot.lane.b32.xlu0 %v2921, 32
    %v2924 = vpop.permute.xlu0 %2923
    %2926 = vst.msk [vmem:[%s1100] sm:$0x3] %vm219, %v2924
    %v2927 = vld [vmem:[%s2588] sm:$0x3]
    %2928 = vrot.lane.b32.xlu0 %v2921, 96
    %v2929 = vpop.permute.xlu0 %2928
    %v2931 = vsel %vm1937, %v2927, %v2929
    %v2933 = vsel %vm1945, %v2931, 0
    %2935 = vmatprep.subr.mxu0 0.0
    %2936 = vmatpush1.msra.mxu0 %v2804
    %2937 = vmatprep.subr.mxu0 0.0
    %2938 = vmatpush1.msra.mxu0 %v2805
    %2939 = vmatprep.subr.mxu0 0.0
    %2940 = vmatpush1.msra.mxu0 %v2806
    %2941 = vmatprep.subr.mxu0 0.0
    %2942 = vmatpush1.msra.mxu0 %v2807
    %2943 = vmatprep.subr.mxu0 0.0
    %2944 = vmatpush1.msra.mxu0 %v2808
    %2945 = vmatprep.subr.mxu0 0.0
    %2946 = vmatpush1.msra.mxu0 %v2809
    %2947 = vmatprep.subr.mxu0 0.0
    %2948 = vmatpush1.msra.mxu0 %v2810
    %2949 = vmatprep.subr.mxu0 0.0
    %2950 = vmatpush1.msra.mxu0 %v2811
    %2951 = vmatprep.subr.mxu0 0.0
    %2952 = vmatpush1.msra.mxu0 %v2812
    %2953 = vmatprep.subr.mxu0 0.0
    %2954 = vmatpush1.msra.mxu0 %v2813
    %2955 = vmatprep.subr.mxu0 0.0
    %2956 = vmatpush1.msra.mxu0 %v2814
    %2957 = vmatprep.subr.mxu0 0.0
    %2958 = vmatpush1.msra.mxu0 %v2815
    %2959 = vmatprep.subr.mxu0 0.0
    %2960 = vmatpush1.msra.mxu0 0.0
    %2961 = vmatprep.subr.mxu0 0.0
    %2962 = vmatpush1.msra.mxu0 0.0
    %2963 = vmatprep.subr.mxu0 0.0
    %2964 = vmatpush1.msra.mxu0 0.0
    %2965 = vmatprep.subr.mxu0 0.0
    %2966 = vmatpush1.msra.mxu0 0.0
    %2967 = vmatprep.subr.mxu0 0.0
    %2968 = vmatpush1.msra.mxu0 0.0
    %2969 = vmatprep.subr.mxu0 0.0
    %2970 = vmatpush1.msra.mxu0 0.0
    %2971 = vmatprep.subr.mxu0 0.0
    %2972 = vmatpush1.msra.mxu0 0.0
    %2973 = vmatprep.subr.mxu0 0.0
    %2974 = vmatpush1.msra.mxu0 0.0
    %2975 = vmatprep.subr.mxu0 0.0
    %2976 = vmatpush1.msra.mxu0 0.0
    %2977 = vmatprep.subr.mxu0 0.0
    %2978 = vmatpush1.msra.mxu0 0.0
    %2979 = vmatprep.subr.mxu0 0.0
    %2980 = vmatpush1.msra.mxu0 0.0
    %2981 = vmatprep.subr.mxu0 0.0
    %2982 = vmatpush1.msra.mxu0 0.0
    %2983 = vmatprep.subr.mxu0 0.0
    %2984 = vmatpush1.msra.mxu0 0.0
    %2985 = vmatprep.subr.mxu0 0.0
    %2986 = vmatpush1.msra.mxu0 0.0
    %2987 = vmatprep.subr.mxu0 0.0
    %2988 = vmatpush1.msra.mxu0 0.0
    %2989 = vmatprep.subr.mxu0 0.0
    %2990 = vmatpush1.msra.mxu0 0.0
    %2991 = vmatprep.subr.mxu0 0.0
    %2992 = vmatpush1.msra.mxu0 0.0
    %2993 = vmatprep.subr.mxu0 0.0
    %2994 = vmatpush1.msra.mxu0 0.0
    %2995 = vmatprep.subr.mxu0 0.0
    %2996 = vmatpush1.msra.mxu0 0.0
    %2997 = vmatprep.subr.mxu0 0.0
    %2998 = vmatpush1.msra.mxu0 0.0
    %2999 = vmatprep.mubr.f32.mxu0 0.0
    %3000 = vmatmul.mubr.f32.gmra.mrb[0].mxu0 %v2933
    %v3001 = vpop.f32.mrb[0].mxu0
    %v3002 = vadd.f32 %v2823, %v3001
    %v3003 = vpop.f32.mrb[0].mxu0
    %3004 = vdwg.mxu0
    %v3005 = vxor.u32 %v3002, 2147483648
    %v3006 = vmul.f32 %v3005, 1.442695
    %v3007 = vpow.pop %v3006
    %v3008 = vadd.f32 %v3007, 1.0
    %v3009 = vrcp.pop %v3008
    %v3010 = vmul.f32 1.0, %v3009
    %v3011 = vtanh.pop %v3002
    %v3012 = vmul.f32 %v3010, %v2915
    %3014 = vrot.lane.b32.xlu0 %v3011, 64
    %v3015 = vpop.permute.xlu0 %3014
    %v3017 = vmul.f32 %v3010, %v3015
    %3019 = vrot.lane.b32.xlu0 %v3017, 32
    %v3020 = vpop.permute.xlu0 %3019
    %v3022 = vadd.f32 %v3012, %v3020
    %v3023 = vtanh.pop %v3022
    %3025 = vrot.lane.b32.xlu0 %v3023, 64
    %v3026 = vpop.permute.xlu0 %3025
    %v3028 = vmul.f32 %v3010, %v3026
    %3030 = vrot.lane.b32.xlu0 %v3028, 32
    %v3031 = vpop.permute.xlu0 %3030
    %3033 = vst.msk [vmem:[%s1208] sm:$0x3] %vm219, %v3031
    %v3034 = vld [vmem:[%s2480] sm:$0x3]
    %3035 = vrot.lane.b32.xlu0 %v3028, 96
    %v3036 = vpop.permute.xlu0 %3035
    %v3038 = vsel %vm1937, %v3034, %v3036
    %v3040 = vsel %vm1945, %v3038, 0
    %3042 = vmatprep.subr.mxu0 0.0
    %3043 = vmatpush1.msra.mxu0 %v2804
    %3044 = vmatprep.subr.mxu0 0.0
    %3045 = vmatpush1.msra.mxu0 %v2805
    %3046 = vmatprep.subr.mxu0 0.0
    %3047 = vmatpush1.msra.mxu0 %v2806
    %3048 = vmatprep.subr.mxu0 0.0
    %3049 = vmatpush1.msra.mxu0 %v2807
    %3050 = vmatprep.subr.mxu0 0.0
    %3051 = vmatpush1.msra.mxu0 %v2808
    %3052 = vmatprep.subr.mxu0 0.0
    %3053 = vmatpush1.msra.mxu0 %v2809
    %3054 = vmatprep.subr.mxu0 0.0
    %3055 = vmatpush1.msra.mxu0 %v2810
    %3056 = vmatprep.subr.mxu0 0.0
    %3057 = vmatpush1.msra.mxu0 %v2811
    %3058 = vmatprep.subr.mxu0 0.0
    %3059 = vmatpush1.msra.mxu0 %v2812
    %3060 = vmatprep.subr.mxu0 0.0
    %3061 = vmatpush1.msra.mxu0 %v2813
    %3062 = vmatprep.subr.mxu0 0.0
    %3063 = vmatpush1.msra.mxu0 %v2814
    %3064 = vmatprep.subr.mxu0 0.0
    %3065 = vmatpush1.msra.mxu0 %v2815
    %3066 = vmatprep.subr.mxu0 0.0
    %3067 = vmatpush1.msra.mxu0 0.0
    %3068 = vmatprep.subr.mxu0 0.0
    %3069 = vmatpush1.msra.mxu0 0.0
    %3070 = vmatprep.subr.mxu0 0.0
    %3071 = vmatpush1.msra.mxu0 0.0
    %3072 = vmatprep.subr.mxu0 0.0
    %3073 = vmatpush1.msra.mxu0 0.0
    %3074 = vmatprep.subr.mxu0 0.0
    %3075 = vmatpush1.msra.mxu0 0.0
    %3076 = vmatprep.subr.mxu0 0.0
    %3077 = vmatpush1.msra.mxu0 0.0
    %3078 = vmatprep.subr.mxu0 0.0
    %3079 = vmatpush1.msra.mxu0 0.0
    %3080 = vmatprep.subr.mxu0 0.0
    %3081 = vmatpush1.msra.mxu0 0.0
    %3082 = vmatprep.subr.mxu0 0.0
    %3083 = vmatpush1.msra.mxu0 0.0
    %3084 = vmatprep.subr.mxu0 0.0
    %3085 = vmatpush1.msra.mxu0 0.0
    %3086 = vmatprep.subr.mxu0 0.0
    %3087 = vmatpush1.msra.mxu0 0.0
    %3088 = vmatprep.subr.mxu0 0.0
    %3089 = vmatpush1.msra.mxu0 0.0
    %3090 = vmatprep.subr.mxu0 0.0
    %3091 = vmatpush1.msra.mxu0 0.0
    %3092 = vmatprep.subr.mxu0 0.0
    %3093 = vmatpush1.msra.mxu0 0.0
    %3094 = vmatprep.subr.mxu0 0.0
    %3095 = vmatpush1.msra.mxu0 0.0
    %3096 = vmatprep.subr.mxu0 0.0
    %3097 = vmatpush1.msra.mxu0 0.0
    %3098 = vmatprep.subr.mxu0 0.0
    %3099 = vmatpush1.msra.mxu0 0.0
    %3100 = vmatprep.subr.mxu0 0.0
    %3101 = vmatpush1.msra.mxu0 0.0
    %3102 = vmatprep.subr.mxu0 0.0
    %3103 = vmatpush1.msra.mxu0 0.0
    %3104 = vmatprep.subr.mxu0 0.0
    %3105 = vmatpush1.msra.mxu0 0.0
    %3106 = vmatprep.mubr.f32.mxu0 0.0
    %3107 = vmatmul.mubr.f32.gmra.mrb[0].mxu0 %v3040
    %v3108 = vpop.f32.mrb[0].mxu0
    %v3109 = vadd.f32 %v2823, %v3108
    %v3110 = vpop.f32.mrb[0].mxu0
    %3111 = vdwg.mxu0
    %v3112 = vxor.u32 %v3109, 2147483648
    %v3113 = vmul.f32 %v3112, 1.442695
    %v3114 = vpow.pop %v3113
    %v3115 = vadd.f32 %v3114, 1.0
    %v3116 = vrcp.pop %v3115
    %v3117 = vmul.f32 1.0, %v3116
    %v3118 = vtanh.pop %v3109
    %v3119 = vmul.f32 %v3117, %v3022
    %3121 = vrot.lane.b32.xlu0 %v3118, 64
    %v3122 = vpop.permute.xlu0 %3121
    %v3124 = vmul.f32 %v3117, %v3122
    %3126 = vrot.lane.b32.xlu0 %v3124, 32
    %v3127 = vpop.permute.xlu0 %3126
    %v3129 = vadd.f32 %v3119, %v3127
    %v3130 = vtanh.pop %v3129
    %3132 = vrot.lane.b32.xlu0 %v3130, 64
    %v3133 = vpop.permute.xlu0 %3132
    %v3135 = vmul.f32 %v3117, %v3133
    %3137 = vrot.lane.b32.xlu0 %v3135, 32
    %v3138 = vpop.permute.xlu0 %3137
    %3140 = vst.msk [vmem:[%s1316] sm:$0x3] %vm219, %v3138
    %v3141 = vld [vmem:[%s2372] sm:$0x3]
    %3142 = vrot.lane.b32.xlu0 %v3135, 96
    %v3143 = vpop.permute.xlu0 %3142
    %v3145 = vsel %vm1937, %v3141, %v3143
    %v3147 = vsel %vm1945, %v3145, 0
    %3149 = vmatprep.subr.mxu0 0.0
    %3150 = vmatpush1.msra.mxu0 %v2804
    %3151 = vmatprep.subr.mxu0 0.0
    %3152 = vmatpush1.msra.mxu0 %v2805
    %3153 = vmatprep.subr.mxu0 0.0
    %3154 = vmatpush1.msra.mxu0 %v2806
    %3155 = vmatprep.subr.mxu0 0.0
    %3156 = vmatpush1.msra.mxu0 %v2807
    %3157 = vmatprep.subr.mxu0 0.0
    %3158 = vmatpush1.msra.mxu0 %v2808
    %3159 = vmatprep.subr.mxu0 0.0
    %3160 = vmatpush1.msra.mxu0 %v2809
    %3161 = vmatprep.subr.mxu0 0.0
    %3162 = vmatpush1.msra.mxu0 %v2810
    %3163 = vmatprep.subr.mxu0 0.0
    %3164 = vmatpush1.msra.mxu0 %v2811
    %3165 = vmatprep.subr.mxu0 0.0
    %3166 = vmatpush1.msra.mxu0 %v2812
    %3167 = vmatprep.subr.mxu0 0.0
    %3168 = vmatpush1.msra.mxu0 %v2813
    %3169 = vmatprep.subr.mxu0 0.0
    %3170 = vmatpush1.msra.mxu0 %v2814
    %3171 = vmatprep.subr.mxu0 0.0
    %3172 = vmatpush1.msra.mxu0 %v2815
    %3173 = vmatprep.subr.mxu0 0.0
    %3174 = vmatpush1.msra.mxu0 0.0
    %3175 = vmatprep.subr.mxu0 0.0
    %3176 = vmatpush1.msra.mxu0 0.0
    %3177 = vmatprep.subr.mxu0 0.0
    %3178 = vmatpush1.msra.mxu0 0.0
    %3179 = vmatprep.subr.mxu0 0.0
    %3180 = vmatpush1.msra.mxu0 0.0
    %3181 = vmatprep.subr.mxu0 0.0
    %3182 = vmatpush1.msra.mxu0 0.0
    %3183 = vmatprep.subr.mxu0 0.0
    %3184 = vmatpush1.msra.mxu0 0.0
    %3185 = vmatprep.subr.mxu0 0.0
    %3186 = vmatpush1.msra.mxu0 0.0
    %3187 = vmatprep.subr.mxu0 0.0
    %3188 = vmatpush1.msra.mxu0 0.0
    %3189 = vmatprep.subr.mxu0 0.0
    %3190 = vmatpush1.msra.mxu0 0.0
    %3191 = vmatprep.subr.mxu0 0.0
    %3192 = vmatpush1.msra.mxu0 0.0
    %3193 = vmatprep.subr.mxu0 0.0
    %3194 = vmatpush1.msra.mxu0 0.0
    %3195 = vmatprep.subr.mxu0 0.0
    %3196 = vmatpush1.msra.mxu0 0.0
    %3197 = vmatprep.subr.mxu0 0.0
    %3198 = vmatpush1.msra.mxu0 0.0
    %3199 = vmatprep.subr.mxu0 0.0
    %3200 = vmatpush1.msra.mxu0 0.0
    %3201 = vmatprep.subr.mxu0 0.0
    %3202 = vmatpush1.msra.mxu0 0.0
    %3203 = vmatprep.subr.mxu0 0.0
    %3204 = vmatpush1.msra.mxu0 0.0
    %3205 = vmatprep.subr.mxu0 0.0
    %3206 = vmatpush1.msra.mxu0 0.0
    %3207 = vmatprep.subr.mxu0 0.0
    %3208 = vmatpush1.msra.mxu0 0.0
    %3209 = vmatprep.subr.mxu0 0.0
    %3210 = vmatpush1.msra.mxu0 0.0
    %3211 = vmatprep.subr.mxu0 0.0
    %3212 = vmatpush1.msra.mxu0 0.0
    %3213 = vmatprep.mubr.f32.mxu0 0.0
    %3214 = vmatmul.mubr.f32.gmra.mrb[0].mxu0 %v3147
    %v3215 = vpop.f32.mrb[0].mxu0
    %v3216 = vadd.f32 %v2823, %v3215
    %v3217 = vpop.f32.mrb[0].mxu0
    %3218 = vdwg.mxu0
    %v3219 = vxor.u32 %v3216, 2147483648
    %v3220 = vmul.f32 %v3219, 1.442695
    %v3221 = vpow.pop %v3220
    %v3222 = vadd.f32 %v3221, 1.0
    %v3223 = vrcp.pop %v3222
    %v3224 = vmul.f32 1.0, %v3223
    %v3225 = vtanh.pop %v3216
    %v3226 = vmul.f32 %v3224, %v3129
    %3228 = vrot.lane.b32.xlu0 %v3225, 64
    %v3229 = vpop.permute.xlu0 %3228
    %v3231 = vmul.f32 %v3224, %v3229
    %3233 = vrot.lane.b32.xlu0 %v3231, 32
    %v3234 = vpop.permute.xlu0 %3233
    %v3236 = vadd.f32 %v3226, %v3234
    %v3237 = vtanh.pop %v3236
    %3239 = vrot.lane.b32.xlu0 %v3237, 64
    %v3240 = vpop.permute.xlu0 %3239
    %v3242 = vmul.f32 %v3224, %v3240
    %3244 = vrot.lane.b32.xlu0 %v3242, 32
    %v3245 = vpop.permute.xlu0 %3244
    %3247 = vst.msk [vmem:[%s1424] sm:$0x3] %vm219, %v3245
    %v3248 = vld [vmem:[%s2264] sm:$0x3]
    %3249 = vrot.lane.b32.xlu0 %v3242, 96
    %v3250 = vpop.permute.xlu0 %3249
    %v3252 = vsel %vm1937, %v3248, %v3250
    %v3254 = vsel %vm1945, %v3252, 0
    %3256 = vmatprep.subr.mxu0 0.0
    %3257 = vmatpush1.msra.mxu0 %v2804
    %3258 = vmatprep.subr.mxu0 0.0
    %3259 = vmatpush1.msra.mxu0 %v2805
    %3260 = vmatprep.subr.mxu0 0.0
    %3261 = vmatpush1.msra.mxu0 %v2806
    %3262 = vmatprep.subr.mxu0 0.0
    %3263 = vmatpush1.msra.mxu0 %v2807
    %3264 = vmatprep.subr.mxu0 0.0
    %3265 = vmatpush1.msra.mxu0 %v2808
    %3266 = vmatprep.subr.mxu0 0.0
    %3267 = vmatpush1.msra.mxu0 %v2809
    %3268 = vmatprep.subr.mxu0 0.0
    %3269 = vmatpush1.msra.mxu0 %v2810
    %3270 = vmatprep.subr.mxu0 0.0
    %3271 = vmatpush1.msra.mxu0 %v2811
    %3272 = vmatprep.subr.mxu0 0.0
    %3273 = vmatpush1.msra.mxu0 %v2812
    %3274 = vmatprep.subr.mxu0 0.0
    %3275 = vmatpush1.msra.mxu0 %v2813
    %3276 = vmatprep.subr.mxu0 0.0
    %3277 = vmatpush1.msra.mxu0 %v2814
    %3278 = vmatprep.subr.mxu0 0.0
    %3279 = vmatpush1.msra.mxu0 %v2815
    %3280 = vmatprep.subr.mxu0 0.0
    %3281 = vmatpush1.msra.mxu0 0.0
    %3282 = vmatprep.subr.mxu0 0.0
    %3283 = vmatpush1.msra.mxu0 0.0
    %3284 = vmatprep.subr.mxu0 0.0
    %3285 = vmatpush1.msra.mxu0 0.0
    %3286 = vmatprep.subr.mxu0 0.0
    %3287 = vmatpush1.msra.mxu0 0.0
    %3288 = vmatprep.subr.mxu0 0.0
    %3289 = vmatpush1.msra.mxu0 0.0
    %3290 = vmatprep.subr.mxu0 0.0
    %3291 = vmatpush1.msra.mxu0 0.0
    %3292 = vmatprep.subr.mxu0 0.0
    %3293 = vmatpush1.msra.mxu0 0.0
    %3294 = vmatprep.subr.mxu0 0.0
    %3295 = vmatpush1.msra.mxu0 0.0
    %3296 = vmatprep.subr.mxu0 0.0
    %3297 = vmatpush1.msra.mxu0 0.0
    %3298 = vmatprep.subr.mxu0 0.0
    %3299 = vmatpush1.msra.mxu0 0.0
    %3300 = vmatprep.subr.mxu0 0.0
    %3301 = vmatpush1.msra.mxu0 0.0
    %3302 = vmatprep.subr.mxu0 0.0
    %3303 = vmatpush1.msra.mxu0 0.0
    %3304 = vmatprep.subr.mxu0 0.0
    %3305 = vmatpush1.msra.mxu0 0.0
    %3306 = vmatprep.subr.mxu0 0.0
    %3307 = vmatpush1.msra.mxu0 0.0
    %3308 = vmatprep.subr.mxu0 0.0
    %3309 = vmatpush1.msra.mxu0 0.0
    %3310 = vmatprep.subr.mxu0 0.0
    %3311 = vmatpush1.msra.mxu0 0.0
    %3312 = vmatprep.subr.mxu0 0.0
    %3313 = vmatpush1.msra.mxu0 0.0
    %3314 = vmatprep.subr.mxu0 0.0
    %3315 = vmatpush1.msra.mxu0 0.0
    %3316 = vmatprep.subr.mxu0 0.0
    %3317 = vmatpush1.msra.mxu0 0.0
    %3318 = vmatprep.subr.mxu0 0.0
    %3319 = vmatpush1.msra.mxu0 0.0
    %3320 = vmatprep.mubr.f32.mxu0 0.0
    %3321 = vmatmul.mubr.f32.gmra.mrb[0].mxu0 %v3254
    %v3322 = vpop.f32.mrb[0].mxu0
    %v3323 = vadd.f32 %v2823, %v3322
    %v3324 = vpop.f32.mrb[0].mxu0
    %3325 = vdwg.mxu0
    %v3326 = vxor.u32 %v3323, 2147483648
    %v3327 = vmul.f32 %v3326, 1.442695
    %v3328 = vpow.pop %v3327
    %v3329 = vadd.f32 %v3328, 1.0
    %v3330 = vrcp.pop %v3329
    %v3331 = vmul.f32 1.0, %v3330
    %v3332 = vtanh.pop %v3323
    %v3333 = vmul.f32 %v3331, %v3236
    %3335 = vrot.lane.b32.xlu0 %v3332, 64
    %v3336 = vpop.permute.xlu0 %3335
    %v3338 = vmul.f32 %v3331, %v3336
    %3340 = vrot.lane.b32.xlu0 %v3338, 32
    %v3341 = vpop.permute.xlu0 %3340
    %v3343 = vadd.f32 %v3333, %v3341
    %v3344 = vtanh.pop %v3343
    %3346 = vrot.lane.b32.xlu0 %v3344, 64
    %v3347 = vpop.permute.xlu0 %3346
    %v3349 = vmul.f32 %v3331, %v3347
    %3351 = vrot.lane.b32.xlu0 %v3349, 32
    %v3352 = vpop.permute.xlu0 %3351
    %3354 = vst.msk [vmem:[%s1532] sm:$0x3] %vm219, %v3352
    %v3355 = vld [vmem:[%s2156] sm:$0x3]
    %3356 = vrot.lane.b32.xlu0 %v3349, 96
    %v3357 = vpop.permute.xlu0 %3356
    %v3359 = vsel %vm1937, %v3355, %v3357
    %v3361 = vsel %vm1945, %v3359, 0
    %3363 = vmatprep.subr.mxu0 0.0
    %3364 = vmatpush1.msra.mxu0 %v2804
    %3365 = vmatprep.subr.mxu0 0.0
    %3366 = vmatpush1.msra.mxu0 %v2805
    %3367 = vmatprep.subr.mxu0 0.0
    %3368 = vmatpush1.msra.mxu0 %v2806
    %3369 = vmatprep.subr.mxu0 0.0
    %3370 = vmatpush1.msra.mxu0 %v2807
    %3371 = vmatprep.subr.mxu0 0.0
    %3372 = vmatpush1.msra.mxu0 %v2808
    %3373 = vmatprep.subr.mxu0 0.0
    %3374 = vmatpush1.msra.mxu0 %v2809
    %3375 = vmatprep.subr.mxu0 0.0
    %3376 = vmatpush1.msra.mxu0 %v2810
    %3377 = vmatprep.subr.mxu0 0.0
    %3378 = vmatpush1.msra.mxu0 %v2811
    %3379 = vmatprep.subr.mxu0 0.0
    %3380 = vmatpush1.msra.mxu0 %v2812
    %3381 = vmatprep.subr.mxu0 0.0
    %3382 = vmatpush1.msra.mxu0 %v2813
    %3383 = vmatprep.subr.mxu0 0.0
    %3384 = vmatpush1.msra.mxu0 %v2814
    %3385 = vmatprep.subr.mxu0 0.0
    %3386 = vmatpush1.msra.mxu0 %v2815
    %3387 = vmatprep.subr.mxu0 0.0
    %3388 = vmatpush1.msra.mxu0 0.0
    %3389 = vmatprep.subr.mxu0 0.0
    %3390 = vmatpush1.msra.mxu0 0.0
    %3391 = vmatprep.subr.mxu0 0.0
    %3392 = vmatpush1.msra.mxu0 0.0
    %3393 = vmatprep.subr.mxu0 0.0
    %3394 = vmatpush1.msra.mxu0 0.0
    %3395 = vmatprep.subr.mxu0 0.0
    %3396 = vmatpush1.msra.mxu0 0.0
    %3397 = vmatprep.subr.mxu0 0.0
    %3398 = vmatpush1.msra.mxu0 0.0
    %3399 = vmatprep.subr.mxu0 0.0
    %3400 = vmatpush1.msra.mxu0 0.0
    %3401 = vmatprep.subr.mxu0 0.0
    %3402 = vmatpush1.msra.mxu0 0.0
    %3403 = vmatprep.subr.mxu0 0.0
    %3404 = vmatpush1.msra.mxu0 0.0
    %3405 = vmatprep.subr.mxu0 0.0
    %3406 = vmatpush1.msra.mxu0 0.0
    %3407 = vmatprep.subr.mxu0 0.0
    %3408 = vmatpush1.msra.mxu0 0.0
    %3409 = vmatprep.subr.mxu0 0.0
    %3410 = vmatpush1.msra.mxu0 0.0
    %3411 = vmatprep.subr.mxu0 0.0
    %3412 = vmatpush1.msra.mxu0 0.0
    %3413 = vmatprep.subr.mxu0 0.0
    %3414 = vmatpush1.msra.mxu0 0.0
    %3415 = vmatprep.subr.mxu0 0.0
    %3416 = vmatpush1.msra.mxu0 0.0
    %3417 = vmatprep.subr.mxu0 0.0
    %3418 = vmatpush1.msra.mxu0 0.0
    %3419 = vmatprep.subr.mxu0 0.0
    %3420 = vmatpush1.msra.mxu0 0.0
    %3421 = vmatprep.subr.mxu0 0.0
    %3422 = vmatpush1.msra.mxu0 0.0
    %3423 = vmatprep.subr.mxu0 0.0
    %3424 = vmatpush1.msra.mxu0 0.0
    %3425 = vmatprep.subr.mxu0 0.0
    %3426 = vmatpush1.msra.mxu0 0.0
    %3427 = vmatprep.mubr.f32.mxu0 0.0
    %3428 = vmatmul.mubr.f32.gmra.mrb[0].mxu0 %v3361
    %v3429 = vpop.f32.mrb[0].mxu0
    %v3430 = vadd.f32 %v2823, %v3429
    %v3431 = vpop.f32.mrb[0].mxu0
    %3432 = vdwg.mxu0
    %v3433 = vxor.u32 %v3430, 2147483648
    %v3434 = vmul.f32 %v3433, 1.442695
    %v3435 = vpow.pop %v3434
    %v3436 = vadd.f32 %v3435, 1.0
    %v3437 = vrcp.pop %v3436
    %v3438 = vmul.f32 1.0, %v3437
    %v3439 = vtanh.pop %v3430
    %v3440 = vmul.f32 %v3438, %v3343
    %3442 = vrot.lane.b32.xlu0 %v3439, 64
    %v3443 = vpop.permute.xlu0 %3442
    %v3445 = vmul.f32 %v3438, %v3443
    %3447 = vrot.lane.b32.xlu0 %v3445, 32
    %v3448 = vpop.permute.xlu0 %3447
    %v3450 = vadd.f32 %v3440, %v3448
    %v3451 = vtanh.pop %v3450
    %3453 = vrot.lane.b32.xlu0 %v3451, 64
    %v3454 = vpop.permute.xlu0 %3453
    %v3456 = vmul.f32 %v3438, %v3454
    %3458 = vrot.lane.b32.xlu0 %v3456, 32
    %v3459 = vpop.permute.xlu0 %3458
    %3461 = vst.msk [vmem:[%s1640] sm:$0x3] %vm219, %v3459
    %v3462 = vld [vmem:[%s2048] sm:$0x3]
    %3463 = vrot.lane.b32.xlu0 %v3456, 96
    %v3464 = vpop.permute.xlu0 %3463
    %v3466 = vsel %vm1937, %v3462, %v3464
    %v3468 = vsel %vm1945, %v3466, 0
    %3470 = vmatprep.subr.mxu0 0.0
    %3471 = vmatpush1.msra.mxu0 %v2804
    %3472 = vmatprep.subr.mxu0 0.0
    %3473 = vmatpush1.msra.mxu0 %v2805
    %3474 = vmatprep.subr.mxu0 0.0
    %3475 = vmatpush1.msra.mxu0 %v2806
    %3476 = vmatprep.subr.mxu0 0.0
    %3477 = vmatpush1.msra.mxu0 %v2807
    %3478 = vmatprep.subr.mxu0 0.0
    %3479 = vmatpush1.msra.mxu0 %v2808
    %3480 = vmatprep.subr.mxu0 0.0
    %3481 = vmatpush1.msra.mxu0 %v2809
    %3482 = vmatprep.subr.mxu0 0.0
    %3483 = vmatpush1.msra.mxu0 %v2810
    %3484 = vmatprep.subr.mxu0 0.0
    %3485 = vmatpush1.msra.mxu0 %v2811
    %3486 = vmatprep.subr.mxu0 0.0
    %3487 = vmatpush1.msra.mxu0 %v2812
    %3488 = vmatprep.subr.mxu0 0.0
    %3489 = vmatpush1.msra.mxu0 %v2813
    %3490 = vmatprep.subr.mxu0 0.0
    %3491 = vmatpush1.msra.mxu0 %v2814
    %3492 = vmatprep.subr.mxu0 0.0
    %3493 = vmatpush1.msra.mxu0 %v2815
    %3494 = vmatprep.subr.mxu0 0.0
    %3495 = vmatpush1.msra.mxu0 0.0
    %3496 = vmatprep.subr.mxu0 0.0
    %3497 = vmatpush1.msra.mxu0 0.0
    %3498 = vmatprep.subr.mxu0 0.0
    %3499 = vmatpush1.msra.mxu0 0.0
    %3500 = vmatprep.subr.mxu0 0.0
    %3501 = vmatpush1.msra.mxu0 0.0
    %3502 = vmatprep.subr.mxu0 0.0
    %3503 = vmatpush1.msra.mxu0 0.0
    %3504 = vmatprep.subr.mxu0 0.0
    %3505 = vmatpush1.msra.mxu0 0.0
    %3506 = vmatprep.subr.mxu0 0.0
    %3507 = vmatpush1.msra.mxu0 0.0
    %3508 = vmatprep.subr.mxu0 0.0
    %3509 = vmatpush1.msra.mxu0 0.0
    %3510 = vmatprep.subr.mxu0 0.0
    %3511 = vmatpush1.msra.mxu0 0.0
    %3512 = vmatprep.subr.mxu0 0.0
    %3513 = vmatpush1.msra.mxu0 0.0
    %3514 = vmatprep.subr.mxu0 0.0
    %3515 = vmatpush1.msra.mxu0 0.0
    %3516 = vmatprep.subr.mxu0 0.0
    %3517 = vmatpush1.msra.mxu0 0.0
    %3518 = vmatprep.subr.mxu0 0.0
    %3519 = vmatpush1.msra.mxu0 0.0
    %3520 = vmatprep.subr.mxu0 0.0
    %3521 = vmatpush1.msra.mxu0 0.0
    %3522 = vmatprep.subr.mxu0 0.0
    %3523 = vmatpush1.msra.mxu0 0.0
    %3524 = vmatprep.subr.mxu0 0.0
    %3525 = vmatpush1.msra.mxu0 0.0
    %3526 = vmatprep.subr.mxu0 0.0
    %3527 = vmatpush1.msra.mxu0 0.0
    %3528 = vmatprep.subr.mxu0 0.0
    %3529 = vmatpush1.msra.mxu0 0.0
    %3530 = vmatprep.subr.mxu0 0.0
    %3531 = vmatpush1.msra.mxu0 0.0
    %3532 = vmatprep.subr.mxu0 0.0
    %3533 = vmatpush1.msra.mxu0 0.0
    %3534 = vmatprep.mubr.f32.mxu0 0.0
    %3535 = vmatmul.mubr.f32.gmra.mrb[0].mxu0 %v3468
    %v3536 = vpop.f32.mrb[0].mxu0
    %v3537 = vadd.f32 %v2823, %v3536
    %v3538 = vpop.f32.mrb[0].mxu0
    %3539 = vdwg.mxu0
    %v3540 = vxor.u32 %v3537, 2147483648
    %v3541 = vmul.f32 %v3540, 1.442695
    %v3542 = vpow.pop %v3541
    %v3543 = vadd.f32 %v3542, 1.0
    %v3544 = vrcp.pop %v3543
    %v3545 = vmul.f32 1.0, %v3544
    %v3546 = vtanh.pop %v3537
    %v3547 = vmul.f32 %v3545, %v3450
    %3549 = vrot.lane.b32.xlu0 %v3546, 64
    %v3550 = vpop.permute.xlu0 %3549
    %v3552 = vmul.f32 %v3545, %v3550
    %3554 = vrot.lane.b32.xlu0 %v3552, 32
    %v3555 = vpop.permute.xlu0 %3554
    %v3557 = vadd.f32 %v3547, %v3555
    %v3558 = vtanh.pop %v3557
    %3560 = vrot.lane.b32.xlu0 %v3558, 64
    %v3561 = vpop.permute.xlu0 %3560
    %v3563 = vmul.f32 %v3545, %v3561
    %3565 = vrot.lane.b32.xlu0 %v3563, 32
    %v3566 = vpop.permute.xlu0 %3565
    %3568 = vst.msk [vmem:[%s1748] sm:$0x3] %vm219, %v3566
    %v3569 = vld [vmem:[#allocation2] sm:$0x3]
    %3570 = vrot.lane.b32.xlu0 %v3563, 96
    %v3571 = vpop.permute.xlu0 %3570
    %v3573 = vsel %vm1937, %v3569, %v3571
    %v3575 = vsel %vm1945, %v3573, 0
    %3577 = vmatprep.subr.mxu0 0.0
    %3578 = vmatpush1.msra.mxu0 %v2804
    %3579 = vmatprep.subr.mxu0 0.0
    %3580 = vmatpush1.msra.mxu0 %v2805
    %3581 = vmatprep.subr.mxu0 0.0
    %3582 = vmatpush1.msra.mxu0 %v2806
    %3583 = vmatprep.subr.mxu0 0.0
    %3584 = vmatpush1.msra.mxu0 %v2807
    %3585 = vmatprep.subr.mxu0 0.0
    %3586 = vmatpush1.msra.mxu0 %v2808
    %3587 = vmatprep.subr.mxu0 0.0
    %3588 = vmatpush1.msra.mxu0 %v2809
    %3589 = vmatprep.subr.mxu0 0.0
    %3590 = vmatpush1.msra.mxu0 %v2810
    %3591 = vmatprep.subr.mxu0 0.0
    %3592 = vmatpush1.msra.mxu0 %v2811
    %3593 = vmatprep.subr.mxu0 0.0
    %3594 = vmatpush1.msra.mxu0 %v2812
    %3595 = vmatprep.subr.mxu0 0.0
    %3596 = vmatpush1.msra.mxu0 %v2813
    %3597 = vmatprep.subr.mxu0 0.0
    %3598 = vmatpush1.msra.mxu0 %v2814
    %3599 = vmatprep.subr.mxu0 0.0
    %3600 = vmatpush1.msra.mxu0 %v2815
    %3601 = vmatprep.subr.mxu0 0.0
    %3602 = vmatpush1.msra.mxu0 0.0
    %3603 = vmatprep.subr.mxu0 0.0
    %3604 = vmatpush1.msra.mxu0 0.0
    %3605 = vmatprep.subr.mxu0 0.0
    %3606 = vmatpush1.msra.mxu0 0.0
    %3607 = vmatprep.subr.mxu0 0.0
    %3608 = vmatpush1.msra.mxu0 0.0
    %3609 = vmatprep.subr.mxu0 0.0
    %3610 = vmatpush1.msra.mxu0 0.0
    %3611 = vmatprep.subr.mxu0 0.0
    %3612 = vmatpush1.msra.mxu0 0.0
    %3613 = vmatprep.subr.mxu0 0.0
    %3614 = vmatpush1.msra.mxu0 0.0
    %3615 = vmatprep.subr.mxu0 0.0
    %3616 = vmatpush1.msra.mxu0 0.0
    %3617 = vmatprep.subr.mxu0 0.0
    %3618 = vmatpush1.msra.mxu0 0.0
    %3619 = vmatprep.subr.mxu0 0.0
    %3620 = vmatpush1.msra.mxu0 0.0
    %3621 = vmatprep.subr.mxu0 0.0
    %3622 = vmatpush1.msra.mxu0 0.0
    %3623 = vmatprep.subr.mxu0 0.0
    %3624 = vmatpush1.msra.mxu0 0.0
    %3625 = vmatprep.subr.mxu0 0.0
    %3626 = vmatpush1.msra.mxu0 0.0
    %3627 = vmatprep.subr.mxu0 0.0
    %3628 = vmatpush1.msra.mxu0 0.0
    %3629 = vmatprep.subr.mxu0 0.0
    %3630 = vmatpush1.msra.mxu0 0.0
    %3631 = vmatprep.subr.mxu0 0.0
    %3632 = vmatpush1.msra.mxu0 0.0
    %3633 = vmatprep.subr.mxu0 0.0
    %3634 = vmatpush1.msra.mxu0 0.0
    %3635 = vmatprep.subr.mxu0 0.0
    %3636 = vmatpush1.msra.mxu0 0.0
    %3637 = vmatprep.subr.mxu0 0.0
    %3638 = vmatpush1.msra.mxu0 0.0
    %3639 = vmatprep.subr.mxu0 0.0
    %3640 = vmatpush1.msra.mxu0 0.0
    %3641 = vmatprep.mubr.f32.mxu0 0.0
    %3642 = vmatmul.mubr.f32.gmra.mrb[0].mxu0 %v3575
    %v3643 = vpop.f32.mrb[0].mxu0
    %v3644 = vadd.f32 %v2823, %v3643
    %v3645 = vpop.f32.mrb[0].mxu0
    %3646 = vdwg.mxu0
    %v3647 = vxor.u32 %v3644, 2147483648
    %v3648 = vmul.f32 %v3647, 1.442695
    %v3649 = vpow.pop %v3648
    %v3650 = vadd.f32 %v3649, 1.0
    %v3651 = vrcp.pop %v3650
    %v3652 = vmul.f32 1.0, %v3651
    %v3653 = vtanh.pop %v3644
    %v3654 = vmul.f32 %v3652, %v3557
    %3656 = vrot.lane.b32.xlu0 %v3653, 64
    %v3657 = vpop.permute.xlu0 %3656
    %v3659 = vmul.f32 %v3652, %v3657
    %3661 = vrot.lane.b32.xlu0 %v3659, 32
    %v3662 = vpop.permute.xlu0 %3661
    %v3664 = vadd.f32 %v3654, %v3662
    %v3665 = vtanh.pop %v3664
    %3667 = vrot.lane.b32.xlu0 %v3665, 64
    %v3668 = vpop.permute.xlu0 %3667
    %v3670 = vmul.f32 %v3652, %v3668
    %3672 = vrot.lane.b32.xlu0 %v3670, 32
    %v3673 = vpop.permute.xlu0 %3672
    %3675 = vst.msk [vmem:[#allocation4] sm:$0x3] %vm219, %v3673
    %v3676 = vld [vmem:[#allocation3] sm:$0x3]
    %v3677 = vld [vmem:[#allocation3 + $0x2] sm:$0x3]
    %v3678 = vld [vmem:[#allocation3 + $0x4] sm:$0x3]
    %v3679 = vld [vmem:[#allocation3 + $0x6] sm:$0x3]
    %v3680 = vld [vmem:[#allocation3 + $0x8] sm:$0x3]
    %v3681 = vld [vmem:[#allocation3 + $0xa] sm:$0x3]
    %v3682 = vld [vmem:[#allocation3 + $0xc] sm:$0x3]
    %v3683 = vld [vmem:[#allocation3 + $0xe] sm:$0x3]
    %v3684 = vld [vmem:[#allocation4] sm:$0x3]
    %v3685 = vld [vmem:[#allocation4 + $0x2] sm:$0x3]
    %v3686 = vld [vmem:[#allocation4 + $0x4] sm:$0x3]
    %v3687 = vld [vmem:[#allocation4 + $0x6] sm:$0x3]
    %v3688 = vld [vmem:[#allocation4 + $0x8] sm:$0x3]
    %v3689 = vld [vmem:[#allocation4 + $0xa] sm:$0x3]
    %v3690 = vld [vmem:[#allocation4 + $0xc] sm:$0x3]
    %v3691 = vld [vmem:[#allocation4 + $0xe] sm:$0x3]
    %3700 = vrot.lane.b32.xlu0 %v3684, 32
    %v3701 = vpop.permute.xlu0 %3700
    %3702 = vrot.lane.b32.xlu0 %v3685, 32
    %v3703 = vpop.permute.xlu0 %3702
    %3704 = vrot.lane.b32.xlu0 %v3686, 32
    %v3705 = vpop.permute.xlu0 %3704
    %3706 = vrot.lane.b32.xlu0 %v3687, 32
    %v3707 = vpop.permute.xlu0 %3706
    %3708 = vrot.lane.b32.xlu0 %v3688, 32
    %v3709 = vpop.permute.xlu0 %3708
    %3710 = vrot.lane.b32.xlu0 %v3689, 32
    %v3711 = vpop.permute.xlu0 %3710
    %3712 = vrot.lane.b32.xlu0 %v3690, 32
    %v3713 = vpop.permute.xlu0 %3712
    %3714 = vrot.lane.b32.xlu0 %v3691, 32
    %v3715 = vpop.permute.xlu0 %3714
    %v3724 = vsel %vm1905, %v3676, %v3701
    %v3725 = vsel %vm1905, %v3677, %v3703
    %v3726 = vsel %vm1905, %v3678, %v3705
    %v3727 = vsel %vm1905, %v3679, %v3707
    %v3728 = vsel %vm1905, %v3680, %v3709
    %v3729 = vsel %vm1905, %v3681, %v3711
    %v3730 = vsel %vm1905, %v3682, %v3713
    %v3731 = vsel %vm1905, %v3683, %v3715
    %3732 = vst.msk [vmem:[#allocation14] sm:$0x3] %vm1914, %v3724
    %3733 = vst.msk [vmem:[#allocation14 + $0x2] sm:$0x3] %vm1914, %v3725
    %3734 = vst.msk [vmem:[#allocation14 + $0x4] sm:$0x3] %vm1914, %v3726
    %3735 = vst.msk [vmem:[#allocation14 + $0x6] sm:$0x3] %vm1914, %v3727
    %3736 = vst.msk [vmem:[#allocation14 + $0x8] sm:$0x3] %vm1914, %v3728
    %3737 = vst.msk [vmem:[#allocation14 + $0xa] sm:$0x3] %vm1914, %v3729
    %3738 = vst.msk [vmem:[#allocation14 + $0xc] sm:$0x3] %vm1914, %v3730
    %3739 = vst.msk [vmem:[#allocation14 + $0xe] sm:$0x3] %vm1914, %v3731
    // Predicated region
    $region58: #{tpu_custom_call.1} parent=1 // pred_check
      _
    $region59: #{tpu_custom_call.1} parent=1 // pred_check_branch
      %3741 = sbr.rel (0) target = $region61
    $region60: #{tpu_custom_call.1} parent=1 // pred_region
      %s3743 = ssub.s32 256, 256
      %3744 = vsyncadd [#allocation7], %s3743
      %s3745 = sshll.u32 [#allocation14], 4
      %s3746 = int_to_ptr.vmem [resolvable:$true] %s3745
      %3751 = dma.vmem_to_hbm [thread:$0]  %s3746, 256, %s9, [#allocation7], 32, 32, 2
    $region61: #{tpu_custom_call.1} parent=1 // pred_fallthru
      _
    // Predicated region
    $region62: #{tpu_custom_call.1} parent=1 // pred_check
      _
    $region63: #{tpu_custom_call.1} parent=1 // pred_check_branch
      %3753 = sbr.rel (0) target = $region65
    $region64: #{tpu_custom_call.1} parent=1 // pred_region
      %3754 = dma.done [#allocation7], 256
    $region65: #{tpu_custom_call.1} parent=1 // pred_fallthru
      _
    %3755 = vsyncpa [#allocation6], 1
    %3756 = vsyncpa [#allocation9], 1
    %3757 = vsyncpa [#allocation12], 1
    %3758 = vsyncpa [#allocation7], 1

</llo_original>
